<compile_context>
chip_gen: v5e
topology: v5e:2x2
jax: 0.10.0
libtpu: 0.0.40
codegen_flags: <defaults>
</compile_context>

<pallas_src>
import functools

import jax
import jax.numpy as jnp
from jax import lax
from jax.experimental import pallas as pl
from jax.experimental.pallas import tpu as pltpu

_VMEM_LIMIT = 32 * 1024 * 1024


# ---------------------------------------------------------------- dense -----
# Input projection only (runs once, outside the hot loop): (N, Cin) @ (Cin, W) + b.
def _dense_kernel(x_ref, w_ref, b_ref, o_ref):
    o_ref[...] = (jnp.dot(x_ref[...], w_ref[...],
                          preferred_element_type=jnp.float32)
                  + b_ref[...]).astype(o_ref.dtype)


def dense(x2d, w, b):
    N, Cin = x2d.shape
    Cout = w.shape[1]
    # Full-size row tiles; use 2 blocks when possible so v7x's two TCs both work.
    tile_n = N // 2 if (N % 2 == 0 and (N // 2) % 8 == 0) else N
    return pl.pallas_call(
        _dense_kernel,
        out_shape=jax.ShapeDtypeStruct((N, Cout), jnp.float32),
        grid=(N // tile_n,),
        in_specs=[pl.BlockSpec((tile_n, Cin), lambda i: (i, 0)),
                  pl.BlockSpec((Cin, Cout), lambda i: (0, 0)),
                  pl.BlockSpec((1, Cout), lambda i: (0, 0))],
        out_specs=pl.BlockSpec((tile_n, Cout), lambda i: (i, 0)),
        compiler_params=pltpu.CompilerParams(
            dimension_semantics=("parallel",),
            vmem_limit_bytes=_VMEM_LIMIT),
    )(x2d, w, b)


# --------------------------------------------- per-mode complex mixing ------
# out[b, o, m] = sum_i x[b, i, m] * w[i, o, m]  (complex)  + bias[o, m]
# Modes m live in the lane dimension; contraction over i (length=width) runs on
# the VPU as broadcast-multiply + reduce over a major axis (cheap vreg adds).
def _spectral_kernel(xr_ref, xi_ref, wr_ref, wi_ref, br_ref, bi_ref,
                     or_ref, oi_ref):
    xr = xr_ref[...][:, :, None, :]          # (B, Ci, 1,  M)
    xi = xi_ref[...][:, :, None, :]
    wr = wr_ref[...][None, :, :, :]          # (1, Ci, TCo, M)
    wi = wi_ref[...][None, :, :, :]
    # 3-multiply complex product.
    rr = jnp.sum(xr * wr, axis=1)            # (B, TCo, M)
    ii = jnp.sum(xi * wi, axis=1)
    ss = jnp.sum((xr + xi) * (wr + wi), axis=1)
    or_ref[...] = (rr - ii + br_ref[...][None, :, :]).astype(or_ref.dtype)
    oi_ref[...] = (ss - rr - ii + bi_ref[...][None, :, :]).astype(oi_ref.dtype)


def spectral_mix(xr, xi, wr, wi, br, bi):
    """xr/xi: (B, C, M); wr/wi: (C, C, M); br/bi: (C, M) -> (B, C, M) re/im."""
    B, C, M = xr.shape
    Co = wr.shape[1]
    n_blk = 2 if Co % 16 == 0 else 1        # >=2 blocks -> both v7x TensorCores
    tco = Co // n_blk
    x_spec = pl.BlockSpec((B, C, M), lambda j: (0, 0, 0))      # resident input
    w_spec = pl.BlockSpec((C, tco, M), lambda j: (0, j, 0))
    b_spec = pl.BlockSpec((tco, M), lambda j: (j, 0))
    o_spec = pl.BlockSpec((B, tco, M), lambda j: (0, j, 0))
    out_sds = jax.ShapeDtypeStruct((B, Co, M), jnp.float32)
    return pl.pallas_call(
        _spectral_kernel,
        out_shape=(out_sds, out_sds),
        grid=(n_blk,),
        in_specs=[x_spec, x_spec, w_spec, w_spec, b_spec, b_spec],
        out_specs=(o_spec, o_spec),
        compiler_params=pltpu.CompilerParams(
            dimension_semantics=("parallel",),
            vmem_limit_bytes=_VMEM_LIMIT),
    )(xr, xi, wr, wi, br, bi)


# ------------------------------------------------ fused FNO layer update ----
# h_new = relu(x1) + Conv2d_1x1(h); channels-first (B, C, N_spatial).
def _fused_layer_kernel(x1_ref, h_ref, cw_ref, cb_ref, o_ref):
    x2 = jnp.dot(cw_ref[...], h_ref[0],
                 preferred_element_type=jnp.float32) + cb_ref[...]
    o_ref[0] = (jnp.maximum(x1_ref[0], 0.0) + x2).astype(o_ref.dtype)


def fused_layer(x1, h, cw, cb):
    B, C, N = h.shape
    row = pl.BlockSpec((1, C, N), lambda b: (b, 0, 0))
    return pl.pallas_call(
        _fused_layer_kernel,
        out_shape=jax.ShapeDtypeStruct((B, C, N), jnp.float32),
        grid=(B,),
        in_specs=[row, row,
                  pl.BlockSpec((C, C), lambda b: (0, 0)),
                  pl.BlockSpec((C, 1), lambda b: (0, 0))],
        out_specs=row,
        compiler_params=pltpu.CompilerParams(
            dimension_semantics=("parallel",),
            vmem_limit_bytes=_VMEM_LIMIT),
    )(x1, h, cw, cb)


# Last layer of each cell: additionally emits y = out_mapping(h_new) fused in.
def _fused_layer_out_kernel(x1_ref, h_ref, cw_ref, cb_ref, wo_ref, bo_ref,
                            o_ref, y_ref):
    x2 = jnp.dot(cw_ref[...], h_ref[0],
                 preferred_element_type=jnp.float32) + cb_ref[...]
    h_new = jnp.maximum(x1_ref[0], 0.0) + x2
    o_ref[0] = h_new.astype(o_ref.dtype)
    y_ref[0] = (jnp.dot(wo_ref[...], h_new,
                        preferred_element_type=jnp.float32)
                + bo_ref[...]).astype(y_ref.dtype)


def fused_layer_out(x1, h, cw, cb, wo, bo):
    B, C, N = h.shape
    Cout = wo.shape[0]
    row = pl.BlockSpec((1, C, N), lambda b: (b, 0, 0))
    yrow = pl.BlockSpec((1, Cout, N), lambda b: (b, 0, 0))
    return pl.pallas_call(
        _fused_layer_out_kernel,
        out_shape=(jax.ShapeDtypeStruct((B, C, N), jnp.float32),
                   jax.ShapeDtypeStruct((B, Cout, N), jnp.float32)),
        grid=(B,),
        in_specs=[row, row,
                  pl.BlockSpec((C, C), lambda b: (0, 0)),
                  pl.BlockSpec((C, 1), lambda b: (0, 0)),
                  pl.BlockSpec((Cout, C), lambda b: (0, 0)),
                  pl.BlockSpec((Cout, 1), lambda b: (0, 0))],
        out_specs=(row, yrow),
        compiler_params=pltpu.CompilerParams(
            dimension_semantics=("parallel",),
            vmem_limit_bytes=_VMEM_LIMIT),
    )(x1, h, cw, cb, wo, bo)


# ------------------------------------------------------- FourierConv2d ------
def fourier_conv_2d(h, X, Y, fw_r, fw_i, fb_r, fb_i):
    B, C, N = h.shape
    Yh = Y // 2 + 1
    # TODO(synk): no Pallas TPU FFT primitive — rfft2/irfft2 stay on XLA's FFT.
    h_ft = jnp.fft.rfft2(h.reshape(B, C, X, Y), axes=(-2, -1))   # (B, C, X, Yh)
    xr = h_ft.real.reshape(B, C, X * Yh)                          # no transposes
    xi = h_ft.imag.reshape(B, C, X * Yh)
    or_, oi_ = spectral_mix(xr, xi, fw_r, fw_i, fb_r, fb_i)
    out_ft = lax.complex(or_, oi_).reshape(B, C, X, Yh)
    x1 = jnp.fft.irfft2(out_ft, s=(X, Y), axes=(-2, -1))
    return x1.reshape(B, C, N).astype(jnp.float32)


# ------------------------------------------------------------ model ---------
def cell_step(h, layer_params, out_w, out_b, X, Y):
    """One cell() pass; returns (new state, out_mapping(new state))."""
    y = None
    last = len(layer_params) - 1
    for li, lp in enumerate(layer_params):
        x1 = fourier_conv_2d(h, X, Y, lp["fw_r"], lp["fw_i"],
                             lp["fb_r"], lp["fb_i"])
        if li == last:
            h, y = fused_layer_out(x1, h, lp["cw"], lp["cb"], out_w, out_b)
        else:
            h = fused_layer(x1, h, lp["cw"], lp["cb"])
    return h, y


@functools.partial(jax.jit, static_argnums=(2,))
def fno_rnn_2d_forward(x, params, num_time_steps):
    B, X, Y, Cin = x.shape
    W = params["in_w"].shape[1]
    Cout = params["out_w"].shape[0]
    N = X * Y
    # in_mapping (Linear over channels), then ONE transpose to channels-first.
    h = dense(x.reshape(-1, Cin), params["in_w"],
              params["in_b"]).reshape(B, X, Y, W)
    h = jnp.transpose(h, (0, 3, 1, 2)).reshape(B, W, N)   # outside the hot loop
    ys = []
    for _ in range(num_time_steps):
        h, y = cell_step(h, params["layers"], params["out_w"],
                         params["out_b"], X, Y)
        ys.append(y)                                       # (B, Cout, N) lane-dense
    out = jnp.stack(ys, axis=1).reshape(B, num_time_steps, Cout, X, Y)
    return jnp.transpose(out, (0, 1, 3, 4, 2))             # (B, T, X, Y, Cout)


# ------------------------------------------------------------ init ----------
def init_params(key, in_channels, out_channels, X, Y, width, depth):
    Yh = Y // 2 + 1
    M = X * Yh
    keys = iter(jax.random.split(key, 4 + 6 * depth))

    def u(k, shape, bound):
        return jax.random.uniform(k, shape, jnp.float32, -bound, bound)

    b_in = 1.0 / (in_channels ** 0.5)
    b_w = 1.0 / (width ** 0.5)
    params = {
        "in_w": u(next(keys), (in_channels, width), b_in),     # x @ W_in
        "in_b": u(next(keys), (1, width), b_in),
        "out_w": u(next(keys), (out_channels, width), b_w),    # Linear weight (Cout, W)
        "out_b": u(next(keys), (out_channels, 1), b_w),
        "layers": [],
    }
    for _ in range(depth):
        # FourierConv2d: complex weights (in, out, X, Yh) / (in*out), bias (out, X, Yh) / out
        fw_r = jax.random.uniform(next(keys), (width, width, X, Yh),
                                  jnp.float32) / (width * width)
        fw_i = jax.random.uniform(next(keys), (width, width, X, Yh),
                                  jnp.float32) / (width * width)
        fb_r = jax.random.uniform(next(keys), (width, X, Yh), jnp.float32) / width
        fb_i = jax.random.uniform(next(keys), (width, X, Yh), jnp.float32) / width
        params["layers"].append({
            "fw_r": fw_r.reshape(width, width, M),   # (in, out, M): modes in lanes
            "fw_i": fw_i.reshape(width, width, M),
            "fb_r": fb_r.reshape(width, M),          # (out, M)
            "fb_i": fb_i.reshape(width, M),
            "cw": u(next(keys), (width, width), b_w),  # Conv2d(1x1) weight (out, in)
            "cb": u(next(keys), (width, 1), b_w),
        })
    return params


if __name__ == "__main__":
    B, X, Y = 2, 16, 16
    in_channels, out_channels, width, depth = 4, 3, 16, 2
    num_time_steps = 4

    key = jax.random.PRNGKey(0)
    kx, kp = jax.random.split(key)
    x = jax.random.normal(kx, (B, X, Y, in_channels), jnp.float32)
    params = init_params(kp, in_channels, out_channels, X, Y, width, depth)

    out = fno_rnn_2d_forward(x, params, num_time_steps)
    out = jax.block_until_ready(out)
    assert out.shape == (B, num_time_steps, X, Y, out_channels), out.shape
    assert out.dtype == jnp.float32
    print("KERNEL_OK")
</pallas_src>

<mosaic_0001>
module attributes {stable_mosaic.version = 11 : i64} {
  func.func @_dense_kernel(%arg0: i32, %arg1: memref<256x4xf32, #tpu.memory_space<vmem>>, %arg2: memref<4x16xf32, #tpu.memory_space<vmem>>, %arg3: memref<1x16xf32, #tpu.memory_space<vmem>>, %arg4: memref<256x16xf32, #tpu.memory_space<vmem>>) attributes {dimension_semantics = [#tpu.dimension_semantics<parallel>], iteration_bounds = array<i64: 2>, scalar_prefetch = 0 : i64, scratch_operands = 0 : i64, tpu.core_type = #tpu.core_type<tc>, window_params = [{transform_indices = @transform_0, window_bounds = array<i64: 256, 4>}, {pipeline_mode = #tpu.pipeline_mode<synchronous>, transform_indices = @transform_1, window_bounds = array<i64: 4, 16>}, {pipeline_mode = #tpu.pipeline_mode<synchronous>, transform_indices = @transform_2, window_bounds = array<i64: 1, 16>}, {transform_indices = @transform_3, window_bounds = array<i64: 256, 16>}]} {
    %c0 = arith.constant 0 : index
    %c0_0 = arith.constant 0 : index
    %0 = vector.load %arg1[%c0, %c0_0] : memref<256x4xf32, #tpu.memory_space<vmem>>, vector<256x4xf32>
    %c0_1 = arith.constant 0 : index
    %c0_2 = arith.constant 0 : index
    %1 = vector.load %arg2[%c0_1, %c0_2] : memref<4x16xf32, #tpu.memory_space<vmem>>, vector<4x16xf32>
    %cst = arith.constant dense<0.000000e+00> : vector<256x16xf32>
    %2 = tpu.matmul %0, %1, %cst {dimension_numbers = #tpu.dot_dimension_numbers<[1], [0], [0], [1], [0, 0, 1, 1], [], []>} : vector<256x4xf32>, vector<4x16xf32>, vector<256x16xf32> -> vector<256x16xf32>
    %c0_3 = arith.constant 0 : index
    %c0_4 = arith.constant 0 : index
    %3 = vector.load %arg3[%c0_3, %c0_4] : memref<1x16xf32, #tpu.memory_space<vmem>>, vector<1x16xf32>
    %4 = vector.broadcast %3 : vector<1x16xf32> to vector<256x16xf32>
    %5 = arith.addf %2, %4 : vector<256x16xf32>
    %c0_5 = arith.constant 0 : index
    %c0_6 = arith.constant 0 : index
    %6 = vector.load %arg4[%c0_5, %c0_6] : memref<256x16xf32, #tpu.memory_space<vmem>>, vector<256x16xf32>
    tpu.vector_store %arg4[%c0_5, %c0_6], %5 {strides = array<i32>} : memref<256x16xf32, #tpu.memory_space<vmem>>, vector<256x16xf32>,
    return
  }
  func.func @transform_0(%arg0: i32) -> (i32, i32) {
    %c0_i32 = arith.constant 0 : i32
    %c0_i32_0 = arith.constant 0 : i32
    return %arg0, %c0_i32 : i32, i32
  }
  func.func @transform_1(%arg0: i32) -> (i32, i32) {
    %c0_i32 = arith.constant 0 : i32
    %c0_i32_0 = arith.constant 0 : i32
    %c0_i32_1 = arith.constant 0 : i32
    return %c0_i32, %c0_i32_0 : i32, i32
  }
  func.func @transform_2(%arg0: i32) -> (i32, i32) {
    %c0_i32 = arith.constant 0 : i32
    %c0_i32_0 = arith.constant 0 : i32
    %c0_i32_1 = arith.constant 0 : i32
    return %c0_i32, %c0_i32_0 : i32, i32
  }
  func.func @transform_3(%arg0: i32) -> (i32, i32) {
    %c0_i32 = arith.constant 0 : i32
    %c0_i32_0 = arith.constant 0 : i32
    return %arg0, %c0_i32 : i32, i32
  }
}

module attributes {stable_mosaic.version = 11 : i64} {
  func.func @_spectral_kernel(%arg0: i32, %arg1: memref<2x16x144xf32, #tpu.memory_space<vmem>>, %arg2: memref<2x16x144xf32, #tpu.memory_space<vmem>>, %arg3: memref<16x8x144xf32, #tpu.memory_space<vmem>>, %arg4: memref<16x8x144xf32, #tpu.memory_space<vmem>>, %arg5: memref<8x144xf32, #tpu.memory_space<vmem>>, %arg6: memref<8x144xf32, #tpu.memory_space<vmem>>, %arg7: memref<2x8x144xf32, #tpu.memory_space<vmem>>, %arg8: memref<2x8x144xf32, #tpu.memory_space<vmem>>) attributes {dimension_semantics = [#tpu.dimension_semantics<parallel>], iteration_bounds = array<i64: 2>, scalar_prefetch = 0 : i64, scratch_operands = 0 : i64, tpu.core_type = #tpu.core_type<tc>, window_params = [{pipeline_mode = #tpu.pipeline_mode<synchronous>, transform_indices = @transform_0, window_bounds = array<i64: 2, 16, 144>}, {pipeline_mode = #tpu.pipeline_mode<synchronous>, transform_indices = @transform_1, window_bounds = array<i64: 2, 16, 144>}, {transform_indices = @transform_2, window_bounds = array<i64: 16, 8, 144>}, {transform_indices = @transform_3, window_bounds = array<i64: 16, 8, 144>}, {transform_indices = @transform_4, window_bounds = array<i64: 8, 144>}, {transform_indices = @transform_5, window_bounds = array<i64: 8, 144>}, {transform_indices = @transform_6, window_bounds = array<i64: 2, 8, 144>}, {transform_indices = @transform_7, window_bounds = array<i64: 2, 8, 144>}]} {
    %c0 = arith.constant 0 : index
    %c0_0 = arith.constant 0 : index
    %c0_1 = arith.constant 0 : index
    %0 = vector.load %arg1[%c0, %c0_0, %c0_1] : memref<2x16x144xf32, #tpu.memory_space<vmem>>, vector<2x16x144xf32>
    %1 = vector.shape_cast %0 : vector<2x16x144xf32> to vector<2x16x1x144xf32>
    %c0_2 = arith.constant 0 : index
    %c0_3 = arith.constant 0 : index
    %c0_4 = arith.constant 0 : index
    %2 = vector.load %arg2[%c0_2, %c0_3, %c0_4] : memref<2x16x144xf32, #tpu.memory_space<vmem>>, vector<2x16x144xf32>
    %3 = vector.shape_cast %2 : vector<2x16x144xf32> to vector<2x16x1x144xf32>
    %c0_5 = arith.constant 0 : index
    %c0_6 = arith.constant 0 : index
    %c0_7 = arith.constant 0 : index
    %4 = vector.load %arg3[%c0_5, %c0_6, %c0_7] : memref<16x8x144xf32, #tpu.memory_space<vmem>>, vector<16x8x144xf32>
    %5 = vector.shape_cast %4 : vector<16x8x144xf32> to vector<1x16x8x144xf32>
    %c0_8 = arith.constant 0 : index
    %c0_9 = arith.constant 0 : index
    %c0_10 = arith.constant 0 : index
    %6 = vector.load %arg4[%c0_8, %c0_9, %c0_10] : memref<16x8x144xf32, #tpu.memory_space<vmem>>, vector<16x8x144xf32>
    %7 = vector.shape_cast %6 : vector<16x8x144xf32> to vector<1x16x8x144xf32>
    %8 = vector.broadcast %1 : vector<2x16x1x144xf32> to vector<2x16x8x144xf32>
    %9 = vector.broadcast %5 : vector<1x16x8x144xf32> to vector<2x16x8x144xf32>
    %10 = arith.mulf %8, %9 : vector<2x16x8x144xf32>
    %cst = arith.constant dense<0.000000e+00> : vector<2x8x144xf32>
    %11 = vector.multi_reduction <add>, %10, %cst [1] : vector<2x16x8x144xf32> to vector<2x8x144xf32>
    %12 = vector.broadcast %3 : vector<2x16x1x144xf32> to vector<2x16x8x144xf32>
    %13 = vector.broadcast %7 : vector<1x16x8x144xf32> to vector<2x16x8x144xf32>
    %14 = arith.mulf %12, %13 : vector<2x16x8x144xf32>
    %cst_11 = arith.constant dense<0.000000e+00> : vector<2x8x144xf32>
    %15 = vector.multi_reduction <add>, %14, %cst_11 [1] : vector<2x16x8x144xf32> to vector<2x8x144xf32>
    %16 = arith.addf %1, %3 : vector<2x16x1x144xf32>
    %17 = arith.addf %5, %7 : vector<1x16x8x144xf32>
    %18 = vector.broadcast %16 : vector<2x16x1x144xf32> to vector<2x16x8x144xf32>
    %19 = vector.broadcast %17 : vector<1x16x8x144xf32> to vector<2x16x8x144xf32>
    %20 = arith.mulf %18, %19 : vector<2x16x8x144xf32>
    %cst_12 = arith.constant dense<0.000000e+00> : vector<2x8x144xf32>
    %21 = vector.multi_reduction <add>, %20, %cst_12 [1] : vector<2x16x8x144xf32> to vector<2x8x144xf32>
    %22 = arith.subf %11, %15 : vector<2x8x144xf32>
    %c0_13 = arith.constant 0 : index
    %c0_14 = arith.constant 0 : index
    %23 = vector.load %arg5[%c0_13, %c0_14] : memref<8x144xf32, #tpu.memory_space<vmem>>, vector<8x144xf32>
    %24 = vector.shape_cast %23 : vector<8x144xf32> to vector<1x8x144xf32>
    %25 = vector.broadcast %24 : vector<1x8x144xf32> to vector<2x8x144xf32>
    %26 = arith.addf %22, %25 : vector<2x8x144xf32>
    %c0_15 = arith.constant 0 : index
    %c0_16 = arith.constant 0 : index
    %c0_17 = arith.constant 0 : index
    %27 = vector.load %arg7[%c0_15, %c0_16, %c0_17] : memref<2x8x144xf32, #tpu.memory_space<vmem>>, vector<2x8x144xf32>
    tpu.vector_store %arg7[%c0_15, %c0_16, %c0_17], %26 {strides = array<i32>} : memref<2x8x144xf32, #tpu.memory_space<vmem>>, vector<2x8x144xf32>,
    %28 = arith.subf %21, %11 : vector<2x8x144xf32>
    %29 = arith.subf %28, %15 : vector<2x8x144xf32>
    %c0_18 = arith.constant 0 : index
    %c0_19 = arith.constant 0 : index
    %30 = vector.load %arg6[%c0_18, %c0_19] : memref<8x144xf32, #tpu.memory_space<vmem>>, vector<8x144xf32>
    %31 = vector.shape_cast %30 : vector<8x144xf32> to vector<1x8x144xf32>
    %32 = vector.broadcast %31 : vector<1x8x144xf32> to vector<2x8x144xf32>
    %33 = arith.addf %29, %32 : vector<2x8x144xf32>
    %c0_20 = arith.constant 0 : index
    %c0_21 = arith.constant 0 : index
    %c0_22 = arith.constant 0 : index
    %34 = vector.load %arg8[%c0_20, %c0_21, %c0_22] : memref<2x8x144xf32, #tpu.memory_space<vmem>>, vector<2x8x144xf32>
    tpu.vector_store %arg8[%c0_20, %c0_21, %c0_22], %33 {strides = array<i32>} : memref<2x8x144xf32, #tpu.memory_space<vmem>>, vector<2x8x144xf32>,
    return
  }
  func.func @transform_0(%arg0: i32) -> (i32, i32, i32) {
    %c0_i32 = arith.constant 0 : i32
    %c0_i32_0 = arith.constant 0 : i32
    %c0_i32_1 = arith.constant 0 : i32
    %c0_i32_2 = arith.constant 0 : i32
    return %c0_i32, %c0_i32_0, %c0_i32_1 : i32, i32, i32
  }
  func.func @transform_1(%arg0: i32) -> (i32, i32, i32) {
    %c0_i32 = arith.constant 0 : i32
    %c0_i32_0 = arith.constant 0 : i32
    %c0_i32_1 = arith.constant 0 : i32
    %c0_i32_2 = arith.constant 0 : i32
    return %c0_i32, %c0_i32_0, %c0_i32_1 : i32, i32, i32
  }
  func.func @transform_2(%arg0: i32) -> (i32, i32, i32) {
    %c0_i32 = arith.constant 0 : i32
    %c0_i32_0 = arith.constant 0 : i32
    %c0_i32_1 = arith.constant 0 : i32
    return %c0_i32, %arg0, %c0_i32_0 : i32, i32, i32
  }
  func.func @transform_3(%arg0: i32) -> (i32, i32, i32) {
    %c0_i32 = arith.constant 0 : i32
    %c0_i32_0 = arith.constant 0 : i32
    %c0_i32_1 = arith.constant 0 : i32
    return %c0_i32, %arg0, %c0_i32_0 : i32, i32, i32
  }
  func.func @transform_4(%arg0: i32) -> (i32, i32) {
    %c0_i32 = arith.constant 0 : i32
    %c0_i32_0 = arith.constant 0 : i32
    return %arg0, %c0_i32 : i32, i32
  }
  func.func @transform_5(%arg0: i32) -> (i32, i32) {
    %c0_i32 = arith.constant 0 : i32
    %c0_i32_0 = arith.constant 0 : i32
    return %arg0, %c0_i32 : i32, i32
  }
  func.func @transform_6(%arg0: i32) -> (i32, i32, i32) {
    %c0_i32 = arith.constant 0 : i32
    %c0_i32_0 = arith.constant 0 : i32
    %c0_i32_1 = arith.constant 0 : i32
    return %c0_i32, %arg0, %c0_i32_0 : i32, i32, i32
  }
  func.func @transform_7(%arg0: i32) -> (i32, i32, i32) {
    %c0_i32 = arith.constant 0 : i32
    %c0_i32_0 = arith.constant 0 : i32
    %c0_i32_1 = arith.constant 0 : i32
    return %c0_i32, %arg0, %c0_i32_0 : i32, i32, i32
  }
}

module attributes {stable_mosaic.version = 11 : i64} {
  func.func @_fused_layer_kernel(%arg0: i32, %arg1: memref<1x16x256xf32, #tpu.memory_space<vmem>>, %arg2: memref<1x16x256xf32, #tpu.memory_space<vmem>>, %arg3: memref<16x16xf32, #tpu.memory_space<vmem>>, %arg4: memref<16x1xf32, #tpu.memory_space<vmem>>, %arg5: memref<1x16x256xf32, #tpu.memory_space<vmem>>) attributes {dimension_semantics = [#tpu.dimension_semantics<parallel>], iteration_bounds = array<i64: 2>, scalar_prefetch = 0 : i64, scratch_operands = 0 : i64, tpu.core_type = #tpu.core_type<tc>, window_params = [{transform_indices = @transform_0, window_bounds = array<i64: 1, 16, 256>}, {transform_indices = @transform_1, window_bounds = array<i64: 1, 16, 256>}, {pipeline_mode = #tpu.pipeline_mode<synchronous>, transform_indices = @transform_2, window_bounds = array<i64: 16, 16>}, {pipeline_mode = #tpu.pipeline_mode<synchronous>, transform_indices = @transform_3, window_bounds = array<i64: 16, 1>}, {transform_indices = @transform_4, window_bounds = array<i64: 1, 16, 256>}]} {
    %c0 = arith.constant 0 : index
    %c0_0 = arith.constant 0 : index
    %0 = vector.load %arg3[%c0, %c0_0] : memref<16x16xf32, #tpu.memory_space<vmem>>, vector<16x16xf32>
    %c0_1 = arith.constant 0 : index
    %c0_2 = arith.constant 0 : index
    %c0_3 = arith.constant 0 : index
    %1 = vector.load %arg2[%c0_1, %c0_2, %c0_3] : memref<1x16x256xf32, #tpu.memory_space<vmem>>, vector<1x16x256xf32>
    %2 = vector.shape_cast %1 : vector<1x16x256xf32> to vector<16x256xf32>
    %cst = arith.constant dense<0.000000e+00> : vector<16x256xf32>
    %3 = tpu.matmul %0, %2, %cst {dimension_numbers = #tpu.dot_dimension_numbers<[1], [0], [0], [1], [0, 0, 1, 1], [], []>} : vector<16x16xf32>, vector<16x256xf32>, vector<16x256xf32> -> vector<16x256xf32>
    %c0_4 = arith.constant 0 : index
    %c0_5 = arith.constant 0 : index
    %4 = vector.load %arg4[%c0_4, %c0_5] : memref<16x1xf32, #tpu.memory_space<vmem>>, vector<16x1xf32>
    %5 = vector.broadcast %4 : vector<16x1xf32> to vector<16x256xf32>
    %6 = arith.addf %3, %5 : vector<16x256xf32>
    %c0_6 = arith.constant 0 : index
    %c0_7 = arith.constant 0 : index
    %c0_8 = arith.constant 0 : index
    %7 = vector.load %arg1[%c0_6, %c0_7, %c0_8] : memref<1x16x256xf32, #tpu.memory_space<vmem>>, vector<1x16x256xf32>
    %8 = vector.shape_cast %7 : vector<1x16x256xf32> to vector<16x256xf32>
    %cst_9 = arith.constant 0.000000e+00 : f32
    %9 = vector.broadcast %cst_9 : f32 to vector<16x256xf32>
    %10 = arith.maximumf %8, %9 : vector<16x256xf32>
    %11 = arith.addf %10, %6 : vector<16x256xf32>
    %c0_10 = arith.constant 0 : index
    %c0_11 = arith.constant 0 : index
    %c0_12 = arith.constant 0 : index
    %12 = vector.load %arg5[%c0_10, %c0_11, %c0_12] : memref<1x16x256xf32, #tpu.memory_space<vmem>>, vector<1x16x256xf32>
    %13 = vector.shape_cast %12 : vector<1x16x256xf32> to vector<16x256xf32>
    %14 = vector.shape_cast %11 : vector<16x256xf32> to vector<1x16x256xf32>
    tpu.vector_store %arg5[%c0_10, %c0_11, %c0_12], %14 {strides = array<i32>} : memref<1x16x256xf32, #tpu.memory_space<vmem>>, vector<1x16x256xf32>,
    return
  }
  func.func @transform_0(%arg0: i32) -> (i32, i32, i32) {
    %c0_i32 = arith.constant 0 : i32
    %c0_i32_0 = arith.constant 0 : i32
    %c0_i32_1 = arith.constant 0 : i32
    return %arg0, %c0_i32, %c0_i32_0 : i32, i32, i32
  }
  func.func @transform_1(%arg0: i32) -> (i32, i32, i32) {
    %c0_i32 = arith.constant 0 : i32
    %c0_i32_0 = arith.constant 0 : i32
    %c0_i32_1 = arith.constant 0 : i32
    return %arg0, %c0_i32, %c0_i32_0 : i32, i32, i32
  }
  func.func @transform_2(%arg0: i32) -> (i32, i32) {
    %c0_i32 = arith.constant 0 : i32
    %c0_i32_0 = arith.constant 0 : i32
    %c0_i32_1 = arith.constant 0 : i32
    return %c0_i32, %c0_i32_0 : i32, i32
  }
  func.func @transform_3(%arg0: i32) -> (i32, i32) {
    %c0_i32 = arith.constant 0 : i32
    %c0_i32_0 = arith.constant 0 : i32
    %c0_i32_1 = arith.constant 0 : i32
    return %c0_i32, %c0_i32_0 : i32, i32
  }
  func.func @transform_4(%arg0: i32) -> (i32, i32, i32) {
    %c0_i32 = arith.constant 0 : i32
    %c0_i32_0 = arith.constant 0 : i32
    %c0_i32_1 = arith.constant 0 : i32
    return %arg0, %c0_i32, %c0_i32_0 : i32, i32, i32
  }
}

module attributes {stable_mosaic.version = 11 : i64} {
  func.func @_fused_layer_out_kernel(%arg0: i32, %arg1: memref<1x16x256xf32, #tpu.memory_space<vmem>>, %arg2: memref<1x16x256xf32, #tpu.memory_space<vmem>>, %arg3: memref<16x16xf32, #tpu.memory_space<vmem>>, %arg4: memref<16x1xf32, #tpu.memory_space<vmem>>, %arg5: memref<3x16xf32, #tpu.memory_space<vmem>>, %arg6: memref<3x1xf32, #tpu.memory_space<vmem>>, %arg7: memref<1x16x256xf32, #tpu.memory_space<vmem>>, %arg8: memref<1x3x256xf32, #tpu.memory_space<vmem>>) attributes {dimension_semantics = [#tpu.dimension_semantics<parallel>], iteration_bounds = array<i64: 2>, scalar_prefetch = 0 : i64, scratch_operands = 0 : i64, tpu.core_type = #tpu.core_type<tc>, window_params = [{transform_indices = @transform_0, window_bounds = array<i64: 1, 16, 256>}, {transform_indices = @transform_1, window_bounds = array<i64: 1, 16, 256>}, {pipeline_mode = #tpu.pipeline_mode<synchronous>, transform_indices = @transform_2, window_bounds = array<i64: 16, 16>}, {pipeline_mode = #tpu.pipeline_mode<synchronous>, transform_indices = @transform_3, window_bounds = array<i64: 16, 1>}, {pipeline_mode = #tpu.pipeline_mode<synchronous>, transform_indices = @transform_4, window_bounds = array<i64: 3, 16>}, {pipeline_mode = #tpu.pipeline_mode<synchronous>, transform_indices = @transform_5, window_bounds = array<i64: 3, 1>}, {transform_indices = @transform_6, window_bounds = array<i64: 1, 16, 256>}, {transform_indices = @transform_7, window_bounds = array<i64: 1, 3, 256>}]} {
    %c0 = arith.constant 0 : index
    %c0_0 = arith.constant 0 : index
    %0 = vector.load %arg3[%c0, %c0_0] : memref<16x16xf32, #tpu.memory_space<vmem>>, vector<16x16xf32>
    %c0_1 = arith.constant 0 : index
    %c0_2 = arith.constant 0 : index
    %c0_3 = arith.constant 0 : index
    %1 = vector.load %arg2[%c0_1, %c0_2, %c0_3] : memref<1x16x256xf32, #tpu.memory_space<vmem>>, vector<1x16x256xf32>
    %2 = vector.shape_cast %1 : vector<1x16x256xf32> to vector<16x256xf32>
    %cst = arith.constant dense<0.000000e+00> : vector<16x256xf32>
    %3 = tpu.matmul %0, %2, %cst {dimension_numbers = #tpu.dot_dimension_numbers<[1], [0], [0], [1], [0, 0, 1, 1], [], []>} : vector<16x16xf32>, vector<16x256xf32>, vector<16x256xf32> -> vector<16x256xf32>
    %c0_4 = arith.constant 0 : index
    %c0_5 = arith.constant 0 : index
    %4 = vector.load %arg4[%c0_4, %c0_5] : memref<16x1xf32, #tpu.memory_space<vmem>>, vector<16x1xf32>
    %5 = vector.broadcast %4 : vector<16x1xf32> to vector<16x256xf32>
    %6 = arith.addf %3, %5 : vector<16x256xf32>
    %c0_6 = arith.constant 0 : index
    %c0_7 = arith.constant 0 : index
    %c0_8 = arith.constant 0 : index
    %7 = vector.load %arg1[%c0_6, %c0_7, %c0_8] : memref<1x16x256xf32, #tpu.memory_space<vmem>>, vector<1x16x256xf32>
    %8 = vector.shape_cast %7 : vector<1x16x256xf32> to vector<16x256xf32>
    %cst_9 = arith.constant 0.000000e+00 : f32
    %9 = vector.broadcast %cst_9 : f32 to vector<16x256xf32>
    %10 = arith.maximumf %8, %9 : vector<16x256xf32>
    %11 = arith.addf %10, %6 : vector<16x256xf32>
    %c0_10 = arith.constant 0 : index
    %c0_11 = arith.constant 0 : index
    %c0_12 = arith.constant 0 : index
    %12 = vector.load %arg7[%c0_10, %c0_11, %c0_12] : memref<1x16x256xf32, #tpu.memory_space<vmem>>, vector<1x16x256xf32>
    %13 = vector.shape_cast %12 : vector<1x16x256xf32> to vector<16x256xf32>
    %14 = vector.shape_cast %11 : vector<16x256xf32> to vector<1x16x256xf32>
    tpu.vector_store %arg7[%c0_10, %c0_11, %c0_12], %14 {strides = array<i32>} : memref<1x16x256xf32, #tpu.memory_space<vmem>>, vector<1x16x256xf32>,
    %c0_13 = arith.constant 0 : index
    %c0_14 = arith.constant 0 : index
    %15 = vector.load %arg5[%c0_13, %c0_14] : memref<3x16xf32, #tpu.memory_space<vmem>>, vector<3x16xf32>
    %cst_15 = arith.constant dense<0.000000e+00> : vector<3x256xf32>
    %16 = tpu.matmul %15, %11, %cst_15 {dimension_numbers = #tpu.dot_dimension_numbers<[1], [0], [0], [1], [0, 0, 1, 1], [], []>} : vector<3x16xf32>, vector<16x256xf32>, vector<3x256xf32> -> vector<3x256xf32>
    %c0_16 = arith.constant 0 : index
    %c0_17 = arith.constant 0 : index
    %17 = vector.load %arg6[%c0_16, %c0_17] : memref<3x1xf32, #tpu.memory_space<vmem>>, vector<3x1xf32>
    %18 = vector.broadcast %17 : vector<3x1xf32> to vector<3x256xf32>
    %19 = arith.addf %16, %18 : vector<3x256xf32>
    %c0_18 = arith.constant 0 : index
    %c0_19 = arith.constant 0 : index
    %c0_20 = arith.constant 0 : index
    %20 = vector.load %arg8[%c0_18, %c0_19, %c0_20] : memref<1x3x256xf32, #tpu.memory_space<vmem>>, vector<1x3x256xf32>
    %21 = vector.shape_cast %20 : vector<1x3x256xf32> to vector<3x256xf32>
    %22 = vector.shape_cast %19 : vector<3x256xf32> to vector<1x3x256xf32>
    tpu.vector_store %arg8[%c0_18, %c0_19, %c0_20], %22 {strides = array<i32>} : memref<1x3x256xf32, #tpu.memory_space<vmem>>, vector<1x3x256xf32>,
    return
  }
  func.func @transform_0(%arg0: i32) -> (i32, i32, i32) {
    %c0_i32 = arith.constant 0 : i32
    %c0_i32_0 = arith.constant 0 : i32
    %c0_i32_1 = arith.constant 0 : i32
    return %arg0, %c0_i32, %c0_i32_0 : i32, i32, i32
  }
  func.func @transform_1(%arg0: i32) -> (i32, i32, i32) {
    %c0_i32 = arith.constant 0 : i32
    %c0_i32_0 = arith.constant 0 : i32
    %c0_i32_1 = arith.constant 0 : i32
    return %arg0, %c0_i32, %c0_i32_0 : i32, i32, i32
  }
  func.func @transform_2(%arg0: i32) -> (i32, i32) {
    %c0_i32 = arith.constant 0 : i32
    %c0_i32_0 = arith.constant 0 : i32
    %c0_i32_1 = arith.constant 0 : i32
    return %c0_i32, %c0_i32_0 : i32, i32
  }
  func.func @transform_3(%arg0: i32) -> (i32, i32) {
    %c0_i32 = arith.constant 0 : i32
    %c0_i32_0 = arith.constant 0 : i32
    %c0_i32_1 = arith.constant 0 : i32
    return %c0_i32, %c0_i32_0 : i32, i32
  }
  func.func @transform_4(%arg0: i32) -> (i32, i32) {
    %c0_i32 = arith.constant 0 : i32
    %c0_i32_0 = arith.constant 0 : i32
    %c0_i32_1 = arith.constant 0 : i32
    return %c0_i32, %c0_i32_0 : i32, i32
  }
  func.func @transform_5(%arg0: i32) -> (i32, i32) {
    %c0_i32 = arith.constant 0 : i32
    %c0_i32_0 = arith.constant 0 : i32
    %c0_i32_1 = arith.constant 0 : i32
    return %c0_i32, %c0_i32_0 : i32, i32
  }
  func.func @transform_6(%arg0: i32) -> (i32, i32, i32) {
    %c0_i32 = arith.constant 0 : i32
    %c0_i32_0 = arith.constant 0 : i32
    %c0_i32_1 = arith.constant 0 : i32
    return %arg0, %c0_i32, %c0_i32_0 : i32, i32, i32
  }
  func.func @transform_7(%arg0: i32) -> (i32, i32, i32) {
    %c0_i32 = arith.constant 0 : i32
    %c0_i32_0 = arith.constant 0 : i32
    %c0_i32_1 = arith.constant 0 : i32
    return %arg0, %c0_i32, %c0_i32_0 : i32, i32, i32
  }
}

module attributes {stable_mosaic.version = 11 : i64} {
  func.func @_fused_layer_out_kernel(%arg0: i32, %arg1: memref<1x16x256xf32, #tpu.memory_space<vmem>>, %arg2: memref<1x16x256xf32, #tpu.memory_space<vmem>>, %arg3: memref<16x16xf32, #tpu.memory_space<vmem>>, %arg4: memref<16x1xf32, #tpu.memory_space<vmem>>, %arg5: memref<3x16xf32, #tpu.memory_space<vmem>>, %arg6: memref<3x1xf32, #tpu.memory_space<vmem>>, %arg7: memref<1x16x256xf32, #tpu.memory_space<vmem>>, %arg8: memref<1x3x256xf32, #tpu.memory_space<vmem>>) attributes {dimension_semantics = [#tpu.dimension_semantics<parallel>], iteration_bounds = array<i64: 2>, scalar_prefetch = 0 : i64, scratch_operands = 0 : i64, tpu.core_type = #tpu.core_type<tc>, window_params = [{transform_indices = @transform_0, window_bounds = array<i64: 1, 16, 256>}, {transform_indices = @transform_1, window_bounds = array<i64: 1, 16, 256>}, {pipeline_mode = #tpu.pipeline_mode<synchronous>, transform_indices = @transform_2, window_bounds = array<i64: 16, 16>}, {pipeline_mode = #tpu.pipeline_mode<synchronous>, transform_indices = @transform_3, window_bounds = array<i64: 16, 1>}, {pipeline_mode = #tpu.pipeline_mode<synchronous>, transform_indices = @transform_4, window_bounds = array<i64: 3, 16>}, {pipeline_mode = #tpu.pipeline_mode<synchronous>, transform_indices = @transform_5, window_bounds = array<i64: 3, 1>}, {transform_indices = @transform_6, window_bounds = array<i64: 1, 16, 256>}, {transform_indices = @transform_7, window_bounds = array<i64: 1, 3, 256>}]} {
    %c0 = arith.constant 0 : index
    %c0_0 = arith.constant 0 : index
    %0 = vector.load %arg3[%c0, %c0_0] : memref<16x16xf32, #tpu.memory_space<vmem>>, vector<16x16xf32>
    %c0_1 = arith.constant 0 : index
    %c0_2 = arith.constant 0 : index
    %c0_3 = arith.constant 0 : index
    %1 = vector.load %arg2[%c0_1, %c0_2, %c0_3] : memref<1x16x256xf32, #tpu.memory_space<vmem>>, vector<1x16x256xf32>
    %2 = vector.shape_cast %1 : vector<1x16x256xf32> to vector<16x256xf32>
    %cst = arith.constant dense<0.000000e+00> : vector<16x256xf32>
    %3 = tpu.matmul %0, %2, %cst {dimension_numbers = #tpu.dot_dimension_numbers<[1], [0], [0], [1], [0, 0, 1, 1], [], []>} : vector<16x16xf32>, vector<16x256xf32>, vector<16x256xf32> -> vector<16x256xf32>
    %c0_4 = arith.constant 0 : index
    %c0_5 = arith.constant 0 : index
    %4 = vector.load %arg4[%c0_4, %c0_5] : memref<16x1xf32, #tpu.memory_space<vmem>>, vector<16x1xf32>
    %5 = vector.broadcast %4 : vector<16x1xf32> to vector<16x256xf32>
    %6 = arith.addf %3, %5 : vector<16x256xf32>
    %c0_6 = arith.constant 0 : index
    %c0_7 = arith.constant 0 : index
    %c0_8 = arith.constant 0 : index
    %7 = vector.load %arg1[%c0_6, %c0_7, %c0_8] : memref<1x16x256xf32, #tpu.memory_space<vmem>>, vector<1x16x256xf32>
    %8 = vector.shape_cast %7 : vector<1x16x256xf32> to vector<16x256xf32>
    %cst_9 = arith.constant 0.000000e+00 : f32
    %9 = vector.broadcast %cst_9 : f32 to vector<16x256xf32>
    %10 = arith.maximumf %8, %9 : vector<16x256xf32>
    %11 = arith.addf %10, %6 : vector<16x256xf32>
    %c0_10 = arith.constant 0 : index
    %c0_11 = arith.constant 0 : index
    %c0_12 = arith.constant 0 : index
    %12 = vector.load %arg7[%c0_10, %c0_11, %c0_12] : memref<1x16x256xf32, #tpu.memory_space<vmem>>, vector<1x16x256xf32>
    %13 = vector.shape_cast %12 : vector<1x16x256xf32> to vector<16x256xf32>
    %14 = vector.shape_cast %11 : vector<16x256xf32> to vector<1x16x256xf32>
    tpu.vector_store %arg7[%c0_10, %c0_11, %c0_12], %14 {strides = array<i32>} : memref<1x16x256xf32, #tpu.memory_space<vmem>>, vector<1x16x256xf32>,
    %c0_13 = arith.constant 0 : index
    %c0_14 = arith.constant 0 : index
    %15 = vector.load %arg5[%c0_13, %c0_14] : memref<3x16xf32, #tpu.memory_space<vmem>>, vector<3x16xf32>
    %cst_15 = arith.constant dense<0.000000e+00> : vector<3x256xf32>
    %16 = tpu.matmul %15, %11, %cst_15 {dimension_numbers = #tpu.dot_dimension_numbers<[1], [0], [0], [1], [0, 0, 1, 1], [], []>} : vector<3x16xf32>, vector<16x256xf32>, vector<3x256xf32> -> vector<3x256xf32>
    %c0_16 = arith.constant 0 : index
    %c0_17 = arith.constant 0 : index
    %17 = vector.load %arg6[%c0_16, %c0_17] : memref<3x1xf32, #tpu.memory_space<vmem>>, vector<3x1xf32>
    %18 = vector.broadcast %17 : vector<3x1xf32> to vector<3x256xf32>
    %19 = arith.addf %16, %18 : vector<3x256xf32>
    %c0_18 = arith.constant 0 : index
    %c0_19 = arith.constant 0 : index
    %c0_20 = arith.constant 0 : index
    %20 = vector.load %arg8[%c0_18, %c0_19, %c0_20] : memref<1x3x256xf32, #tpu.memory_space<vmem>>, vector<1x3x256xf32>
    %21 = vector.shape_cast %20 : vector<1x3x256xf32> to vector<3x256xf32>
    %22 = vector.shape_cast %19 : vector<3x256xf32> to vector<1x3x256xf32>
    tpu.vector_store %arg8[%c0_18, %c0_19, %c0_20], %22 {strides = array<i32>} : memref<1x3x256xf32, #tpu.memory_space<vmem>>, vector<1x3x256xf32>,
    return
  }
  func.func @transform_0(%arg0: i32) -> (i32, i32, i32) {
    %c0_i32 = arith.constant 0 : i32
    %c0_i32_0 = arith.constant 0 : i32
    %c0_i32_1 = arith.constant 0 : i32
    return %arg0, %c0_i32, %c0_i32_0 : i32, i32, i32
  }
  func.func @transform_1(%arg0: i32) -> (i32, i32, i32) {
    %c0_i32 = arith.constant 0 : i32
    %c0_i32_0 = arith.constant 0 : i32
    %c0_i32_1 = arith.constant 0 : i32
    return %arg0, %c0_i32, %c0_i32_0 : i32, i32, i32
  }
  func.func @transform_2(%arg0: i32) -> (i32, i32) {
    %c0_i32 = arith.constant 0 : i32
    %c0_i32_0 = arith.constant 0 : i32
    %c0_i32_1 = arith.constant 0 : i32
    return %c0_i32, %c0_i32_0 : i32, i32
  }
  func.func @transform_3(%arg0: i32) -> (i32, i32) {
    %c0_i32 = arith.constant 0 : i32
    %c0_i32_0 = arith.constant 0 : i32
    %c0_i32_1 = arith.constant 0 : i32
    return %c0_i32, %c0_i32_0 : i32, i32
  }
  func.func @transform_4(%arg0: i32) -> (i32, i32) {
    %c0_i32 = arith.constant 0 : i32
    %c0_i32_0 = arith.constant 0 : i32
    %c0_i32_1 = arith.constant 0 : i32
    return %c0_i32, %c0_i32_0 : i32, i32
  }
  func.func @transform_5(%arg0: i32) -> (i32, i32) {
    %c0_i32 = arith.constant 0 : i32
    %c0_i32_0 = arith.constant 0 : i32
    %c0_i32_1 = arith.constant 0 : i32
    return %c0_i32, %c0_i32_0 : i32, i32
  }
  func.func @transform_6(%arg0: i32) -> (i32, i32, i32) {
    %c0_i32 = arith.constant 0 : i32
    %c0_i32_0 = arith.constant 0 : i32
    %c0_i32_1 = arith.constant 0 : i32
    return %arg0, %c0_i32, %c0_i32_0 : i32, i32, i32
  }
  func.func @transform_7(%arg0: i32) -> (i32, i32, i32) {
    %c0_i32 = arith.constant 0 : i32
    %c0_i32_0 = arith.constant 0 : i32
    %c0_i32_1 = arith.constant 0 : i32
    return %arg0, %c0_i32, %c0_i32_0 : i32, i32, i32
  }
}

</mosaic_0001>

<llo_original>
// kernel: fno_rnn_2d_forward.17
$region0: #{fno_rnn_2d_forward.17}
  #allocation0 [shape = 'u32[]', space=smem, size = 0x4, offset = 0x4, fixed_abs, tag = 'smem constant byte address 0x4 - core index']
  #allocation1 [shape = 'u32[72,128]{1,0:T(1,128)}', space=vmem, size = 0x9000, scoped, tag = 'internal scratch']
  %s0 = inlined_call_operand.vmem [shape: f32[512,4], index: 0, kind: input, shape index: {}]
  %s1 = inlined_call_operand.vmem [shape: f32[4,16], index: 1, kind: input, shape index: {}]
  %s2 = inlined_call_operand.vmem [shape: f32[1,16], index: 2, kind: input, shape index: {}]
  %s3 = inlined_call_operand.vmem [shape: f32[512,16], index: 3, kind: output, shape index: {}]
  %s4 = sld [smem:[#allocation0]]
  $region45: #{fno_rnn_2d_forward.17} parent=0
    _
  %s6 = ssub.s32 1, %s4
  %s7 = scalar_select 0, %s6, %s4
  loop: start=0, step=1, limit=4
  $region2: #{fno_rnn_2d_forward.17} parent=0 // loop_pre_header
    _
  $region3: #{fno_rnn_2d_forward.17} parent=0 // loop_header
    %s9 = sphi 0, %s13
    %p10 = scmp.ge.s32.totalorder %s9, 4
    %s19 = sphi 0, %s21
    %s22 = sphi 0, %s19
    %s23 = sphi 0, %s22
    %s39 = sphi 0, %s23
    %s43 = sphi 0, %s43
    %s45 = sphi 0, %s43
    %s46 = sphi 0, %s45
    %s60 = sphi 0, %s46
    %s64 = sphi 0, %s64
    %s66 = sphi 0, %s64
    %s67 = sphi 0, %s66
    %s81 = sphi 0, %s67
    %s87 = sphi 0, %s89
    %s90 = sphi 0, %s87
    %s91 = sphi 0, %s90
    %s107 = sphi 0, %s91
  $region4: #{fno_rnn_2d_forward.17} parent=0 // loop_header_branch
    %12 = sbr.rel (%p10) target = $region8
  $region5: #{fno_rnn_2d_forward.17} parent=0 // loop_body
    %s14 = ssub.s32 %s9, 1
    %s15 = ssub.s32 %s9, 2
    %s16 = sadd.s32 %s9, 1
    %s17 = ssub.s32 %s9, %s16
    %p18 = scmp.eq.s32.totalorder %s17, 0
    %s20 = sadd.s32 %s19, 1
    %s21 = scalar_select %p18, %s19, %s20
    %p24 = pneg %p18
    %p25 = scmp.eq.s32.totalorder %s9, 1
    %p26 = por %p24, %p25
    %p27 = scmp.ne.s32.totalorder %s19, %s22
    %p28 = scmp.eq.s32.totalorder %s9, 0
    %p29 = por %p27, %p28
    %p30 = scmp.ne.s32.totalorder %s19, %s22
    %p31 = scmp.eq.s32.totalorder %s14, 1
    %p32 = por %p30, %p31
    %p33 = scmp.ne.s32.totalorder %s22, %s23
    %p34 = scmp.eq.s32.totalorder %s14, 0
    %p35 = por %p33, %p34
    %p36 = scmp.ne.s32.totalorder %s22, %s23
    %p37 = scmp.eq.s32.totalorder %s15, 1
    %p38 = por %p36, %p37
    %p40 = scmp.ne.s32.totalorder %s23, %s39
    %p41 = scmp.eq.s32.totalorder %s15, 0
    %p42 = por %p40, %p41
    %s44 = sadd.s32 %s43, 1
    %p47 = scmp.eq.s32.totalorder %s9, 1
    %p48 = scmp.ne.s32.totalorder %s43, %s45
    %p49 = scmp.eq.s32.totalorder %s9, 0
    %p50 = por %p48, %p49
    %p51 = scmp.ne.s32.totalorder %s43, %s45
    %p52 = scmp.eq.s32.totalorder %s14, 1
    %p53 = por %p51, %p52
    %p54 = scmp.ne.s32.totalorder %s45, %s46
    %p55 = scmp.eq.s32.totalorder %s14, 0
    %p56 = por %p54, %p55
    %p57 = scmp.ne.s32.totalorder %s45, %s46
    %p58 = scmp.eq.s32.totalorder %s15, 1
    %p59 = por %p57, %p58
    %p61 = scmp.ne.s32.totalorder %s46, %s60
    %p62 = scmp.eq.s32.totalorder %s15, 0
    %p63 = por %p61, %p62
    %s65 = sadd.s32 %s64, 1
    %p68 = scmp.eq.s32.totalorder %s9, 1
    %p69 = scmp.ne.s32.totalorder %s64, %s66
    %p70 = scmp.eq.s32.totalorder %s9, 0
    %p71 = por %p69, %p70
    %p72 = scmp.ne.s32.totalorder %s64, %s66
    %p73 = scmp.eq.s32.totalorder %s14, 1
    %p74 = por %p72, %p73
    %p75 = scmp.ne.s32.totalorder %s66, %s67
    %p76 = scmp.eq.s32.totalorder %s14, 0
    %p77 = por %p75, %p76
    %p78 = scmp.ne.s32.totalorder %s66, %s67
    %p79 = scmp.eq.s32.totalorder %s15, 1
    %p80 = por %p78, %p79
    %p82 = scmp.ne.s32.totalorder %s67, %s81
    %p83 = scmp.eq.s32.totalorder %s15, 0
    %p84 = por %p82, %p83
    %s85 = ssub.s32 %s9, %s16
    %p86 = scmp.eq.s32.totalorder %s85, 0
    %s88 = sadd.s32 %s87, 1
    %s89 = scalar_select %p86, %s87, %s88
    %p92 = pneg %p86
    %p93 = scmp.eq.s32.totalorder %s9, 1
    %p94 = por %p92, %p93
    %p95 = scmp.ne.s32.totalorder %s87, %s90
    %p96 = scmp.eq.s32.totalorder %s9, 0
    %p97 = por %p95, %p96
    %p98 = scmp.ne.s32.totalorder %s87, %s90
    %p99 = scmp.eq.s32.totalorder %s14, 1
    %p100 = por %p98, %p99
    %p101 = scmp.ne.s32.totalorder %s90, %s91
    %p102 = scmp.eq.s32.totalorder %s14, 0
    %p103 = por %p101, %p102
    %p104 = scmp.ne.s32.totalorder %s90, %s91
    %p105 = scmp.eq.s32.totalorder %s15, 1
    %p106 = por %p104, %p105
    %p108 = scmp.ne.s32.totalorder %s91, %s107
    %p109 = scmp.eq.s32.totalorder %s15, 0
    %p110 = por %p108, %p109
    %p111 = scmp.le.s32.totalorder 1, %s9
    %p112 = scmp.lt.s32.totalorder %s9, 3
    %p113 = pnand %p111, %p112
    %p114 = pneg %p113
    // Predicated region
    $region9: #{fno_rnn_2d_forward.17} parent=5 // pred_check
      _
    $region10: #{fno_rnn_2d_forward.17} parent=5 // pred_check_branch
      %116 = sbr.rel (%p113) target = $region12
    $region11: #{fno_rnn_2d_forward.17} parent=5 // pred_region
      %s117 = ssub.s32 %s9, 1
      // Predicated region
      $region13: #{fno_rnn_2d_forward.17} parent=11 // pred_check
        %p118 = pneg %p56
      $region14: #{fno_rnn_2d_forward.17} parent=11 // pred_check_branch
        %120 = sbr.rel (%p118) target = $region16
      $region15: #{fno_rnn_2d_forward.17} parent=11 // pred_region
        _
      $region16: #{fno_rnn_2d_forward.17} parent=11 // pred_fallthru
        _
      // Predicated region
      $region17: #{fno_rnn_2d_forward.17} parent=11 // pred_check
        %p121 = pneg %p77
      $region18: #{fno_rnn_2d_forward.17} parent=11 // pred_check_branch
        %123 = sbr.rel (%p121) target = $region20
      $region19: #{fno_rnn_2d_forward.17} parent=11 // pred_region
        _
      $region20: #{fno_rnn_2d_forward.17} parent=11 // pred_fallthru
        _
    $region12: #{fno_rnn_2d_forward.17} parent=5 // pred_fallthru
      _
    %p124 = scmp.lt.s32.totalorder %s9, 2
    // Predicated region
    $region21: #{fno_rnn_2d_forward.17} parent=5 // pred_check
      %p125 = pneg %p124
    $region22: #{fno_rnn_2d_forward.17} parent=5 // pred_check_branch
      %127 = sbr.rel (%p125) target = $region24
    $region23: #{fno_rnn_2d_forward.17} parent=5 // pred_region
      // Predicated region
      $region25: #{fno_rnn_2d_forward.17} parent=23 // pred_check
        %p128 = pneg %p29
      $region26: #{fno_rnn_2d_forward.17} parent=23 // pred_check_branch
        %130 = sbr.rel (%p128) target = $region28
      $region27: #{fno_rnn_2d_forward.17} parent=23 // pred_region
        %s131 = smul.u32 32, %s9
        %p132 = scmp.lt.s32.totalorder %s131, 63
        %s133 = scalar_select %p132, %s131, 63
        %s134 = smul.addr %s133, 8
        %s135 = scalar_lea.vmem %s0, %s134
        %s136 = smul.u32 32, %s9
      $region28: #{fno_rnn_2d_forward.17} parent=23 // pred_fallthru
        _
    $region24: #{fno_rnn_2d_forward.17} parent=5 // pred_fallthru
      _
    %p137 = scmp.le.s32.totalorder 1, %s9
    %p138 = scmp.lt.s32.totalorder %s9, 3
    %p139 = pnand %p137, %p138
    %p140 = pneg %p139
    // Predicated region
    $region29: #{fno_rnn_2d_forward.17} parent=5 // pred_check
      _
    $region30: #{fno_rnn_2d_forward.17} parent=5 // pred_check_branch
      %142 = sbr.rel (%p139) target = $region32
    $region31: #{fno_rnn_2d_forward.17} parent=5 // pred_region
      %s143 = ssub.s32 %s9, 1
      %s144 = smul.u32 32, %s14
      %p145 = scmp.lt.s32.totalorder %s144, 63
      %s146 = scalar_select %p145, %s144, 63
      %s147 = smul.addr %s146, 8
      %s148 = scalar_lea.vmem %s0, %s147
      %p149 = pneg %p35
      %p150 = pneg %p32
      %p151 = pneg %p56
      %p152 = pneg %p53
      %p153 = pneg %p77
      %p154 = pneg %p74
      %p155 = pneg %p103
      %p156 = pneg %p100
      %s157 = smul.u32 32, %s14
      %p158 = scmp.lt.s32.totalorder %s157, 63
      %s159 = scalar_select %p158, %s157, 63
      %s160 = smul.addr %s159, 8
      %s161 = scalar_lea.vmem %s3, %s160
      %s162 = smul.u32 32, %s14
      %p163 = scmp.lt.s32.totalorder %s162, 63
      %s164 = scalar_select %p163, %s162, 63
      %s165 = smul.addr %s164, 8
      %s166 = scalar_lea.vmem %s0, %s165
      %s167 = smul.u32 32, %s14
      %s168 = smul.u32 32, %s14
      %p169 = scmp.lt.s32.totalorder %s168, 63
      %s170 = scalar_select %p169, %s168, 63
      %s171 = smul.addr %s170, 8
      %s172 = scalar_lea.vmem %s3, %s171
      %s173 = smul.u32 32, %s14
      %v174 = vld [vmem:[%s166] sm:$0xff]
      %v175 = vld [vmem:[%s166 + $0x8] sm:$0xff]
      %v176 = vld [vmem:[%s166 + $0x10] sm:$0xff]
      %v177 = vld [vmem:[%s166 + $0x18] sm:$0xff]
      %v178 = vld [vmem:[%s166 + $0x20] sm:$0xff]
      %v179 = vld [vmem:[%s166 + $0x28] sm:$0xff]
      %v180 = vld [vmem:[%s166 + $0x30] sm:$0xff]
      %v181 = vld [vmem:[%s166 + $0x38] sm:$0xff]
      %v182 = vld [vmem:[%s166 + $0x40] sm:$0xff]
      %v183 = vld [vmem:[%s166 + $0x48] sm:$0xff]
      %v184 = vld [vmem:[%s166 + $0x50] sm:$0xff]
      %v185 = vld [vmem:[%s166 + $0x58] sm:$0xff]
      %v186 = vld [vmem:[%s166 + $0x60] sm:$0xff]
      %v187 = vld [vmem:[%s166 + $0x68] sm:$0xff]
      %v188 = vld [vmem:[%s166 + $0x70] sm:$0xff]
      %v189 = vld [vmem:[%s166 + $0x78] sm:$0xff]
      %v190 = vld [vmem:[%s166 + $0x80] sm:$0xff]
      %v191 = vld [vmem:[%s166 + $0x88] sm:$0xff]
      %v192 = vld [vmem:[%s166 + $0x90] sm:$0xff]
      %v193 = vld [vmem:[%s166 + $0x98] sm:$0xff]
      %v194 = vld [vmem:[%s166 + $0xa0] sm:$0xff]
      %v195 = vld [vmem:[%s166 + $0xa8] sm:$0xff]
      %v196 = vld [vmem:[%s166 + $0xb0] sm:$0xff]
      %v197 = vld [vmem:[%s166 + $0xb8] sm:$0xff]
      %v198 = vld [vmem:[%s166 + $0xc0] sm:$0xff]
      %v199 = vld [vmem:[%s166 + $0xc8] sm:$0xff]
      %v200 = vld [vmem:[%s166 + $0xd0] sm:$0xff]
      %v201 = vld [vmem:[%s166 + $0xd8] sm:$0xff]
      %v202 = vld [vmem:[%s166 + $0xe0] sm:$0xff]
      %v203 = vld [vmem:[%s166 + $0xe8] sm:$0xff]
      %v204 = vld [vmem:[%s166 + $0xf0] sm:$0xff]
      %v205 = vld [vmem:[%s166 + $0xf8] sm:$0xff]
      %v206 = vld [vmem:[%s1] sm:$0xf]
      %v207 = vld [vmem:[%s2] sm:$0x1]
      %v209 = vperm.slane %v207, 0
      %vm211 = vcmask 31744
      %v213 = vsel %vm211, %v174, 0
      %v216 = vsel %vm211, %v175, 0
      %v219 = vsel %vm211, %v176, 0
      %v222 = vsel %vm211, %v177, 0
      %v225 = vsel %vm211, %v178, 0
      %v228 = vsel %vm211, %v179, 0
      %v231 = vsel %vm211, %v180, 0
      %v234 = vsel %vm211, %v181, 0
      %v237 = vsel %vm211, %v182, 0
      %v240 = vsel %vm211, %v183, 0
      %v243 = vsel %vm211, %v184, 0
      %v246 = vsel %vm211, %v185, 0
      %v249 = vsel %vm211, %v186, 0
      %v252 = vsel %vm211, %v187, 0
      %v255 = vsel %vm211, %v188, 0
      %v258 = vsel %vm211, %v189, 0
      %v261 = vsel %vm211, %v190, 0
      %v264 = vsel %vm211, %v191, 0
      %v267 = vsel %vm211, %v192, 0
      %v270 = vsel %vm211, %v193, 0
      %v273 = vsel %vm211, %v194, 0
      %v276 = vsel %vm211, %v195, 0
      %v279 = vsel %vm211, %v196, 0
      %v282 = vsel %vm211, %v197, 0
      %v285 = vsel %vm211, %v198, 0
      %v288 = vsel %vm211, %v199, 0
      %v291 = vsel %vm211, %v200, 0
      %v294 = vsel %vm211, %v201, 0
      %v297 = vsel %vm211, %v202, 0
      %v300 = vsel %vm211, %v203, 0
      %v303 = vsel %vm211, %v204, 0
      %v306 = vsel %vm211, %v205, 0
      %vm308 = vcmask 1043456
      %v310 = vsel %vm308, %v206, 0
      %312 = vmatpush.msra.mxu0 0.0
      %313 = vmatpush.msra.mxu0 0.0
      %314 = vmatpush.msra.mxu0 0.0
      %315 = vmatpush.msra.mxu0 0.0
      %316 = vmatpush.msra.mxu0 0.0
      %317 = vmatpush.msra.mxu0 0.0
      %318 = vmatpush.msra.mxu0 0.0
      %319 = vmatpush.msra.mxu0 0.0
      %320 = vmatpush.msra.mxu0 0.0
      %321 = vmatpush.msra.mxu0 0.0
      %322 = vmatpush.msra.mxu0 0.0
      %323 = vmatpush.msra.mxu0 0.0
      %324 = vmatpush.msra.mxu0 0.0
      %325 = vmatpush.msra.mxu0 0.0
      %326 = vmatpush.msra.mxu0 0.0
      %327 = vmatpush.msra.mxu0 %v310
      %328 = vmatmul.f32.gmra.mxu0 %v213
      %v329 = vpop.f32.mrf.mxu0
      %v330 = vadd.f32 %v209, %v329
      %331 = vmatmul.f32.gmra.mxu0 %v216
      %v332 = vpop.f32.mrf.mxu0
      %v333 = vadd.f32 %v209, %v332
      %334 = vmatmul.f32.gmra.mxu0 %v219
      %v335 = vpop.f32.mrf.mxu0
      %v336 = vadd.f32 %v209, %v335
      %337 = vmatmul.f32.gmra.mxu0 %v222
      %v338 = vpop.f32.mrf.mxu0
      %v339 = vadd.f32 %v209, %v338
      %340 = vmatmul.f32.gmra.mxu0 %v225
      %v341 = vpop.f32.mrf.mxu0
      %v342 = vadd.f32 %v209, %v341
      %343 = vmatmul.f32.gmra.mxu0 %v228
      %v344 = vpop.f32.mrf.mxu0
      %v345 = vadd.f32 %v209, %v344
      %346 = vmatmul.f32.gmra.mxu0 %v231
      %v347 = vpop.f32.mrf.mxu0
      %v348 = vadd.f32 %v209, %v347
      %349 = vmatmul.f32.gmra.mxu0 %v234
      %v350 = vpop.f32.mrf.mxu0
      %v351 = vadd.f32 %v209, %v350
      %352 = vmatmul.f32.gmra.mxu0 %v237
      %v353 = vpop.f32.mrf.mxu0
      %v354 = vadd.f32 %v209, %v353
      %355 = vmatmul.f32.gmra.mxu0 %v240
      %v356 = vpop.f32.mrf.mxu0
      %v357 = vadd.f32 %v209, %v356
      %358 = vmatmul.f32.gmra.mxu0 %v243
      %v359 = vpop.f32.mrf.mxu0
      %v360 = vadd.f32 %v209, %v359
      %361 = vmatmul.f32.gmra.mxu0 %v246
      %v362 = vpop.f32.mrf.mxu0
      %v363 = vadd.f32 %v209, %v362
      %364 = vmatmul.f32.gmra.mxu0 %v249
      %v365 = vpop.f32.mrf.mxu0
      %v366 = vadd.f32 %v209, %v365
      %367 = vmatmul.f32.gmra.mxu0 %v252
      %v368 = vpop.f32.mrf.mxu0
      %v369 = vadd.f32 %v209, %v368
      %370 = vmatmul.f32.gmra.mxu0 %v255
      %v371 = vpop.f32.mrf.mxu0
      %v372 = vadd.f32 %v209, %v371
      %373 = vmatmul.f32.gmra.mxu0 %v258
      %v374 = vpop.f32.mrf.mxu0
      %v375 = vadd.f32 %v209, %v374
      %376 = vmatmul.f32.gmra.mxu0 %v261
      %v377 = vpop.f32.mrf.mxu0
      %v378 = vadd.f32 %v209, %v377
      %379 = vmatmul.f32.gmra.mxu0 %v264
      %v380 = vpop.f32.mrf.mxu0
      %v381 = vadd.f32 %v209, %v380
      %382 = vmatmul.f32.gmra.mxu0 %v267
      %v383 = vpop.f32.mrf.mxu0
      %v384 = vadd.f32 %v209, %v383
      %385 = vmatmul.f32.gmra.mxu0 %v270
      %v386 = vpop.f32.mrf.mxu0
      %v387 = vadd.f32 %v209, %v386
      %388 = vmatmul.f32.gmra.mxu0 %v273
      %v389 = vpop.f32.mrf.mxu0
      %v390 = vadd.f32 %v209, %v389
      %391 = vmatmul.f32.gmra.mxu0 %v276
      %v392 = vpop.f32.mrf.mxu0
      %v393 = vadd.f32 %v209, %v392
      %394 = vmatmul.f32.gmra.mxu0 %v279
      %v395 = vpop.f32.mrf.mxu0
      %v396 = vadd.f32 %v209, %v395
      %397 = vmatmul.f32.gmra.mxu0 %v282
      %v398 = vpop.f32.mrf.mxu0
      %v399 = vadd.f32 %v209, %v398
      %400 = vmatmul.f32.gmra.mxu0 %v285
      %v401 = vpop.f32.mrf.mxu0
      %v402 = vadd.f32 %v209, %v401
      %403 = vmatmul.f32.gmra.mxu0 %v288
      %v404 = vpop.f32.mrf.mxu0
      %v405 = vadd.f32 %v209, %v404
      %406 = vmatmul.f32.gmra.mxu0 %v291
      %v407 = vpop.f32.mrf.mxu0
      %v408 = vadd.f32 %v209, %v407
      %409 = vmatmul.f32.gmra.mxu0 %v294
      %v410 = vpop.f32.mrf.mxu0
      %v411 = vadd.f32 %v209, %v410
      %412 = vmatmul.f32.gmra.mxu0 %v297
      %v413 = vpop.f32.mrf.mxu0
      %v414 = vadd.f32 %v209, %v413
      %415 = vmatmul.f32.gmra.mxu0 %v300
      %v416 = vpop.f32.mrf.mxu0
      %v417 = vadd.f32 %v209, %v416
      %418 = vmatmul.f32.gmra.mxu0 %v303
      %v419 = vpop.f32.mrf.mxu0
      %v420 = vadd.f32 %v209, %v419
      %421 = vmatmul.f32.gmra.mxu0 %v306
      %v422 = vpop.f32.mrf.mxu0
      %v423 = vadd.f32 %v209, %v422
      %424 = vdwg.mxu0
      %vm425 = vcmask 130048
      %426 = vst.msk [vmem:[%s172] sm:$0xff] %vm425, %v330
      %427 = vst.msk [vmem:[%s172 + $0x8] sm:$0xff] %vm425, %v333
      %428 = vst.msk [vmem:[%s172 + $0x10] sm:$0xff] %vm425, %v336
      %429 = vst.msk [vmem:[%s172 + $0x18] sm:$0xff] %vm425, %v339
      %430 = vst.msk [vmem:[%s172 + $0x20] sm:$0xff] %vm425, %v342
      %431 = vst.msk [vmem:[%s172 + $0x28] sm:$0xff] %vm425, %v345
      %432 = vst.msk [vmem:[%s172 + $0x30] sm:$0xff] %vm425, %v348
      %433 = vst.msk [vmem:[%s172 + $0x38] sm:$0xff] %vm425, %v351
      %434 = vst.msk [vmem:[%s172 + $0x40] sm:$0xff] %vm425, %v354
      %435 = vst.msk [vmem:[%s172 + $0x48] sm:$0xff] %vm425, %v357
      %436 = vst.msk [vmem:[%s172 + $0x50] sm:$0xff] %vm425, %v360
      %437 = vst.msk [vmem:[%s172 + $0x58] sm:$0xff] %vm425, %v363
      %438 = vst.msk [vmem:[%s172 + $0x60] sm:$0xff] %vm425, %v366
      %439 = vst.msk [vmem:[%s172 + $0x68] sm:$0xff] %vm425, %v369
      %440 = vst.msk [vmem:[%s172 + $0x70] sm:$0xff] %vm425, %v372
      %441 = vst.msk [vmem:[%s172 + $0x78] sm:$0xff] %vm425, %v375
      %442 = vst.msk [vmem:[%s172 + $0x80] sm:$0xff] %vm425, %v378
      %443 = vst.msk [vmem:[%s172 + $0x88] sm:$0xff] %vm425, %v381
      %444 = vst.msk [vmem:[%s172 + $0x90] sm:$0xff] %vm425, %v384
      %445 = vst.msk [vmem:[%s172 + $0x98] sm:$0xff] %vm425, %v387
      %446 = vst.msk [vmem:[%s172 + $0xa0] sm:$0xff] %vm425, %v390
      %447 = vst.msk [vmem:[%s172 + $0xa8] sm:$0xff] %vm425, %v393
      %448 = vst.msk [vmem:[%s172 + $0xb0] sm:$0xff] %vm425, %v396
      %449 = vst.msk [vmem:[%s172 + $0xb8] sm:$0xff] %vm425, %v399
      %450 = vst.msk [vmem:[%s172 + $0xc0] sm:$0xff] %vm425, %v402
      %451 = vst.msk [vmem:[%s172 + $0xc8] sm:$0xff] %vm425, %v405
      %452 = vst.msk [vmem:[%s172 + $0xd0] sm:$0xff] %vm425, %v408
      %453 = vst.msk [vmem:[%s172 + $0xd8] sm:$0xff] %vm425, %v411
      %454 = vst.msk [vmem:[%s172 + $0xe0] sm:$0xff] %vm425, %v414
      %455 = vst.msk [vmem:[%s172 + $0xe8] sm:$0xff] %vm425, %v417
      %456 = vst.msk [vmem:[%s172 + $0xf0] sm:$0xff] %vm425, %v420
      %457 = vst.msk [vmem:[%s172 + $0xf8] sm:$0xff] %vm425, %v423
      %s458 = smul.u32 32, %s14
      %p459 = scmp.lt.s32.totalorder %s458, 63
      %s460 = scalar_select %p459, %s458, 63
      %s461 = smul.addr %s460, 8
      %s462 = scalar_lea.vmem %s3, %s461
      // Predicated region
      $region33: #{fno_rnn_2d_forward.17} parent=31 // pred_check
        %p463 = pneg %p100
      $region34: #{fno_rnn_2d_forward.17} parent=31 // pred_check_branch
        %465 = sbr.rel (%p463) target = $region36
      $region35: #{fno_rnn_2d_forward.17} parent=31 // pred_region
        %s466 = smul.u32 32, %s14
      $region36: #{fno_rnn_2d_forward.17} parent=31 // pred_fallthru
        _
    $region32: #{fno_rnn_2d_forward.17} parent=5 // pred_fallthru
      _
    %p467 = scmp.le.s32.totalorder 2, %s9
    // Predicated region
    $region37: #{fno_rnn_2d_forward.17} parent=5 // pred_check
      %p468 = pneg %p467
    $region38: #{fno_rnn_2d_forward.17} parent=5 // pred_check_branch
      %470 = sbr.rel (%p468) target = $region40
    $region39: #{fno_rnn_2d_forward.17} parent=5 // pred_region
      %s471 = ssub.s32 %s9, 2
      // Predicated region
      $region41: #{fno_rnn_2d_forward.17} parent=39 // pred_check
        %p472 = pneg %p106
      $region42: #{fno_rnn_2d_forward.17} parent=39 // pred_check_branch
        %474 = sbr.rel (%p472) target = $region44
      $region43: #{fno_rnn_2d_forward.17} parent=39 // pred_region
        %s475 = smul.u32 32, %s15
        %p476 = scmp.lt.s32.totalorder %s475, 63
        %s477 = scalar_select %p476, %s475, 63
        %s478 = smul.addr %s477, 8
        %s479 = scalar_lea.vmem %s3, %s478
      $region44: #{fno_rnn_2d_forward.17} parent=39 // pred_fallthru
        _
    $region40: #{fno_rnn_2d_forward.17} parent=5 // pred_fallthru
      _
  $region6: #{fno_rnn_2d_forward.17} parent=0 // loop_footer
    %s13 = sadd.s32 1, %s9
  $region7: #{fno_rnn_2d_forward.17} parent=0 // loop_footer_branch
    %8 = sbr.rel target = $region3
  $region8: #{fno_rnn_2d_forward.17} parent=0 // loop_exit
    _

// kernel: fno_rnn_2d_forward.18
$region0: #{fno_rnn_2d_forward.18}
  #allocation0 [shape = 'u32[]', space=smem, size = 0x4, offset = 0x4, fixed_abs, tag = 'smem constant byte address 0x4 - core index']
  #allocation1 [shape = 'u32[72,128]{1,0:T(1,128)}', space=vmem, size = 0x9000, scoped, tag = 'internal scratch']
  %s0 = inlined_call_operand.vmem [shape: f32[2,16,144], index: 0, kind: input, shape index: {}]
  %s1 = inlined_call_operand.vmem [shape: f32[2,16,144], index: 1, kind: input, shape index: {}]
  %s2 = inlined_call_operand.vmem [shape: f32[16,16,144], index: 2, kind: input, shape index: {}]
  %s3 = inlined_call_operand.vmem [shape: f32[16,16,144], index: 3, kind: input, shape index: {}]
  %s4 = inlined_call_operand.vmem [shape: f32[16,144], index: 4, kind: input, shape index: {}]
  %s5 = inlined_call_operand.vmem [shape: f32[16,144], index: 5, kind: input, shape index: {}]
  %s6 = inlined_call_operand.vmem [shape: f32[2,16,144], index: 6, kind: output, shape index: {0}]
  %s7 = inlined_call_operand.vmem [shape: f32[2,16,144], index: 7, kind: output, shape index: {1}]
  %8 = xla_tuple %s6, %s7
  %s9 = sld [smem:[#allocation0]]
  $region149: #{fno_rnn_2d_forward.18} parent=0
    _
  %s11 = ssub.s32 1, %s9
  %s12 = scalar_select 0, %s11, %s9
  $region1: #{fno_rnn_2d_forward.18} parent=0
    #allocation2 [shape = 'u8[262144]{0}', space=vmem, size = 0x40000, scoped, tag = 'input window, operand 2']
    #allocation3 [shape = 'u8[262144]{0}', space=vmem, size = 0x40000, scoped, tag = 'input window, operand 3']
    #allocation4 [shape = 'u8[32768]{0}', space=vmem, size = 0x8000, scoped, tag = 'output window, operand 0']
    #allocation5 [shape = 'u8[32768]{0}', space=vmem, size = 0x8000, scoped, tag = 'output window, operand 1']
    loop: start=0, step=1, limit=4
    $region2: #{fno_rnn_2d_forward.18} parent=1 // loop_pre_header
      _
    $region3: #{fno_rnn_2d_forward.18} parent=1 // loop_header
      %s14 = sphi 0, %s18
      %p15 = scmp.ge.s32.totalorder %s14, 4
      %s22 = sphi 0, %s22
      %s24 = sphi 0, %s22
      %s25 = sphi 0, %s24
      %s39 = sphi 0, %s25
      %s43 = sphi 0, %s43
      %s45 = sphi 0, %s43
      %s46 = sphi 0, %s45
      %s60 = sphi 0, %s46
      %s66 = sphi 0, %s68
      %s69 = sphi 0, %s66
      %s70 = sphi 0, %s69
      %s86 = sphi 0, %s70
      %s92 = sphi 0, %s94
      %s95 = sphi 0, %s92
      %s96 = sphi 0, %s95
      %s112 = sphi 0, %s96
      %s118 = sphi 0, %s120
      %s121 = sphi 0, %s118
      %s122 = sphi 0, %s121
      %s138 = sphi 0, %s122
      %s144 = sphi 0, %s146
      %s147 = sphi 0, %s144
      %s148 = sphi 0, %s147
      %s164 = sphi 0, %s148
      %s170 = sphi 0, %s172
      %s173 = sphi 0, %s170
      %s174 = sphi 0, %s173
      %s190 = sphi 0, %s174
      %s196 = sphi 0, %s198
      %s199 = sphi 0, %s196
      %s200 = sphi 0, %s199
      %s216 = sphi 0, %s200
    $region4: #{fno_rnn_2d_forward.18} parent=1 // loop_header_branch
      %17 = sbr.rel (%p15) target = $region8
    $region5: #{fno_rnn_2d_forward.18} parent=1 // loop_body
      %s19 = ssub.s32 %s14, 1
      %s20 = ssub.s32 %s14, 2
      %s21 = sadd.s32 %s14, 1
      %s23 = sadd.s32 %s22, 1
      %p26 = scmp.eq.s32.totalorder %s14, 1
      %p27 = scmp.ne.s32.totalorder %s22, %s24
      %p28 = scmp.eq.s32.totalorder %s14, 0
      %p29 = por %p27, %p28
      %p30 = scmp.ne.s32.totalorder %s22, %s24
      %p31 = scmp.eq.s32.totalorder %s19, 1
      %p32 = por %p30, %p31
      %p33 = scmp.ne.s32.totalorder %s24, %s25
      %p34 = scmp.eq.s32.totalorder %s19, 0
      %p35 = por %p33, %p34
      %p36 = scmp.ne.s32.totalorder %s24, %s25
      %p37 = scmp.eq.s32.totalorder %s20, 1
      %p38 = por %p36, %p37
      %p40 = scmp.ne.s32.totalorder %s25, %s39
      %p41 = scmp.eq.s32.totalorder %s20, 0
      %p42 = por %p40, %p41
      %s44 = sadd.s32 %s43, 1
      %p47 = scmp.eq.s32.totalorder %s14, 1
      %p48 = scmp.ne.s32.totalorder %s43, %s45
      %p49 = scmp.eq.s32.totalorder %s14, 0
      %p50 = por %p48, %p49
      %p51 = scmp.ne.s32.totalorder %s43, %s45
      %p52 = scmp.eq.s32.totalorder %s19, 1
      %p53 = por %p51, %p52
      %p54 = scmp.ne.s32.totalorder %s45, %s46
      %p55 = scmp.eq.s32.totalorder %s19, 0
      %p56 = por %p54, %p55
      %p57 = scmp.ne.s32.totalorder %s45, %s46
      %p58 = scmp.eq.s32.totalorder %s20, 1
      %p59 = por %p57, %p58
      %p61 = scmp.ne.s32.totalorder %s46, %s60
      %p62 = scmp.eq.s32.totalorder %s20, 0
      %p63 = por %p61, %p62
      %s64 = ssub.s32 %s14, %s21
      %p65 = scmp.eq.s32.totalorder %s64, 0
      %s67 = sadd.s32 %s66, 1
      %s68 = scalar_select %p65, %s66, %s67
      %p71 = pneg %p65
      %p72 = scmp.eq.s32.totalorder %s14, 1
      %p73 = por %p71, %p72
      %p74 = scmp.ne.s32.totalorder %s66, %s69
      %p75 = scmp.eq.s32.totalorder %s14, 0
      %p76 = por %p74, %p75
      %p77 = scmp.ne.s32.totalorder %s66, %s69
      %p78 = scmp.eq.s32.totalorder %s19, 1
      %p79 = por %p77, %p78
      %p80 = scmp.ne.s32.totalorder %s69, %s70
      %p81 = scmp.eq.s32.totalorder %s19, 0
      %p82 = por %p80, %p81
      %p83 = scmp.ne.s32.totalorder %s69, %s70
      %p84 = scmp.eq.s32.totalorder %s20, 1
      %p85 = por %p83, %p84
      %p87 = scmp.ne.s32.totalorder %s70, %s86
      %p88 = scmp.eq.s32.totalorder %s20, 0
      %p89 = por %p87, %p88
      %s90 = ssub.s32 %s14, %s21
      %p91 = scmp.eq.s32.totalorder %s90, 0
      %s93 = sadd.s32 %s92, 1
      %s94 = scalar_select %p91, %s92, %s93
      %p97 = pneg %p91
      %p98 = scmp.eq.s32.totalorder %s14, 1
      %p99 = por %p97, %p98
      %p100 = scmp.ne.s32.totalorder %s92, %s95
      %p101 = scmp.eq.s32.totalorder %s14, 0
      %p102 = por %p100, %p101
      %p103 = scmp.ne.s32.totalorder %s92, %s95
      %p104 = scmp.eq.s32.totalorder %s19, 1
      %p105 = por %p103, %p104
      %p106 = scmp.ne.s32.totalorder %s95, %s96
      %p107 = scmp.eq.s32.totalorder %s19, 0
      %p108 = por %p106, %p107
      %p109 = scmp.ne.s32.totalorder %s95, %s96
      %p110 = scmp.eq.s32.totalorder %s20, 1
      %p111 = por %p109, %p110
      %p113 = scmp.ne.s32.totalorder %s96, %s112
      %p114 = scmp.eq.s32.totalorder %s20, 0
      %p115 = por %p113, %p114
      %s116 = ssub.s32 %s14, %s21
      %p117 = scmp.eq.s32.totalorder %s116, 0
      %s119 = sadd.s32 %s118, 1
      %s120 = scalar_select %p117, %s118, %s119
      %p123 = pneg %p117
      %p124 = scmp.eq.s32.totalorder %s14, 1
      %p125 = por %p123, %p124
      %p126 = scmp.ne.s32.totalorder %s118, %s121
      %p127 = scmp.eq.s32.totalorder %s14, 0
      %p128 = por %p126, %p127
      %p129 = scmp.ne.s32.totalorder %s118, %s121
      %p130 = scmp.eq.s32.totalorder %s19, 1
      %p131 = por %p129, %p130
      %p132 = scmp.ne.s32.totalorder %s121, %s122
      %p133 = scmp.eq.s32.totalorder %s19, 0
      %p134 = por %p132, %p133
      %p135 = scmp.ne.s32.totalorder %s121, %s122
      %p136 = scmp.eq.s32.totalorder %s20, 1
      %p137 = por %p135, %p136
      %p139 = scmp.ne.s32.totalorder %s122, %s138
      %p140 = scmp.eq.s32.totalorder %s20, 0
      %p141 = por %p139, %p140
      %s142 = ssub.s32 %s14, %s21
      %p143 = scmp.eq.s32.totalorder %s142, 0
      %s145 = sadd.s32 %s144, 1
      %s146 = scalar_select %p143, %s144, %s145
      %p149 = pneg %p143
      %p150 = scmp.eq.s32.totalorder %s14, 1
      %p151 = por %p149, %p150
      %p152 = scmp.ne.s32.totalorder %s144, %s147
      %p153 = scmp.eq.s32.totalorder %s14, 0
      %p154 = por %p152, %p153
      %p155 = scmp.ne.s32.totalorder %s144, %s147
      %p156 = scmp.eq.s32.totalorder %s19, 1
      %p157 = por %p155, %p156
      %p158 = scmp.ne.s32.totalorder %s147, %s148
      %p159 = scmp.eq.s32.totalorder %s19, 0
      %p160 = por %p158, %p159
      %p161 = scmp.ne.s32.totalorder %s147, %s148
      %p162 = scmp.eq.s32.totalorder %s20, 1
      %p163 = por %p161, %p162
      %p165 = scmp.ne.s32.totalorder %s148, %s164
      %p166 = scmp.eq.s32.totalorder %s20, 0
      %p167 = por %p165, %p166
      %s168 = ssub.s32 %s14, %s21
      %p169 = scmp.eq.s32.totalorder %s168, 0
      %s171 = sadd.s32 %s170, 1
      %s172 = scalar_select %p169, %s170, %s171
      %p175 = pneg %p169
      %p176 = scmp.eq.s32.totalorder %s14, 1
      %p177 = por %p175, %p176
      %p178 = scmp.ne.s32.totalorder %s170, %s173
      %p179 = scmp.eq.s32.totalorder %s14, 0
      %p180 = por %p178, %p179
      %p181 = scmp.ne.s32.totalorder %s170, %s173
      %p182 = scmp.eq.s32.totalorder %s19, 1
      %p183 = por %p181, %p182
      %p184 = scmp.ne.s32.totalorder %s173, %s174
      %p185 = scmp.eq.s32.totalorder %s19, 0
      %p186 = por %p184, %p185
      %p187 = scmp.ne.s32.totalorder %s173, %s174
      %p188 = scmp.eq.s32.totalorder %s20, 1
      %p189 = por %p187, %p188
      %p191 = scmp.ne.s32.totalorder %s174, %s190
      %p192 = scmp.eq.s32.totalorder %s20, 0
      %p193 = por %p191, %p192
      %s194 = ssub.s32 %s14, %s21
      %p195 = scmp.eq.s32.totalorder %s194, 0
      %s197 = sadd.s32 %s196, 1
      %s198 = scalar_select %p195, %s196, %s197
      %p201 = pneg %p195
      %p202 = scmp.eq.s32.totalorder %s14, 1
      %p203 = por %p201, %p202
      %p204 = scmp.ne.s32.totalorder %s196, %s199
      %p205 = scmp.eq.s32.totalorder %s14, 0
      %p206 = por %p204, %p205
      %p207 = scmp.ne.s32.totalorder %s196, %s199
      %p208 = scmp.eq.s32.totalorder %s19, 1
      %p209 = por %p207, %p208
      %p210 = scmp.ne.s32.totalorder %s199, %s200
      %p211 = scmp.eq.s32.totalorder %s19, 0
      %p212 = por %p210, %p211
      %p213 = scmp.ne.s32.totalorder %s199, %s200
      %p214 = scmp.eq.s32.totalorder %s20, 1
      %p215 = por %p213, %p214
      %p217 = scmp.ne.s32.totalorder %s200, %s216
      %p218 = scmp.eq.s32.totalorder %s20, 0
      %p219 = por %p217, %p218
      %p220 = scmp.le.s32.totalorder 1, %s14
      %p221 = scmp.lt.s32.totalorder %s14, 3
      %p222 = pnand %p220, %p221
      %p223 = pneg %p222
      // Predicated region
      $region9: #{fno_rnn_2d_forward.18} parent=5 // pred_check
        _
      $region10: #{fno_rnn_2d_forward.18} parent=5 // pred_check_branch
        %225 = sbr.rel (%p222) target = $region12
      $region11: #{fno_rnn_2d_forward.18} parent=5 // pred_region
        %s226 = ssub.s32 %s14, 1
        // Predicated region
        $region13: #{fno_rnn_2d_forward.18} parent=11 // pred_check
          %p227 = pneg %p35
        $region14: #{fno_rnn_2d_forward.18} parent=11 // pred_check_branch
          %229 = sbr.rel (%p227) target = $region16
        $region15: #{fno_rnn_2d_forward.18} parent=11 // pred_region
          _
        $region16: #{fno_rnn_2d_forward.18} parent=11 // pred_fallthru
          _
        // Predicated region
        $region17: #{fno_rnn_2d_forward.18} parent=11 // pred_check
          %p230 = pneg %p56
        $region18: #{fno_rnn_2d_forward.18} parent=11 // pred_check_branch
          %232 = sbr.rel (%p230) target = $region20
        $region19: #{fno_rnn_2d_forward.18} parent=11 // pred_region
          _
        $region20: #{fno_rnn_2d_forward.18} parent=11 // pred_fallthru
          _
      $region12: #{fno_rnn_2d_forward.18} parent=5 // pred_fallthru
        _
      %p233 = scmp.lt.s32.totalorder %s14, 2
      // Predicated region
      $region21: #{fno_rnn_2d_forward.18} parent=5 // pred_check
        %p234 = pneg %p233
      $region22: #{fno_rnn_2d_forward.18} parent=5 // pred_check_branch
        %236 = sbr.rel (%p234) target = $region24
      $region23: #{fno_rnn_2d_forward.18} parent=5 // pred_region
        // Predicated region
        $region25: #{fno_rnn_2d_forward.18} parent=23 // pred_check
          %p237 = pneg %p76
        $region26: #{fno_rnn_2d_forward.18} parent=23 // pred_check_branch
          %239 = sbr.rel (%p237) target = $region28
        $region27: #{fno_rnn_2d_forward.18} parent=23 // pred_region
          %s240 = sand.u32 %s66, 1
          %s241 = sand.u32 %s66, 1
          %s242 = smul.addr %s241, 256
          %s243 = scalar_lea.vmem [#allocation2], %s242
          %s244 = smul.addr %s14, 2
          %s245 = smul.addr %s244, 8
          %s246 = scalar_lea.vmem %s2, %s245
          // Predicated region
          $region29: #{fno_rnn_2d_forward.18} parent=27 // pred_check
            _
          $region30: #{fno_rnn_2d_forward.18} parent=27 // pred_check_branch
            %248 = sbr.rel (0) target = $region32
          $region31: #{fno_rnn_2d_forward.18} parent=27 // pred_region
            // Predicated region
            $region33: #{fno_rnn_2d_forward.18} parent=31 // pred_check
              _
            $region34: #{fno_rnn_2d_forward.18} parent=31 // pred_check_branch
              %250 = sbr.rel (0) target = $region36
            $region35: #{fno_rnn_2d_forward.18} parent=31 // pred_region
              loop: start=0, step=1, limit=1
              $region37: #{fno_rnn_2d_forward.18} parent=35 // loop_pre_header
                _
              $region38: #{fno_rnn_2d_forward.18} parent=35 // loop_header
                %s252 = sphi 0, %s256
                %p253 = scmp.ge.s32.totalorder %s252, 1
                %s257 = sphi %s246, %s246
                %s258 = sphi %s243, %s243
              $region39: #{fno_rnn_2d_forward.18} parent=35 // loop_header_branch
                %255 = sbr.rel (%p253) target = $region43
              $region40: #{fno_rnn_2d_forward.18} parent=35 // loop_body
                %v259 = vld [vmem:[%s257] sm:$0xff]
                %260 = vst [vmem:[%s258] sm:$0xff] %v259
                %v261 = vld [vmem:[%s257 + $0x8] sm:$0xff]
                %262 = vst [vmem:[%s258 + $0x8] sm:$0xff] %v261
                %v263 = vld [vmem:[%s257 + $0x20] sm:$0xff]
                %264 = vst [vmem:[%s258 + $0x10] sm:$0xff] %v263
                %v265 = vld [vmem:[%s257 + $0x28] sm:$0xff]
                %266 = vst [vmem:[%s258 + $0x18] sm:$0xff] %v265
                %v267 = vld [vmem:[%s257 + $0x40] sm:$0xff]
                %268 = vst [vmem:[%s258 + $0x20] sm:$0xff] %v267
                %v269 = vld [vmem:[%s257 + $0x48] sm:$0xff]
                %270 = vst [vmem:[%s258 + $0x28] sm:$0xff] %v269
                %v271 = vld [vmem:[%s257 + $0x60] sm:$0xff]
                %272 = vst [vmem:[%s258 + $0x30] sm:$0xff] %v271
                %v273 = vld [vmem:[%s257 + $0x68] sm:$0xff]
                %274 = vst [vmem:[%s258 + $0x38] sm:$0xff] %v273
                %v275 = vld [vmem:[%s257 + $0x80] sm:$0xff]
                %276 = vst [vmem:[%s258 + $0x40] sm:$0xff] %v275
                %v277 = vld [vmem:[%s257 + $0x88] sm:$0xff]
                %278 = vst [vmem:[%s258 + $0x48] sm:$0xff] %v277
                %v279 = vld [vmem:[%s257 + $0xa0] sm:$0xff]
                %280 = vst [vmem:[%s258 + $0x50] sm:$0xff] %v279
                %v281 = vld [vmem:[%s257 + $0xa8] sm:$0xff]
                %282 = vst [vmem:[%s258 + $0x58] sm:$0xff] %v281
                %v283 = vld [vmem:[%s257 + $0xc0] sm:$0xff]
                %284 = vst [vmem:[%s258 + $0x60] sm:$0xff] %v283
                %v285 = vld [vmem:[%s257 + $0xc8] sm:$0xff]
                %286 = vst [vmem:[%s258 + $0x68] sm:$0xff] %v285
                %v287 = vld [vmem:[%s257 + $0xe0] sm:$0xff]
                %288 = vst [vmem:[%s258 + $0x70] sm:$0xff] %v287
                %v289 = vld [vmem:[%s257 + $0xe8] sm:$0xff]
                %290 = vst [vmem:[%s258 + $0x78] sm:$0xff] %v289
                %v291 = vld [vmem:[%s257 + $0x100] sm:$0xff]
                %292 = vst [vmem:[%s258 + $0x80] sm:$0xff] %v291
                %v293 = vld [vmem:[%s257 + $0x108] sm:$0xff]
                %294 = vst [vmem:[%s258 + $0x88] sm:$0xff] %v293
                %v295 = vld [vmem:[%s257 + $0x120] sm:$0xff]
                %296 = vst [vmem:[%s258 + $0x90] sm:$0xff] %v295
                %v297 = vld [vmem:[%s257 + $0x128] sm:$0xff]
                %298 = vst [vmem:[%s258 + $0x98] sm:$0xff] %v297
                %v299 = vld [vmem:[%s257 + $0x140] sm:$0xff]
                %300 = vst [vmem:[%s258 + $0xa0] sm:$0xff] %v299
                %v301 = vld [vmem:[%s257 + $0x148] sm:$0xff]
                %302 = vst [vmem:[%s258 + $0xa8] sm:$0xff] %v301
                %v303 = vld [vmem:[%s257 + $0x160] sm:$0xff]
                %304 = vst [vmem:[%s258 + $0xb0] sm:$0xff] %v303
                %v305 = vld [vmem:[%s257 + $0x168] sm:$0xff]
                %306 = vst [vmem:[%s258 + $0xb8] sm:$0xff] %v305
                %v307 = vld [vmem:[%s257 + $0x180] sm:$0xff]
                %308 = vst [vmem:[%s258 + $0xc0] sm:$0xff] %v307
                %v309 = vld [vmem:[%s257 + $0x188] sm:$0xff]
                %310 = vst [vmem:[%s258 + $0xc8] sm:$0xff] %v309
                %v311 = vld [vmem:[%s257 + $0x1a0] sm:$0xff]
                %312 = vst [vmem:[%s258 + $0xd0] sm:$0xff] %v311
                %v313 = vld [vmem:[%s257 + $0x1a8] sm:$0xff]
                %314 = vst [vmem:[%s258 + $0xd8] sm:$0xff] %v313
                %v315 = vld [vmem:[%s257 + $0x1c0] sm:$0xff]
                %316 = vst [vmem:[%s258 + $0xe0] sm:$0xff] %v315
                %v317 = vld [vmem:[%s257 + $0x1c8] sm:$0xff]
                %318 = vst [vmem:[%s258 + $0xe8] sm:$0xff] %v317
                %v319 = vld [vmem:[%s257 + $0x1e0] sm:$0xff]
                %320 = vst [vmem:[%s258 + $0xf0] sm:$0xff] %v319
                %v321 = vld [vmem:[%s257 + $0x1e8] sm:$0xff]
                %322 = vst [vmem:[%s258 + $0xf8] sm:$0xff] %v321
              $region41: #{fno_rnn_2d_forward.18} parent=35 // loop_footer
                %s256 = sadd.s32 1, %s252
              $region42: #{fno_rnn_2d_forward.18} parent=35 // loop_footer_branch
                %251 = sbr.rel target = $region38
              $region43: #{fno_rnn_2d_forward.18} parent=35 // loop_exit
                _
            $region36: #{fno_rnn_2d_forward.18} parent=31 // pred_fallthru
              _
            // Predicated region
            $region44: #{fno_rnn_2d_forward.18} parent=31 // pred_check
              _
            $region45: #{fno_rnn_2d_forward.18} parent=31 // pred_check_branch
              %324 = sbr.rel target = $region47
            $region46: #{fno_rnn_2d_forward.18} parent=31 // pred_region
              _
            $region47: #{fno_rnn_2d_forward.18} parent=31 // pred_fallthru
              _
          $region32: #{fno_rnn_2d_forward.18} parent=27 // pred_fallthru
            _
          %325 = vnop
        $region28: #{fno_rnn_2d_forward.18} parent=23 // pred_fallthru
          _
        // Predicated region
        $region48: #{fno_rnn_2d_forward.18} parent=23 // pred_check
          %p326 = pneg %p102
        $region49: #{fno_rnn_2d_forward.18} parent=23 // pred_check_branch
          %328 = sbr.rel (%p326) target = $region51
        $region50: #{fno_rnn_2d_forward.18} parent=23 // pred_region
          %s329 = sand.u32 %s92, 1
          %s330 = sand.u32 %s92, 1
          %s331 = smul.addr %s330, 256
          %s332 = scalar_lea.vmem [#allocation3], %s331
          %s333 = smul.addr %s14, 2
          %s334 = smul.addr %s333, 8
          %s335 = scalar_lea.vmem %s3, %s334
          // Predicated region
          $region52: #{fno_rnn_2d_forward.18} parent=50 // pred_check
            _
          $region53: #{fno_rnn_2d_forward.18} parent=50 // pred_check_branch
            %337 = sbr.rel (0) target = $region55
          $region54: #{fno_rnn_2d_forward.18} parent=50 // pred_region
            // Predicated region
            $region56: #{fno_rnn_2d_forward.18} parent=54 // pred_check
              _
            $region57: #{fno_rnn_2d_forward.18} parent=54 // pred_check_branch
              %339 = sbr.rel (0) target = $region59
            $region58: #{fno_rnn_2d_forward.18} parent=54 // pred_region
              loop: start=0, step=1, limit=1
              $region60: #{fno_rnn_2d_forward.18} parent=58 // loop_pre_header
                _
              $region61: #{fno_rnn_2d_forward.18} parent=58 // loop_header
                %s341 = sphi 0, %s345
                %p342 = scmp.ge.s32.totalorder %s341, 1
                %s346 = sphi %s335, %s335
                %s347 = sphi %s332, %s332
              $region62: #{fno_rnn_2d_forward.18} parent=58 // loop_header_branch
                %344 = sbr.rel (%p342) target = $region66
              $region63: #{fno_rnn_2d_forward.18} parent=58 // loop_body
                %v348 = vld [vmem:[%s346] sm:$0xff]
                %349 = vst [vmem:[%s347] sm:$0xff] %v348
                %v350 = vld [vmem:[%s346 + $0x8] sm:$0xff]
                %351 = vst [vmem:[%s347 + $0x8] sm:$0xff] %v350
                %v352 = vld [vmem:[%s346 + $0x20] sm:$0xff]
                %353 = vst [vmem:[%s347 + $0x10] sm:$0xff] %v352
                %v354 = vld [vmem:[%s346 + $0x28] sm:$0xff]
                %355 = vst [vmem:[%s347 + $0x18] sm:$0xff] %v354
                %v356 = vld [vmem:[%s346 + $0x40] sm:$0xff]
                %357 = vst [vmem:[%s347 + $0x20] sm:$0xff] %v356
                %v358 = vld [vmem:[%s346 + $0x48] sm:$0xff]
                %359 = vst [vmem:[%s347 + $0x28] sm:$0xff] %v358
                %v360 = vld [vmem:[%s346 + $0x60] sm:$0xff]
                %361 = vst [vmem:[%s347 + $0x30] sm:$0xff] %v360
                %v362 = vld [vmem:[%s346 + $0x68] sm:$0xff]
                %363 = vst [vmem:[%s347 + $0x38] sm:$0xff] %v362
                %v364 = vld [vmem:[%s346 + $0x80] sm:$0xff]
                %365 = vst [vmem:[%s347 + $0x40] sm:$0xff] %v364
                %v366 = vld [vmem:[%s346 + $0x88] sm:$0xff]
                %367 = vst [vmem:[%s347 + $0x48] sm:$0xff] %v366
                %v368 = vld [vmem:[%s346 + $0xa0] sm:$0xff]
                %369 = vst [vmem:[%s347 + $0x50] sm:$0xff] %v368
                %v370 = vld [vmem:[%s346 + $0xa8] sm:$0xff]
                %371 = vst [vmem:[%s347 + $0x58] sm:$0xff] %v370
                %v372 = vld [vmem:[%s346 + $0xc0] sm:$0xff]
                %373 = vst [vmem:[%s347 + $0x60] sm:$0xff] %v372
                %v374 = vld [vmem:[%s346 + $0xc8] sm:$0xff]
                %375 = vst [vmem:[%s347 + $0x68] sm:$0xff] %v374
                %v376 = vld [vmem:[%s346 + $0xe0] sm:$0xff]
                %377 = vst [vmem:[%s347 + $0x70] sm:$0xff] %v376
                %v378 = vld [vmem:[%s346 + $0xe8] sm:$0xff]
                %379 = vst [vmem:[%s347 + $0x78] sm:$0xff] %v378
                %v380 = vld [vmem:[%s346 + $0x100] sm:$0xff]
                %381 = vst [vmem:[%s347 + $0x80] sm:$0xff] %v380
                %v382 = vld [vmem:[%s346 + $0x108] sm:$0xff]
                %383 = vst [vmem:[%s347 + $0x88] sm:$0xff] %v382
                %v384 = vld [vmem:[%s346 + $0x120] sm:$0xff]
                %385 = vst [vmem:[%s347 + $0x90] sm:$0xff] %v384
                %v386 = vld [vmem:[%s346 + $0x128] sm:$0xff]
                %387 = vst [vmem:[%s347 + $0x98] sm:$0xff] %v386
                %v388 = vld [vmem:[%s346 + $0x140] sm:$0xff]
                %389 = vst [vmem:[%s347 + $0xa0] sm:$0xff] %v388
                %v390 = vld [vmem:[%s346 + $0x148] sm:$0xff]
                %391 = vst [vmem:[%s347 + $0xa8] sm:$0xff] %v390
                %v392 = vld [vmem:[%s346 + $0x160] sm:$0xff]
                %393 = vst [vmem:[%s347 + $0xb0] sm:$0xff] %v392
                %v394 = vld [vmem:[%s346 + $0x168] sm:$0xff]
                %395 = vst [vmem:[%s347 + $0xb8] sm:$0xff] %v394
                %v396 = vld [vmem:[%s346 + $0x180] sm:$0xff]
                %397 = vst [vmem:[%s347 + $0xc0] sm:$0xff] %v396
                %v398 = vld [vmem:[%s346 + $0x188] sm:$0xff]
                %399 = vst [vmem:[%s347 + $0xc8] sm:$0xff] %v398
                %v400 = vld [vmem:[%s346 + $0x1a0] sm:$0xff]
                %401 = vst [vmem:[%s347 + $0xd0] sm:$0xff] %v400
                %v402 = vld [vmem:[%s346 + $0x1a8] sm:$0xff]
                %403 = vst [vmem:[%s347 + $0xd8] sm:$0xff] %v402
                %v404 = vld [vmem:[%s346 + $0x1c0] sm:$0xff]
                %405 = vst [vmem:[%s347 + $0xe0] sm:$0xff] %v404
                %v406 = vld [vmem:[%s346 + $0x1c8] sm:$0xff]
                %407 = vst [vmem:[%s347 + $0xe8] sm:$0xff] %v406
                %v408 = vld [vmem:[%s346 + $0x1e0] sm:$0xff]
                %409 = vst [vmem:[%s347 + $0xf0] sm:$0xff] %v408
                %v410 = vld [vmem:[%s346 + $0x1e8] sm:$0xff]
                %411 = vst [vmem:[%s347 + $0xf8] sm:$0xff] %v410
              $region64: #{fno_rnn_2d_forward.18} parent=58 // loop_footer
                %s345 = sadd.s32 1, %s341
              $region65: #{fno_rnn_2d_forward.18} parent=58 // loop_footer_branch
                %340 = sbr.rel target = $region61
              $region66: #{fno_rnn_2d_forward.18} parent=58 // loop_exit
                _
            $region59: #{fno_rnn_2d_forward.18} parent=54 // pred_fallthru
              _
            // Predicated region
            $region67: #{fno_rnn_2d_forward.18} parent=54 // pred_check
              _
            $region68: #{fno_rnn_2d_forward.18} parent=54 // pred_check_branch
              %413 = sbr.rel target = $region70
            $region69: #{fno_rnn_2d_forward.18} parent=54 // pred_region
              _
            $region70: #{fno_rnn_2d_forward.18} parent=54 // pred_fallthru
              _
          $region55: #{fno_rnn_2d_forward.18} parent=50 // pred_fallthru
            _
          %414 = vnop
        $region51: #{fno_rnn_2d_forward.18} parent=23 // pred_fallthru
          _
        // Predicated region
        $region71: #{fno_rnn_2d_forward.18} parent=23 // pred_check
          %p415 = pneg %p128
        $region72: #{fno_rnn_2d_forward.18} parent=23 // pred_check_branch
          %417 = sbr.rel (%p415) target = $region74
        $region73: #{fno_rnn_2d_forward.18} parent=23 // pred_region
          %p418 = scmp.lt.s32.totalorder %s14, 1
          %s419 = scalar_select %p418, %s14, 1
          %s420 = smul.addr %s419, 2
          %s421 = smul.addr %s420, 8
          %s422 = scalar_lea.vmem %s4, %s421
        $region74: #{fno_rnn_2d_forward.18} parent=23 // pred_fallthru
          _
        // Predicated region
        $region75: #{fno_rnn_2d_forward.18} parent=23 // pred_check
          %p423 = pneg %p154
        $region76: #{fno_rnn_2d_forward.18} parent=23 // pred_check_branch
          %425 = sbr.rel (%p423) target = $region78
        $region77: #{fno_rnn_2d_forward.18} parent=23 // pred_region
          %p426 = scmp.lt.s32.totalorder %s14, 1
          %s427 = scalar_select %p426, %s14, 1
          %s428 = smul.addr %s427, 2
          %s429 = smul.addr %s428, 8
          %s430 = scalar_lea.vmem %s5, %s429
        $region78: #{fno_rnn_2d_forward.18} parent=23 // pred_fallthru
          _
      $region24: #{fno_rnn_2d_forward.18} parent=5 // pred_fallthru
        _
      %p431 = scmp.le.s32.totalorder 1, %s14
      %p432 = scmp.lt.s32.totalorder %s14, 3
      %p433 = pnand %p431, %p432
      %p434 = pneg %p433
      // Predicated region
      $region79: #{fno_rnn_2d_forward.18} parent=5 // pred_check
        _
      $region80: #{fno_rnn_2d_forward.18} parent=5 // pred_check_branch
        %436 = sbr.rel (%p433) target = $region82
      $region81: #{fno_rnn_2d_forward.18} parent=5 // pred_region
        %s437 = ssub.s32 %s14, 1
        %s438 = sand.u32 %s69, 1
        %s439 = sand.u32 %s69, 1
        %s440 = smul.addr %s439, 256
        %s441 = scalar_lea.vmem [#allocation2], %s440
        // Predicated region
        $region83: #{fno_rnn_2d_forward.18} parent=81 // pred_check
          %p442 = pneg %p82
        $region84: #{fno_rnn_2d_forward.18} parent=81 // pred_check_branch
          %444 = sbr.rel (%p442) target = $region86
        $region85: #{fno_rnn_2d_forward.18} parent=81 // pred_region
          _
        $region86: #{fno_rnn_2d_forward.18} parent=81 // pred_fallthru
          _
        %s445 = sand.u32 %s95, 1
        %s446 = sand.u32 %s95, 1
        %s447 = smul.addr %s446, 256
        %s448 = scalar_lea.vmem [#allocation3], %s447
        // Predicated region
        $region87: #{fno_rnn_2d_forward.18} parent=81 // pred_check
          %p449 = pneg %p108
        $region88: #{fno_rnn_2d_forward.18} parent=81 // pred_check_branch
          %451 = sbr.rel (%p449) target = $region90
        $region89: #{fno_rnn_2d_forward.18} parent=81 // pred_region
          _
        $region90: #{fno_rnn_2d_forward.18} parent=81 // pred_fallthru
          _
        %p452 = pneg %p35
        %p453 = pneg %p32
        %p454 = pneg %p56
        %p455 = pneg %p53
        %s456 = sand.u32 %s69, 1
        %s457 = sand.u32 %s69, 1
        %s458 = smul.addr %s457, 256
        %s459 = scalar_lea.vmem [#allocation2], %s458
        %p460 = pneg %p82
        %p461 = pneg %p79
        %s462 = sand.u32 %s95, 1
        %s463 = sand.u32 %s95, 1
        %s464 = smul.addr %s463, 256
        %s465 = scalar_lea.vmem [#allocation3], %s464
        %p466 = pneg %p108
        %p467 = pneg %p105
        %p468 = scmp.lt.s32.totalorder %s19, 1
        %s469 = scalar_select %p468, %s19, 1
        %s470 = smul.addr %s469, 2
        %s471 = smul.addr %s470, 8
        %s472 = scalar_lea.vmem %s4, %s471
        %p473 = pneg %p134
        %p474 = pneg %p131
        %p475 = scmp.lt.s32.totalorder %s19, 1
        %s476 = scalar_select %p475, %s19, 1
        %s477 = smul.addr %s476, 2
        %s478 = smul.addr %s477, 8
        %s479 = scalar_lea.vmem %s5, %s478
        %p480 = pneg %p160
        %p481 = pneg %p157
        %p482 = pneg %p186
        %p483 = pneg %p183
        %s484 = sand.u32 %s173, 1
        %s485 = sand.u32 %s173, 1
        %s486 = smul.addr %s485, 32
        %s487 = scalar_lea.vmem [#allocation4], %s486
        %p488 = pneg %p212
        %p489 = pneg %p209
        %s490 = sand.u32 %s199, 1
        %s491 = sand.u32 %s199, 1
        %s492 = smul.addr %s491, 32
        %s493 = scalar_lea.vmem [#allocation5], %s492
        %p494 = scmp.lt.s32.totalorder %s19, 1
        %s495 = scalar_select %p494, %s19, 1
        %s496 = smul.addr %s495, 2
        %s497 = smul.addr %s496, 8
        %s498 = scalar_lea.vmem %s4, %s497
        %p499 = scmp.lt.s32.totalorder %s19, 1
        %s500 = scalar_select %p499, %s19, 1
        %s501 = smul.addr %s500, 2
        %s502 = smul.addr %s501, 8
        %s503 = scalar_lea.vmem %s5, %s502
        %v504 = vld [vmem:[%s0] sm:$0xff]
        %v505 = vld [vmem:[%s0 + $0x8] sm:$0xff]
        %v506 = vld [vmem:[%s0 + $0x10] sm:$0xff]
        %v507 = vld [vmem:[%s0 + $0x18] sm:$0xff]
        %v508 = vld [vmem:[%s0 + $0x20] sm:$0xff]
        %v509 = vld [vmem:[%s0 + $0x28] sm:$0xff]
        %v510 = vld [vmem:[%s0 + $0x30] sm:$0xff]
        %v511 = vld [vmem:[%s0 + $0x38] sm:$0xff]
        %v520 = vrot.slane %v505, 7
        %v521 = vrot.slane %v507, 7
        %v522 = vrot.slane %v509, 7
        %v523 = vrot.slane %v511, 7
        %vm524 = vcmask 1040384
        %v525 = vsel %vm524, %v504, %v520
        %vm526 = vcmask 1041409
        %v527 = vsel %vm526, %v504, %v520
        %v528 = vrot.slane %v527, 1
        %vm529 = vcmask 1042434
        %v530 = vsel %vm529, %v504, %v520
        %v531 = vrot.slane %v530, 2
        %vm532 = vcmask 1043459
        %v533 = vsel %vm532, %v504, %v520
        %v534 = vrot.slane %v533, 3
        %vm535 = vcmask 1044484
        %v536 = vsel %vm535, %v504, %v520
        %v537 = vrot.slane %v536, 4
        %vm538 = vcmask 1045509
        %v539 = vsel %vm538, %v504, %v520
        %v540 = vrot.slane %v539, 5
        %vm541 = vcmask 1046534
        %v542 = vsel %vm541, %v504, %v520
        %v543 = vrot.slane %v542, 6
        %vm544 = vcmask 1046528
        %v545 = vsel %vm544, %v520, %v504
        %v546 = vrot.slane %v545, 7
        %v547 = vsel %vm524, %v506, %v521
        %v548 = vsel %vm526, %v506, %v521
        %v549 = vrot.slane %v548, 1
        %v550 = vsel %vm529, %v506, %v521
        %v551 = vrot.slane %v550, 2
        %v552 = vsel %vm532, %v506, %v521
        %v553 = vrot.slane %v552, 3
        %v554 = vsel %vm535, %v506, %v521
        %v555 = vrot.slane %v554, 4
        %v556 = vsel %vm538, %v506, %v521
        %v557 = vrot.slane %v556, 5
        %v558 = vsel %vm541, %v506, %v521
        %v559 = vrot.slane %v558, 6
        %v560 = vsel %vm544, %v521, %v506
        %v561 = vrot.slane %v560, 7
        %v562 = vsel %vm524, %v508, %v522
        %v563 = vsel %vm526, %v508, %v522
        %v564 = vrot.slane %v563, 1
        %v565 = vsel %vm529, %v508, %v522
        %v566 = vrot.slane %v565, 2
        %v567 = vsel %vm532, %v508, %v522
        %v568 = vrot.slane %v567, 3
        %v569 = vsel %vm535, %v508, %v522
        %v570 = vrot.slane %v569, 4
        %v571 = vsel %vm538, %v508, %v522
        %v572 = vrot.slane %v571, 5
        %v573 = vsel %vm541, %v508, %v522
        %v574 = vrot.slane %v573, 6
        %v575 = vsel %vm544, %v522, %v508
        %v576 = vrot.slane %v575, 7
        %v577 = vsel %vm524, %v510, %v523
        %v578 = vsel %vm526, %v510, %v523
        %v579 = vrot.slane %v578, 1
        %v580 = vsel %vm529, %v510, %v523
        %v581 = vrot.slane %v580, 2
        %v582 = vsel %vm532, %v510, %v523
        %v583 = vrot.slane %v582, 3
        %v584 = vsel %vm535, %v510, %v523
        %v585 = vrot.slane %v584, 4
        %v586 = vsel %vm538, %v510, %v523
        %v587 = vrot.slane %v586, 5
        %v588 = vsel %vm541, %v510, %v523
        %v589 = vrot.slane %v588, 6
        %v590 = vsel %vm544, %v523, %v510
        %v591 = vrot.slane %v590, 7
        %v624 = vld [vmem:[%s1] sm:$0xff]
        %v625 = vld [vmem:[%s1 + $0x8] sm:$0xff]
        %v626 = vld [vmem:[%s1 + $0x10] sm:$0xff]
        %v627 = vld [vmem:[%s1 + $0x18] sm:$0xff]
        %v628 = vld [vmem:[%s1 + $0x20] sm:$0xff]
        %v629 = vld [vmem:[%s1 + $0x28] sm:$0xff]
        %v630 = vld [vmem:[%s1 + $0x30] sm:$0xff]
        %v631 = vld [vmem:[%s1 + $0x38] sm:$0xff]
        %v640 = vrot.slane %v625, 7
        %v641 = vrot.slane %v627, 7
        %v642 = vrot.slane %v629, 7
        %v643 = vrot.slane %v631, 7
        %v644 = vsel %vm524, %v624, %v640
        %v645 = vsel %vm526, %v624, %v640
        %v646 = vrot.slane %v645, 1
        %v647 = vsel %vm529, %v624, %v640
        %v648 = vrot.slane %v647, 2
        %v649 = vsel %vm532, %v624, %v640
        %v650 = vrot.slane %v649, 3
        %v651 = vsel %vm535, %v624, %v640
        %v652 = vrot.slane %v651, 4
        %v653 = vsel %vm538, %v624, %v640
        %v654 = vrot.slane %v653, 5
        %v655 = vsel %vm541, %v624, %v640
        %v656 = vrot.slane %v655, 6
        %v657 = vsel %vm544, %v640, %v624
        %v658 = vrot.slane %v657, 7
        %v659 = vsel %vm524, %v626, %v641
        %v660 = vsel %vm526, %v626, %v641
        %v661 = vrot.slane %v660, 1
        %v662 = vsel %vm529, %v626, %v641
        %v663 = vrot.slane %v662, 2
        %v664 = vsel %vm532, %v626, %v641
        %v665 = vrot.slane %v664, 3
        %v666 = vsel %vm535, %v626, %v641
        %v667 = vrot.slane %v666, 4
        %v668 = vsel %vm538, %v626, %v641
        %v669 = vrot.slane %v668, 5
        %v670 = vsel %vm541, %v626, %v641
        %v671 = vrot.slane %v670, 6
        %v672 = vsel %vm544, %v641, %v626
        %v673 = vrot.slane %v672, 7
        %v674 = vsel %vm524, %v628, %v642
        %v675 = vsel %vm526, %v628, %v642
        %v676 = vrot.slane %v675, 1
        %v677 = vsel %vm529, %v628, %v642
        %v678 = vrot.slane %v677, 2
        %v679 = vsel %vm532, %v628, %v642
        %v680 = vrot.slane %v679, 3
        %v681 = vsel %vm535, %v628, %v642
        %v682 = vrot.slane %v681, 4
        %v683 = vsel %vm538, %v628, %v642
        %v684 = vrot.slane %v683, 5
        %v685 = vsel %vm541, %v628, %v642
        %v686 = vrot.slane %v685, 6
        %v687 = vsel %vm544, %v642, %v628
        %v688 = vrot.slane %v687, 7
        %v689 = vsel %vm524, %v630, %v643
        %v690 = vsel %vm526, %v630, %v643
        %v691 = vrot.slane %v690, 1
        %v692 = vsel %vm529, %v630, %v643
        %v693 = vrot.slane %v692, 2
        %v694 = vsel %vm532, %v630, %v643
        %v695 = vrot.slane %v694, 3
        %v696 = vsel %vm535, %v630, %v643
        %v697 = vrot.slane %v696, 4
        %v698 = vsel %vm538, %v630, %v643
        %v699 = vrot.slane %v698, 5
        %v700 = vsel %vm541, %v630, %v643
        %v701 = vrot.slane %v700, 6
        %v702 = vsel %vm544, %v643, %v630
        %v703 = vrot.slane %v702, 7
        %v736 = vld [vmem:[%s441] sm:$0xff]
        %v737 = vld [vmem:[%s441 + $0x8] sm:$0xff]
        %v738 = vld [vmem:[%s441 + $0x10] sm:$0xff]
        %v739 = vld [vmem:[%s441 + $0x18] sm:$0xff]
        %v740 = vld [vmem:[%s441 + $0x20] sm:$0xff]
        %v741 = vld [vmem:[%s441 + $0x28] sm:$0xff]
        %v742 = vld [vmem:[%s441 + $0x30] sm:$0xff]
        %v743 = vld [vmem:[%s441 + $0x38] sm:$0xff]
        %v744 = vld [vmem:[%s441 + $0x40] sm:$0xff]
        %v745 = vld [vmem:[%s441 + $0x48] sm:$0xff]
        %v746 = vld [vmem:[%s441 + $0x50] sm:$0xff]
        %v747 = vld [vmem:[%s441 + $0x58] sm:$0xff]
        %v748 = vld [vmem:[%s441 + $0x60] sm:$0xff]
        %v749 = vld [vmem:[%s441 + $0x68] sm:$0xff]
        %v750 = vld [vmem:[%s441 + $0x70] sm:$0xff]
        %v751 = vld [vmem:[%s441 + $0x78] sm:$0xff]
        %v752 = vld [vmem:[%s441 + $0x80] sm:$0xff]
        %v753 = vld [vmem:[%s441 + $0x88] sm:$0xff]
        %v754 = vld [vmem:[%s441 + $0x90] sm:$0xff]
        %v755 = vld [vmem:[%s441 + $0x98] sm:$0xff]
        %v756 = vld [vmem:[%s441 + $0xa0] sm:$0xff]
        %v757 = vld [vmem:[%s441 + $0xa8] sm:$0xff]
        %v758 = vld [vmem:[%s441 + $0xb0] sm:$0xff]
        %v759 = vld [vmem:[%s441 + $0xb8] sm:$0xff]
        %v760 = vld [vmem:[%s441 + $0xc0] sm:$0xff]
        %v761 = vld [vmem:[%s441 + $0xc8] sm:$0xff]
        %v762 = vld [vmem:[%s441 + $0xd0] sm:$0xff]
        %v763 = vld [vmem:[%s441 + $0xd8] sm:$0xff]
        %v764 = vld [vmem:[%s441 + $0xe0] sm:$0xff]
        %v765 = vld [vmem:[%s441 + $0xe8] sm:$0xff]
        %v766 = vld [vmem:[%s441 + $0xf0] sm:$0xff]
        %v767 = vld [vmem:[%s441 + $0xf8] sm:$0xff]
        %v768 = vld [vmem:[%s448] sm:$0xff]
        %v769 = vld [vmem:[%s448 + $0x8] sm:$0xff]
        %v770 = vld [vmem:[%s448 + $0x10] sm:$0xff]
        %v771 = vld [vmem:[%s448 + $0x18] sm:$0xff]
        %v772 = vld [vmem:[%s448 + $0x20] sm:$0xff]
        %v773 = vld [vmem:[%s448 + $0x28] sm:$0xff]
        %v774 = vld [vmem:[%s448 + $0x30] sm:$0xff]
        %v775 = vld [vmem:[%s448 + $0x38] sm:$0xff]
        %v776 = vld [vmem:[%s448 + $0x40] sm:$0xff]
        %v777 = vld [vmem:[%s448 + $0x48] sm:$0xff]
        %v778 = vld [vmem:[%s448 + $0x50] sm:$0xff]
        %v779 = vld [vmem:[%s448 + $0x58] sm:$0xff]
        %v780 = vld [vmem:[%s448 + $0x60] sm:$0xff]
        %v781 = vld [vmem:[%s448 + $0x68] sm:$0xff]
        %v782 = vld [vmem:[%s448 + $0x70] sm:$0xff]
        %v783 = vld [vmem:[%s448 + $0x78] sm:$0xff]
        %v784 = vld [vmem:[%s448 + $0x80] sm:$0xff]
        %v785 = vld [vmem:[%s448 + $0x88] sm:$0xff]
        %v786 = vld [vmem:[%s448 + $0x90] sm:$0xff]
        %v787 = vld [vmem:[%s448 + $0x98] sm:$0xff]
        %v788 = vld [vmem:[%s448 + $0xa0] sm:$0xff]
        %v789 = vld [vmem:[%s448 + $0xa8] sm:$0xff]
        %v790 = vld [vmem:[%s448 + $0xb0] sm:$0xff]
        %v791 = vld [vmem:[%s448 + $0xb8] sm:$0xff]
        %v792 = vld [vmem:[%s448 + $0xc0] sm:$0xff]
        %v793 = vld [vmem:[%s448 + $0xc8] sm:$0xff]
        %v794 = vld [vmem:[%s448 + $0xd0] sm:$0xff]
        %v795 = vld [vmem:[%s448 + $0xd8] sm:$0xff]
        %v796 = vld [vmem:[%s448 + $0xe0] sm:$0xff]
        %v797 = vld [vmem:[%s448 + $0xe8] sm:$0xff]
        %v798 = vld [vmem:[%s448 + $0xf0] sm:$0xff]
        %v799 = vld [vmem:[%s448 + $0xf8] sm:$0xff]
        %v800 = vperm.slane %v525, 0
        %v801 = vperm.slane %v525, 1
        %v802 = vperm.slane %v528, 0
        %v803 = vperm.slane %v528, 1
        %v804 = vperm.slane %v531, 0
        %v805 = vperm.slane %v531, 1
        %v806 = vperm.slane %v534, 0
        %v807 = vperm.slane %v534, 1
        %v808 = vperm.slane %v537, 0
        %v809 = vperm.slane %v537, 1
        %v810 = vperm.slane %v540, 0
        %v811 = vperm.slane %v540, 1
        %v812 = vperm.slane %v543, 0
        %v813 = vperm.slane %v543, 1
        %v814 = vperm.slane %v546, 0
        %v815 = vperm.slane %v546, 1
        %v816 = vperm.slane %v547, 0
        %v817 = vperm.slane %v547, 1
        %v818 = vperm.slane %v549, 0
        %v819 = vperm.slane %v549, 1
        %v820 = vperm.slane %v551, 0
        %v821 = vperm.slane %v551, 1
        %v822 = vperm.slane %v553, 0
        %v823 = vperm.slane %v553, 1
        %v824 = vperm.slane %v555, 0
        %v825 = vperm.slane %v555, 1
        %v826 = vperm.slane %v557, 0
        %v827 = vperm.slane %v557, 1
        %v828 = vperm.slane %v559, 0
        %v829 = vperm.slane %v559, 1
        %v830 = vperm.slane %v561, 0
        %v831 = vperm.slane %v561, 1
        %v832 = vperm.slane %v562, 0
        %v833 = vperm.slane %v562, 1
        %v834 = vperm.slane %v564, 0
        %v835 = vperm.slane %v564, 1
        %v836 = vperm.slane %v566, 0
        %v837 = vperm.slane %v566, 1
        %v838 = vperm.slane %v568, 0
        %v839 = vperm.slane %v568, 1
        %v840 = vperm.slane %v570, 0
        %v841 = vperm.slane %v570, 1
        %v842 = vperm.slane %v572, 0
        %v843 = vperm.slane %v572, 1
        %v844 = vperm.slane %v574, 0
        %v845 = vperm.slane %v574, 1
        %v846 = vperm.slane %v576, 0
        %v847 = vperm.slane %v576, 1
        %v848 = vperm.slane %v577, 0
        %v849 = vperm.slane %v577, 1
        %v850 = vperm.slane %v579, 0
        %v851 = vperm.slane %v579, 1
        %v852 = vperm.slane %v581, 0
        %v853 = vperm.slane %v581, 1
        %v854 = vperm.slane %v583, 0
        %v855 = vperm.slane %v583, 1
        %v856 = vperm.slane %v585, 0
        %v857 = vperm.slane %v585, 1
        %v858 = vperm.slane %v587, 0
        %v859 = vperm.slane %v587, 1
        %v860 = vperm.slane %v589, 0
        %v861 = vperm.slane %v589, 1
        %v862 = vperm.slane %v591, 0
        %v863 = vperm.slane %v591, 1
        %v928 = vmul.f32 %v800, %v736
        %v929 = vmul.f32 %v801, %v737
        %v930 = vmul.f32 %v802, %v738
        %v931 = vmul.f32 %v803, %v739
        %v932 = vmul.f32 %v804, %v740
        %v933 = vmul.f32 %v805, %v741
        %v934 = vmul.f32 %v806, %v742
        %v935 = vmul.f32 %v807, %v743
        %v936 = vmul.f32 %v808, %v744
        %v937 = vmul.f32 %v809, %v745
        %v938 = vmul.f32 %v810, %v746
        %v939 = vmul.f32 %v811, %v747
        %v940 = vmul.f32 %v812, %v748
        %v941 = vmul.f32 %v813, %v749
        %v942 = vmul.f32 %v814, %v750
        %v943 = vmul.f32 %v815, %v751
        %v944 = vmul.f32 %v816, %v752
        %v945 = vmul.f32 %v817, %v753
        %v946 = vmul.f32 %v818, %v754
        %v947 = vmul.f32 %v819, %v755
        %v948 = vmul.f32 %v820, %v756
        %v949 = vmul.f32 %v821, %v757
        %v950 = vmul.f32 %v822, %v758
        %v951 = vmul.f32 %v823, %v759
        %v952 = vmul.f32 %v824, %v760
        %v953 = vmul.f32 %v825, %v761
        %v954 = vmul.f32 %v826, %v762
        %v955 = vmul.f32 %v827, %v763
        %v956 = vmul.f32 %v828, %v764
        %v957 = vmul.f32 %v829, %v765
        %v958 = vmul.f32 %v830, %v766
        %v959 = vmul.f32 %v831, %v767
        %v960 = vmul.f32 %v832, %v736
        %v961 = vmul.f32 %v833, %v737
        %v962 = vmul.f32 %v834, %v738
        %v963 = vmul.f32 %v835, %v739
        %v964 = vmul.f32 %v836, %v740
        %v965 = vmul.f32 %v837, %v741
        %v966 = vmul.f32 %v838, %v742
        %v967 = vmul.f32 %v839, %v743
        %v968 = vmul.f32 %v840, %v744
        %v969 = vmul.f32 %v841, %v745
        %v970 = vmul.f32 %v842, %v746
        %v971 = vmul.f32 %v843, %v747
        %v972 = vmul.f32 %v844, %v748
        %v973 = vmul.f32 %v845, %v749
        %v974 = vmul.f32 %v846, %v750
        %v975 = vmul.f32 %v847, %v751
        %v976 = vmul.f32 %v848, %v752
        %v977 = vmul.f32 %v849, %v753
        %v978 = vmul.f32 %v850, %v754
        %v979 = vmul.f32 %v851, %v755
        %v980 = vmul.f32 %v852, %v756
        %v981 = vmul.f32 %v853, %v757
        %v982 = vmul.f32 %v854, %v758
        %v983 = vmul.f32 %v855, %v759
        %v984 = vmul.f32 %v856, %v760
        %v985 = vmul.f32 %v857, %v761
        %v986 = vmul.f32 %v858, %v762
        %v987 = vmul.f32 %v859, %v763
        %v988 = vmul.f32 %v860, %v764
        %v989 = vmul.f32 %v861, %v765
        %v990 = vmul.f32 %v862, %v766
        %v991 = vmul.f32 %v863, %v767
        %v992 = vadd.f32 %v928, %v930
        %v993 = vadd.f32 %v992, %v932
        %v994 = vadd.f32 %v993, %v934
        %v995 = vadd.f32 %v994, %v936
        %v996 = vadd.f32 %v995, %v938
        %v997 = vadd.f32 %v996, %v940
        %v998 = vadd.f32 %v997, %v942
        %v999 = vadd.f32 %v998, %v944
        %v1000 = vadd.f32 %v999, %v946
        %v1001 = vadd.f32 %v1000, %v948
        %v1002 = vadd.f32 %v1001, %v950
        %v1003 = vadd.f32 %v1002, %v952
        %v1004 = vadd.f32 %v1003, %v954
        %v1005 = vadd.f32 %v1004, %v956
        %v1006 = vadd.f32 %v1005, %v958
        %vm1007 = vcmask 130048
        %v1008 = vsel %vm1007, %v929, 0.0
        %v1009 = vsel %vm1007, %v931, 0.0
        %v1010 = vadd.f32 %v1008, %v1009
        %v1011 = vsel %vm1007, %v933, 0.0
        %v1012 = vadd.f32 %v1010, %v1011
        %v1013 = vsel %vm1007, %v935, 0.0
        %v1014 = vadd.f32 %v1012, %v1013
        %v1015 = vsel %vm1007, %v937, 0.0
        %v1016 = vadd.f32 %v1014, %v1015
        %v1017 = vsel %vm1007, %v939, 0.0
        %v1018 = vadd.f32 %v1016, %v1017
        %v1019 = vsel %vm1007, %v941, 0.0
        %v1020 = vadd.f32 %v1018, %v1019
        %v1021 = vsel %vm1007, %v943, 0.0
        %v1022 = vadd.f32 %v1020, %v1021
        %v1023 = vsel %vm1007, %v945, 0.0
        %v1024 = vadd.f32 %v1022, %v1023
        %v1025 = vsel %vm1007, %v947, 0.0
        %v1026 = vadd.f32 %v1024, %v1025
        %v1027 = vsel %vm1007, %v949, 0.0
        %v1028 = vadd.f32 %v1026, %v1027
        %v1029 = vsel %vm1007, %v951, 0.0
        %v1030 = vadd.f32 %v1028, %v1029
        %v1031 = vsel %vm1007, %v953, 0.0
        %v1032 = vadd.f32 %v1030, %v1031
        %v1033 = vsel %vm1007, %v955, 0.0
        %v1034 = vadd.f32 %v1032, %v1033
        %v1035 = vsel %vm1007, %v957, 0.0
        %v1036 = vadd.f32 %v1034, %v1035
        %v1037 = vsel %vm1007, %v959, 0.0
        %v1038 = vadd.f32 %v1036, %v1037
        %v1039 = vadd.f32 %v960, %v962
        %v1040 = vadd.f32 %v1039, %v964
        %v1041 = vadd.f32 %v1040, %v966
        %v1042 = vadd.f32 %v1041, %v968
        %v1043 = vadd.f32 %v1042, %v970
        %v1044 = vadd.f32 %v1043, %v972
        %v1045 = vadd.f32 %v1044, %v974
        %v1046 = vadd.f32 %v1045, %v976
        %v1047 = vadd.f32 %v1046, %v978
        %v1048 = vadd.f32 %v1047, %v980
        %v1049 = vadd.f32 %v1048, %v982
        %v1050 = vadd.f32 %v1049, %v984
        %v1051 = vadd.f32 %v1050, %v986
        %v1052 = vadd.f32 %v1051, %v988
        %v1053 = vadd.f32 %v1052, %v990
        %v1054 = vsel %vm1007, %v961, 0.0
        %v1055 = vsel %vm1007, %v963, 0.0
        %v1056 = vadd.f32 %v1054, %v1055
        %v1057 = vsel %vm1007, %v965, 0.0
        %v1058 = vadd.f32 %v1056, %v1057
        %v1059 = vsel %vm1007, %v967, 0.0
        %v1060 = vadd.f32 %v1058, %v1059
        %v1061 = vsel %vm1007, %v969, 0.0
        %v1062 = vadd.f32 %v1060, %v1061
        %v1063 = vsel %vm1007, %v971, 0.0
        %v1064 = vadd.f32 %v1062, %v1063
        %v1065 = vsel %vm1007, %v973, 0.0
        %v1066 = vadd.f32 %v1064, %v1065
        %v1067 = vsel %vm1007, %v975, 0.0
        %v1068 = vadd.f32 %v1066, %v1067
        %v1069 = vsel %vm1007, %v977, 0.0
        %v1070 = vadd.f32 %v1068, %v1069
        %v1071 = vsel %vm1007, %v979, 0.0
        %v1072 = vadd.f32 %v1070, %v1071
        %v1073 = vsel %vm1007, %v981, 0.0
        %v1074 = vadd.f32 %v1072, %v1073
        %v1075 = vsel %vm1007, %v983, 0.0
        %v1076 = vadd.f32 %v1074, %v1075
        %v1077 = vsel %vm1007, %v985, 0.0
        %v1078 = vadd.f32 %v1076, %v1077
        %v1079 = vsel %vm1007, %v987, 0.0
        %v1080 = vadd.f32 %v1078, %v1079
        %v1081 = vsel %vm1007, %v989, 0.0
        %v1082 = vadd.f32 %v1080, %v1081
        %v1083 = vsel %vm1007, %v991, 0.0
        %v1084 = vadd.f32 %v1082, %v1083
        %v1085 = vperm.slane %v644, 0
        %v1086 = vperm.slane %v644, 1
        %v1087 = vperm.slane %v646, 0
        %v1088 = vperm.slane %v646, 1
        %v1089 = vperm.slane %v648, 0
        %v1090 = vperm.slane %v648, 1
        %v1091 = vperm.slane %v650, 0
        %v1092 = vperm.slane %v650, 1
        %v1093 = vperm.slane %v652, 0
        %v1094 = vperm.slane %v652, 1
        %v1095 = vperm.slane %v654, 0
        %v1096 = vperm.slane %v654, 1
        %v1097 = vperm.slane %v656, 0
        %v1098 = vperm.slane %v656, 1
        %v1099 = vperm.slane %v658, 0
        %v1100 = vperm.slane %v658, 1
        %v1101 = vperm.slane %v659, 0
        %v1102 = vperm.slane %v659, 1
        %v1103 = vperm.slane %v661, 0
        %v1104 = vperm.slane %v661, 1
        %v1105 = vperm.slane %v663, 0
        %v1106 = vperm.slane %v663, 1
        %v1107 = vperm.slane %v665, 0
        %v1108 = vperm.slane %v665, 1
        %v1109 = vperm.slane %v667, 0
        %v1110 = vperm.slane %v667, 1
        %v1111 = vperm.slane %v669, 0
        %v1112 = vperm.slane %v669, 1
        %v1113 = vperm.slane %v671, 0
        %v1114 = vperm.slane %v671, 1
        %v1115 = vperm.slane %v673, 0
        %v1116 = vperm.slane %v673, 1
        %v1117 = vperm.slane %v674, 0
        %v1118 = vperm.slane %v674, 1
        %v1119 = vperm.slane %v676, 0
        %v1120 = vperm.slane %v676, 1
        %v1121 = vperm.slane %v678, 0
        %v1122 = vperm.slane %v678, 1
        %v1123 = vperm.slane %v680, 0
        %v1124 = vperm.slane %v680, 1
        %v1125 = vperm.slane %v682, 0
        %v1126 = vperm.slane %v682, 1
        %v1127 = vperm.slane %v684, 0
        %v1128 = vperm.slane %v684, 1
        %v1129 = vperm.slane %v686, 0
        %v1130 = vperm.slane %v686, 1
        %v1131 = vperm.slane %v688, 0
        %v1132 = vperm.slane %v688, 1
        %v1133 = vperm.slane %v689, 0
        %v1134 = vperm.slane %v689, 1
        %v1135 = vperm.slane %v691, 0
        %v1136 = vperm.slane %v691, 1
        %v1137 = vperm.slane %v693, 0
        %v1138 = vperm.slane %v693, 1
        %v1139 = vperm.slane %v695, 0
        %v1140 = vperm.slane %v695, 1
        %v1141 = vperm.slane %v697, 0
        %v1142 = vperm.slane %v697, 1
        %v1143 = vperm.slane %v699, 0
        %v1144 = vperm.slane %v699, 1
        %v1145 = vperm.slane %v701, 0
        %v1146 = vperm.slane %v701, 1
        %v1147 = vperm.slane %v703, 0
        %v1148 = vperm.slane %v703, 1
        %v1213 = vmul.f32 %v1085, %v768
        %v1214 = vmul.f32 %v1086, %v769
        %v1215 = vmul.f32 %v1087, %v770
        %v1216 = vmul.f32 %v1088, %v771
        %v1217 = vmul.f32 %v1089, %v772
        %v1218 = vmul.f32 %v1090, %v773
        %v1219 = vmul.f32 %v1091, %v774
        %v1220 = vmul.f32 %v1092, %v775
        %v1221 = vmul.f32 %v1093, %v776
        %v1222 = vmul.f32 %v1094, %v777
        %v1223 = vmul.f32 %v1095, %v778
        %v1224 = vmul.f32 %v1096, %v779
        %v1225 = vmul.f32 %v1097, %v780
        %v1226 = vmul.f32 %v1098, %v781
        %v1227 = vmul.f32 %v1099, %v782
        %v1228 = vmul.f32 %v1100, %v783
        %v1229 = vmul.f32 %v1101, %v784
        %v1230 = vmul.f32 %v1102, %v785
        %v1231 = vmul.f32 %v1103, %v786
        %v1232 = vmul.f32 %v1104, %v787
        %v1233 = vmul.f32 %v1105, %v788
        %v1234 = vmul.f32 %v1106, %v789
        %v1235 = vmul.f32 %v1107, %v790
        %v1236 = vmul.f32 %v1108, %v791
        %v1237 = vmul.f32 %v1109, %v792
        %v1238 = vmul.f32 %v1110, %v793
        %v1239 = vmul.f32 %v1111, %v794
        %v1240 = vmul.f32 %v1112, %v795
        %v1241 = vmul.f32 %v1113, %v796
        %v1242 = vmul.f32 %v1114, %v797
        %v1243 = vmul.f32 %v1115, %v798
        %v1244 = vmul.f32 %v1116, %v799
        %v1245 = vmul.f32 %v1117, %v768
        %v1246 = vmul.f32 %v1118, %v769
        %v1247 = vmul.f32 %v1119, %v770
        %v1248 = vmul.f32 %v1120, %v771
        %v1249 = vmul.f32 %v1121, %v772
        %v1250 = vmul.f32 %v1122, %v773
        %v1251 = vmul.f32 %v1123, %v774
        %v1252 = vmul.f32 %v1124, %v775
        %v1253 = vmul.f32 %v1125, %v776
        %v1254 = vmul.f32 %v1126, %v777
        %v1255 = vmul.f32 %v1127, %v778
        %v1256 = vmul.f32 %v1128, %v779
        %v1257 = vmul.f32 %v1129, %v780
        %v1258 = vmul.f32 %v1130, %v781
        %v1259 = vmul.f32 %v1131, %v782
        %v1260 = vmul.f32 %v1132, %v783
        %v1261 = vmul.f32 %v1133, %v784
        %v1262 = vmul.f32 %v1134, %v785
        %v1263 = vmul.f32 %v1135, %v786
        %v1264 = vmul.f32 %v1136, %v787
        %v1265 = vmul.f32 %v1137, %v788
        %v1266 = vmul.f32 %v1138, %v789
        %v1267 = vmul.f32 %v1139, %v790
        %v1268 = vmul.f32 %v1140, %v791
        %v1269 = vmul.f32 %v1141, %v792
        %v1270 = vmul.f32 %v1142, %v793
        %v1271 = vmul.f32 %v1143, %v794
        %v1272 = vmul.f32 %v1144, %v795
        %v1273 = vmul.f32 %v1145, %v796
        %v1274 = vmul.f32 %v1146, %v797
        %v1275 = vmul.f32 %v1147, %v798
        %v1276 = vmul.f32 %v1148, %v799
        %v1277 = vadd.f32 %v1213, %v1215
        %v1278 = vadd.f32 %v1277, %v1217
        %v1279 = vadd.f32 %v1278, %v1219
        %v1280 = vadd.f32 %v1279, %v1221
        %v1281 = vadd.f32 %v1280, %v1223
        %v1282 = vadd.f32 %v1281, %v1225
        %v1283 = vadd.f32 %v1282, %v1227
        %v1284 = vadd.f32 %v1283, %v1229
        %v1285 = vadd.f32 %v1284, %v1231
        %v1286 = vadd.f32 %v1285, %v1233
        %v1287 = vadd.f32 %v1286, %v1235
        %v1288 = vadd.f32 %v1287, %v1237
        %v1289 = vadd.f32 %v1288, %v1239
        %v1290 = vadd.f32 %v1289, %v1241
        %v1291 = vadd.f32 %v1290, %v1243
        %v1292 = vsel %vm1007, %v1214, 0.0
        %v1293 = vsel %vm1007, %v1216, 0.0
        %v1294 = vadd.f32 %v1292, %v1293
        %v1295 = vsel %vm1007, %v1218, 0.0
        %v1296 = vadd.f32 %v1294, %v1295
        %v1297 = vsel %vm1007, %v1220, 0.0
        %v1298 = vadd.f32 %v1296, %v1297
        %v1299 = vsel %vm1007, %v1222, 0.0
        %v1300 = vadd.f32 %v1298, %v1299
        %v1301 = vsel %vm1007, %v1224, 0.0
        %v1302 = vadd.f32 %v1300, %v1301
        %v1303 = vsel %vm1007, %v1226, 0.0
        %v1304 = vadd.f32 %v1302, %v1303
        %v1305 = vsel %vm1007, %v1228, 0.0
        %v1306 = vadd.f32 %v1304, %v1305
        %v1307 = vsel %vm1007, %v1230, 0.0
        %v1308 = vadd.f32 %v1306, %v1307
        %v1309 = vsel %vm1007, %v1232, 0.0
        %v1310 = vadd.f32 %v1308, %v1309
        %v1311 = vsel %vm1007, %v1234, 0.0
        %v1312 = vadd.f32 %v1310, %v1311
        %v1313 = vsel %vm1007, %v1236, 0.0
        %v1314 = vadd.f32 %v1312, %v1313
        %v1315 = vsel %vm1007, %v1238, 0.0
        %v1316 = vadd.f32 %v1314, %v1315
        %v1317 = vsel %vm1007, %v1240, 0.0
        %v1318 = vadd.f32 %v1316, %v1317
        %v1319 = vsel %vm1007, %v1242, 0.0
        %v1320 = vadd.f32 %v1318, %v1319
        %v1321 = vsel %vm1007, %v1244, 0.0
        %v1322 = vadd.f32 %v1320, %v1321
        %v1323 = vadd.f32 %v1245, %v1247
        %v1324 = vadd.f32 %v1323, %v1249
        %v1325 = vadd.f32 %v1324, %v1251
        %v1326 = vadd.f32 %v1325, %v1253
        %v1327 = vadd.f32 %v1326, %v1255
        %v1328 = vadd.f32 %v1327, %v1257
        %v1329 = vadd.f32 %v1328, %v1259
        %v1330 = vadd.f32 %v1329, %v1261
        %v1331 = vadd.f32 %v1330, %v1263
        %v1332 = vadd.f32 %v1331, %v1265
        %v1333 = vadd.f32 %v1332, %v1267
        %v1334 = vadd.f32 %v1333, %v1269
        %v1335 = vadd.f32 %v1334, %v1271
        %v1336 = vadd.f32 %v1335, %v1273
        %v1337 = vadd.f32 %v1336, %v1275
        %v1338 = vsel %vm1007, %v1246, 0.0
        %v1339 = vsel %vm1007, %v1248, 0.0
        %v1340 = vadd.f32 %v1338, %v1339
        %v1341 = vsel %vm1007, %v1250, 0.0
        %v1342 = vadd.f32 %v1340, %v1341
        %v1343 = vsel %vm1007, %v1252, 0.0
        %v1344 = vadd.f32 %v1342, %v1343
        %v1345 = vsel %vm1007, %v1254, 0.0
        %v1346 = vadd.f32 %v1344, %v1345
        %v1347 = vsel %vm1007, %v1256, 0.0
        %v1348 = vadd.f32 %v1346, %v1347
        %v1349 = vsel %vm1007, %v1258, 0.0
        %v1350 = vadd.f32 %v1348, %v1349
        %v1351 = vsel %vm1007, %v1260, 0.0
        %v1352 = vadd.f32 %v1350, %v1351
        %v1353 = vsel %vm1007, %v1262, 0.0
        %v1354 = vadd.f32 %v1352, %v1353
        %v1355 = vsel %vm1007, %v1264, 0.0
        %v1356 = vadd.f32 %v1354, %v1355
        %v1357 = vsel %vm1007, %v1266, 0.0
        %v1358 = vadd.f32 %v1356, %v1357
        %v1359 = vsel %vm1007, %v1268, 0.0
        %v1360 = vadd.f32 %v1358, %v1359
        %v1361 = vsel %vm1007, %v1270, 0.0
        %v1362 = vadd.f32 %v1360, %v1361
        %v1363 = vsel %vm1007, %v1272, 0.0
        %v1364 = vadd.f32 %v1362, %v1363
        %v1365 = vsel %vm1007, %v1274, 0.0
        %v1366 = vadd.f32 %v1364, %v1365
        %v1367 = vsel %vm1007, %v1276, 0.0
        %v1368 = vadd.f32 %v1366, %v1367
        %v1369 = vadd.f32 %v525, %v644
        %v1370 = vadd.f32 %v528, %v646
        %v1371 = vadd.f32 %v531, %v648
        %v1372 = vadd.f32 %v534, %v650
        %v1373 = vadd.f32 %v537, %v652
        %v1374 = vadd.f32 %v540, %v654
        %v1375 = vadd.f32 %v543, %v656
        %v1376 = vadd.f32 %v546, %v658
        %v1377 = vadd.f32 %v547, %v659
        %v1378 = vadd.f32 %v549, %v661
        %v1379 = vadd.f32 %v551, %v663
        %v1380 = vadd.f32 %v553, %v665
        %v1381 = vadd.f32 %v555, %v667
        %v1382 = vadd.f32 %v557, %v669
        %v1383 = vadd.f32 %v559, %v671
        %v1384 = vadd.f32 %v561, %v673
        %v1385 = vadd.f32 %v562, %v674
        %v1386 = vadd.f32 %v564, %v676
        %v1387 = vadd.f32 %v566, %v678
        %v1388 = vadd.f32 %v568, %v680
        %v1389 = vadd.f32 %v570, %v682
        %v1390 = vadd.f32 %v572, %v684
        %v1391 = vadd.f32 %v574, %v686
        %v1392 = vadd.f32 %v576, %v688
        %v1393 = vadd.f32 %v577, %v689
        %v1394 = vadd.f32 %v579, %v691
        %v1395 = vadd.f32 %v581, %v693
        %v1396 = vadd.f32 %v583, %v695
        %v1397 = vadd.f32 %v585, %v697
        %v1398 = vadd.f32 %v587, %v699
        %v1399 = vadd.f32 %v589, %v701
        %v1400 = vadd.f32 %v591, %v703
        %v1401 = vadd.f32 %v736, %v768
        %v1402 = vadd.f32 %v737, %v769
        %v1403 = vadd.f32 %v738, %v770
        %v1404 = vadd.f32 %v739, %v771
        %v1405 = vadd.f32 %v740, %v772
        %v1406 = vadd.f32 %v741, %v773
        %v1407 = vadd.f32 %v742, %v774
        %v1408 = vadd.f32 %v743, %v775
        %v1409 = vadd.f32 %v744, %v776
        %v1410 = vadd.f32 %v745, %v777
        %v1411 = vadd.f32 %v746, %v778
        %v1412 = vadd.f32 %v747, %v779
        %v1413 = vadd.f32 %v748, %v780
        %v1414 = vadd.f32 %v749, %v781
        %v1415 = vadd.f32 %v750, %v782
        %v1416 = vadd.f32 %v751, %v783
        %v1417 = vadd.f32 %v752, %v784
        %v1418 = vadd.f32 %v753, %v785
        %v1419 = vadd.f32 %v754, %v786
        %v1420 = vadd.f32 %v755, %v787
        %v1421 = vadd.f32 %v756, %v788
        %v1422 = vadd.f32 %v757, %v789
        %v1423 = vadd.f32 %v758, %v790
        %v1424 = vadd.f32 %v759, %v791
        %v1425 = vadd.f32 %v760, %v792
        %v1426 = vadd.f32 %v761, %v793
        %v1427 = vadd.f32 %v762, %v794
        %v1428 = vadd.f32 %v763, %v795
        %v1429 = vadd.f32 %v764, %v796
        %v1430 = vadd.f32 %v765, %v797
        %v1431 = vadd.f32 %v766, %v798
        %v1432 = vadd.f32 %v767, %v799
        %v1465 = vperm.slane %v1369, 0
        %v1466 = vperm.slane %v1369, 1
        %v1467 = vperm.slane %v1370, 0
        %v1468 = vperm.slane %v1370, 1
        %v1469 = vperm.slane %v1371, 0
        %v1470 = vperm.slane %v1371, 1
        %v1471 = vperm.slane %v1372, 0
        %v1472 = vperm.slane %v1372, 1
        %v1473 = vperm.slane %v1373, 0
        %v1474 = vperm.slane %v1373, 1
        %v1475 = vperm.slane %v1374, 0
        %v1476 = vperm.slane %v1374, 1
        %v1477 = vperm.slane %v1375, 0
        %v1478 = vperm.slane %v1375, 1
        %v1479 = vperm.slane %v1376, 0
        %v1480 = vperm.slane %v1376, 1
        %v1481 = vperm.slane %v1377, 0
        %v1482 = vperm.slane %v1377, 1
        %v1483 = vperm.slane %v1378, 0
        %v1484 = vperm.slane %v1378, 1
        %v1485 = vperm.slane %v1379, 0
        %v1486 = vperm.slane %v1379, 1
        %v1487 = vperm.slane %v1380, 0
        %v1488 = vperm.slane %v1380, 1
        %v1489 = vperm.slane %v1381, 0
        %v1490 = vperm.slane %v1381, 1
        %v1491 = vperm.slane %v1382, 0
        %v1492 = vperm.slane %v1382, 1
        %v1493 = vperm.slane %v1383, 0
        %v1494 = vperm.slane %v1383, 1
        %v1495 = vperm.slane %v1384, 0
        %v1496 = vperm.slane %v1384, 1
        %v1497 = vperm.slane %v1385, 0
        %v1498 = vperm.slane %v1385, 1
        %v1499 = vperm.slane %v1386, 0
        %v1500 = vperm.slane %v1386, 1
        %v1501 = vperm.slane %v1387, 0
        %v1502 = vperm.slane %v1387, 1
        %v1503 = vperm.slane %v1388, 0
        %v1504 = vperm.slane %v1388, 1
        %v1505 = vperm.slane %v1389, 0
        %v1506 = vperm.slane %v1389, 1
        %v1507 = vperm.slane %v1390, 0
        %v1508 = vperm.slane %v1390, 1
        %v1509 = vperm.slane %v1391, 0
        %v1510 = vperm.slane %v1391, 1
        %v1511 = vperm.slane %v1392, 0
        %v1512 = vperm.slane %v1392, 1
        %v1513 = vperm.slane %v1393, 0
        %v1514 = vperm.slane %v1393, 1
        %v1515 = vperm.slane %v1394, 0
        %v1516 = vperm.slane %v1394, 1
        %v1517 = vperm.slane %v1395, 0
        %v1518 = vperm.slane %v1395, 1
        %v1519 = vperm.slane %v1396, 0
        %v1520 = vperm.slane %v1396, 1
        %v1521 = vperm.slane %v1397, 0
        %v1522 = vperm.slane %v1397, 1
        %v1523 = vperm.slane %v1398, 0
        %v1524 = vperm.slane %v1398, 1
        %v1525 = vperm.slane %v1399, 0
        %v1526 = vperm.slane %v1399, 1
        %v1527 = vperm.slane %v1400, 0
        %v1528 = vperm.slane %v1400, 1
        %v1593 = vmul.f32 %v1465, %v1401
        %v1594 = vmul.f32 %v1466, %v1402
        %v1595 = vmul.f32 %v1467, %v1403
        %v1596 = vmul.f32 %v1468, %v1404
        %v1597 = vmul.f32 %v1469, %v1405
        %v1598 = vmul.f32 %v1470, %v1406
        %v1599 = vmul.f32 %v1471, %v1407
        %v1600 = vmul.f32 %v1472, %v1408
        %v1601 = vmul.f32 %v1473, %v1409
        %v1602 = vmul.f32 %v1474, %v1410
        %v1603 = vmul.f32 %v1475, %v1411
        %v1604 = vmul.f32 %v1476, %v1412
        %v1605 = vmul.f32 %v1477, %v1413
        %v1606 = vmul.f32 %v1478, %v1414
        %v1607 = vmul.f32 %v1479, %v1415
        %v1608 = vmul.f32 %v1480, %v1416
        %v1609 = vmul.f32 %v1481, %v1417
        %v1610 = vmul.f32 %v1482, %v1418
        %v1611 = vmul.f32 %v1483, %v1419
        %v1612 = vmul.f32 %v1484, %v1420
        %v1613 = vmul.f32 %v1485, %v1421
        %v1614 = vmul.f32 %v1486, %v1422
        %v1615 = vmul.f32 %v1487, %v1423
        %v1616 = vmul.f32 %v1488, %v1424
        %v1617 = vmul.f32 %v1489, %v1425
        %v1618 = vmul.f32 %v1490, %v1426
        %v1619 = vmul.f32 %v1491, %v1427
        %v1620 = vmul.f32 %v1492, %v1428
        %v1621 = vmul.f32 %v1493, %v1429
        %v1622 = vmul.f32 %v1494, %v1430
        %v1623 = vmul.f32 %v1495, %v1431
        %v1624 = vmul.f32 %v1496, %v1432
        %v1625 = vmul.f32 %v1497, %v1401
        %v1626 = vmul.f32 %v1498, %v1402
        %v1627 = vmul.f32 %v1499, %v1403
        %v1628 = vmul.f32 %v1500, %v1404
        %v1629 = vmul.f32 %v1501, %v1405
        %v1630 = vmul.f32 %v1502, %v1406
        %v1631 = vmul.f32 %v1503, %v1407
        %v1632 = vmul.f32 %v1504, %v1408
        %v1633 = vmul.f32 %v1505, %v1409
        %v1634 = vmul.f32 %v1506, %v1410
        %v1635 = vmul.f32 %v1507, %v1411
        %v1636 = vmul.f32 %v1508, %v1412
        %v1637 = vmul.f32 %v1509, %v1413
        %v1638 = vmul.f32 %v1510, %v1414
        %v1639 = vmul.f32 %v1511, %v1415
        %v1640 = vmul.f32 %v1512, %v1416
        %v1641 = vmul.f32 %v1513, %v1417
        %v1642 = vmul.f32 %v1514, %v1418
        %v1643 = vmul.f32 %v1515, %v1419
        %v1644 = vmul.f32 %v1516, %v1420
        %v1645 = vmul.f32 %v1517, %v1421
        %v1646 = vmul.f32 %v1518, %v1422
        %v1647 = vmul.f32 %v1519, %v1423
        %v1648 = vmul.f32 %v1520, %v1424
        %v1649 = vmul.f32 %v1521, %v1425
        %v1650 = vmul.f32 %v1522, %v1426
        %v1651 = vmul.f32 %v1523, %v1427
        %v1652 = vmul.f32 %v1524, %v1428
        %v1653 = vmul.f32 %v1525, %v1429
        %v1654 = vmul.f32 %v1526, %v1430
        %v1655 = vmul.f32 %v1527, %v1431
        %v1656 = vmul.f32 %v1528, %v1432
        %v1657 = vadd.f32 %v1593, %v1595
        %v1658 = vadd.f32 %v1657, %v1597
        %v1659 = vadd.f32 %v1658, %v1599
        %v1660 = vadd.f32 %v1659, %v1601
        %v1661 = vadd.f32 %v1660, %v1603
        %v1662 = vadd.f32 %v1661, %v1605
        %v1663 = vadd.f32 %v1662, %v1607
        %v1664 = vadd.f32 %v1663, %v1609
        %v1665 = vadd.f32 %v1664, %v1611
        %v1666 = vadd.f32 %v1665, %v1613
        %v1667 = vadd.f32 %v1666, %v1615
        %v1668 = vadd.f32 %v1667, %v1617
        %v1669 = vadd.f32 %v1668, %v1619
        %v1670 = vadd.f32 %v1669, %v1621
        %v1671 = vadd.f32 %v1670, %v1623
        %v1672 = vsel %vm1007, %v1594, 0.0
        %v1673 = vsel %vm1007, %v1596, 0.0
        %v1674 = vadd.f32 %v1672, %v1673
        %v1675 = vsel %vm1007, %v1598, 0.0
        %v1676 = vadd.f32 %v1674, %v1675
        %v1677 = vsel %vm1007, %v1600, 0.0
        %v1678 = vadd.f32 %v1676, %v1677
        %v1679 = vsel %vm1007, %v1602, 0.0
        %v1680 = vadd.f32 %v1678, %v1679
        %v1681 = vsel %vm1007, %v1604, 0.0
        %v1682 = vadd.f32 %v1680, %v1681
        %v1683 = vsel %vm1007, %v1606, 0.0
        %v1684 = vadd.f32 %v1682, %v1683
        %v1685 = vsel %vm1007, %v1608, 0.0
        %v1686 = vadd.f32 %v1684, %v1685
        %v1687 = vsel %vm1007, %v1610, 0.0
        %v1688 = vadd.f32 %v1686, %v1687
        %v1689 = vsel %vm1007, %v1612, 0.0
        %v1690 = vadd.f32 %v1688, %v1689
        %v1691 = vsel %vm1007, %v1614, 0.0
        %v1692 = vadd.f32 %v1690, %v1691
        %v1693 = vsel %vm1007, %v1616, 0.0
        %v1694 = vadd.f32 %v1692, %v1693
        %v1695 = vsel %vm1007, %v1618, 0.0
        %v1696 = vadd.f32 %v1694, %v1695
        %v1697 = vsel %vm1007, %v1620, 0.0
        %v1698 = vadd.f32 %v1696, %v1697
        %v1699 = vsel %vm1007, %v1622, 0.0
        %v1700 = vadd.f32 %v1698, %v1699
        %v1701 = vsel %vm1007, %v1624, 0.0
        %v1702 = vadd.f32 %v1700, %v1701
        %v1703 = vadd.f32 %v1625, %v1627
        %v1704 = vadd.f32 %v1703, %v1629
        %v1705 = vadd.f32 %v1704, %v1631
        %v1706 = vadd.f32 %v1705, %v1633
        %v1707 = vadd.f32 %v1706, %v1635
        %v1708 = vadd.f32 %v1707, %v1637
        %v1709 = vadd.f32 %v1708, %v1639
        %v1710 = vadd.f32 %v1709, %v1641
        %v1711 = vadd.f32 %v1710, %v1643
        %v1712 = vadd.f32 %v1711, %v1645
        %v1713 = vadd.f32 %v1712, %v1647
        %v1714 = vadd.f32 %v1713, %v1649
        %v1715 = vadd.f32 %v1714, %v1651
        %v1716 = vadd.f32 %v1715, %v1653
        %v1717 = vadd.f32 %v1716, %v1655
        %v1718 = vsel %vm1007, %v1626, 0.0
        %v1719 = vsel %vm1007, %v1628, 0.0
        %v1720 = vadd.f32 %v1718, %v1719
        %v1721 = vsel %vm1007, %v1630, 0.0
        %v1722 = vadd.f32 %v1720, %v1721
        %v1723 = vsel %vm1007, %v1632, 0.0
        %v1724 = vadd.f32 %v1722, %v1723
        %v1725 = vsel %vm1007, %v1634, 0.0
        %v1726 = vadd.f32 %v1724, %v1725
        %v1727 = vsel %vm1007, %v1636, 0.0
        %v1728 = vadd.f32 %v1726, %v1727
        %v1729 = vsel %vm1007, %v1638, 0.0
        %v1730 = vadd.f32 %v1728, %v1729
        %v1731 = vsel %vm1007, %v1640, 0.0
        %v1732 = vadd.f32 %v1730, %v1731
        %v1733 = vsel %vm1007, %v1642, 0.0
        %v1734 = vadd.f32 %v1732, %v1733
        %v1735 = vsel %vm1007, %v1644, 0.0
        %v1736 = vadd.f32 %v1734, %v1735
        %v1737 = vsel %vm1007, %v1646, 0.0
        %v1738 = vadd.f32 %v1736, %v1737
        %v1739 = vsel %vm1007, %v1648, 0.0
        %v1740 = vadd.f32 %v1738, %v1739
        %v1741 = vsel %vm1007, %v1650, 0.0
        %v1742 = vadd.f32 %v1740, %v1741
        %v1743 = vsel %vm1007, %v1652, 0.0
        %v1744 = vadd.f32 %v1742, %v1743
        %v1745 = vsel %vm1007, %v1654, 0.0
        %v1746 = vadd.f32 %v1744, %v1745
        %v1747 = vsel %vm1007, %v1656, 0.0
        %v1748 = vadd.f32 %v1746, %v1747
        %v1749 = vsub.f32 %v1006, %v1291
        %v1750 = vsub.f32 %v1038, %v1322
        %v1751 = vsub.f32 %v1053, %v1337
        %v1752 = vsub.f32 %v1084, %v1368
        %v1753 = vld [vmem:[%s498] sm:$0xff]
        %v1754 = vld [vmem:[%s498 + $0x8] sm:$0xff]
        %v1755 = vadd.f32 %v1749, %v1753
        %v1756 = vadd.f32 %v1750, %v1754
        %v1757 = vadd.f32 %v1751, %v1753
        %v1758 = vadd.f32 %v1752, %v1754
        %1759 = vst [vmem:[%s487] sm:$0xff] %v1755
        %1760 = vst.msk [vmem:[%s487 + $0x8] sm:$0xff] %vm1007, %v1756
        %1761 = vst [vmem:[%s487 + $0x10] sm:$0xff] %v1757
        %1762 = vst.msk [vmem:[%s487 + $0x18] sm:$0xff] %vm1007, %v1758
        %v1763 = vsub.f32 %v1671, %v1006
        %v1764 = vsub.f32 %v1702, %v1038
        %v1765 = vsub.f32 %v1717, %v1053
        %v1766 = vsub.f32 %v1748, %v1084
        %v1767 = vsub.f32 %v1763, %v1291
        %v1768 = vsub.f32 %v1764, %v1322
        %v1769 = vsub.f32 %v1765, %v1337
        %v1770 = vsub.f32 %v1766, %v1368
        %v1771 = vld [vmem:[%s503] sm:$0xff]
        %v1772 = vld [vmem:[%s503 + $0x8] sm:$0xff]
        %v1773 = vadd.f32 %v1767, %v1771
        %v1774 = vadd.f32 %v1768, %v1772
        %v1775 = vadd.f32 %v1769, %v1771
        %v1776 = vadd.f32 %v1770, %v1772
        %1777 = vst [vmem:[%s493] sm:$0xff] %v1773
        %1778 = vst.msk [vmem:[%s493 + $0x8] sm:$0xff] %vm1007, %v1774
        %1779 = vst [vmem:[%s493 + $0x10] sm:$0xff] %v1775
        %1780 = vst.msk [vmem:[%s493 + $0x18] sm:$0xff] %vm1007, %v1776
        %s1781 = sand.u32 %s173, 1
        %s1782 = sand.u32 %s173, 1
        %s1783 = smul.addr %s1782, 32
        %s1784 = scalar_lea.vmem [#allocation4], %s1783
        %s1785 = sand.u32 %s199, 1
        %s1786 = sand.u32 %s199, 1
        %s1787 = smul.addr %s1786, 32
        %s1788 = scalar_lea.vmem [#allocation5], %s1787
        // Predicated region
        $region91: #{fno_rnn_2d_forward.18} parent=81 // pred_check
          %p1789 = pneg %p183
        $region92: #{fno_rnn_2d_forward.18} parent=81 // pred_check_branch
          %1791 = sbr.rel (%p1789) target = $region94
        $region93: #{fno_rnn_2d_forward.18} parent=81 // pred_region
          %s1792 = smul.addr %s19, 2
          %s1793 = smul.addr %s1792, 8
          %s1794 = scalar_lea.vmem %s6, %s1793
          // Predicated region
          $region95: #{fno_rnn_2d_forward.18} parent=93 // pred_check
            _
          $region96: #{fno_rnn_2d_forward.18} parent=93 // pred_check_branch
            %1796 = sbr.rel (0) target = $region98
          $region97: #{fno_rnn_2d_forward.18} parent=93 // pred_region
            // Predicated region
            $region99: #{fno_rnn_2d_forward.18} parent=97 // pred_check
              _
            $region100: #{fno_rnn_2d_forward.18} parent=97 // pred_check_branch
              %1798 = sbr.rel (0) target = $region102
            $region101: #{fno_rnn_2d_forward.18} parent=97 // pred_region
              loop: start=0, step=1, limit=1
              $region103: #{fno_rnn_2d_forward.18} parent=101 // loop_pre_header
                _
              $region104: #{fno_rnn_2d_forward.18} parent=101 // loop_header
                %s1800 = sphi 0, %s1804
                %p1801 = scmp.ge.s32.totalorder %s1800, 1
                %s1805 = sphi %s1784, %s1784
                %s1806 = sphi %s1794, %s1794
              $region105: #{fno_rnn_2d_forward.18} parent=101 // loop_header_branch
                %1803 = sbr.rel (%p1801) target = $region109
              $region106: #{fno_rnn_2d_forward.18} parent=101 // loop_body
                %v1807 = vld [vmem:[%s1805] sm:$0xff]
                %1808 = vst [vmem:[%s1806] sm:$0xff] %v1807
                %v1809 = vld [vmem:[%s1805 + $0x8] sm:$0xff]
                %1810 = vst [vmem:[%s1806 + $0x8] sm:$0xff] %v1809
                %v1811 = vld [vmem:[%s1805 + $0x10] sm:$0xff]
                %1812 = vst [vmem:[%s1806 + $0x20] sm:$0xff] %v1811
                %v1813 = vld [vmem:[%s1805 + $0x18] sm:$0xff]
                %1814 = vst [vmem:[%s1806 + $0x28] sm:$0xff] %v1813
              $region107: #{fno_rnn_2d_forward.18} parent=101 // loop_footer
                %s1804 = sadd.s32 1, %s1800
              $region108: #{fno_rnn_2d_forward.18} parent=101 // loop_footer_branch
                %1799 = sbr.rel target = $region104
              $region109: #{fno_rnn_2d_forward.18} parent=101 // loop_exit
                _
            $region102: #{fno_rnn_2d_forward.18} parent=97 // pred_fallthru
              _
            // Predicated region
            $region110: #{fno_rnn_2d_forward.18} parent=97 // pred_check
              _
            $region111: #{fno_rnn_2d_forward.18} parent=97 // pred_check_branch
              %1816 = sbr.rel target = $region113
            $region112: #{fno_rnn_2d_forward.18} parent=97 // pred_region
              _
            $region113: #{fno_rnn_2d_forward.18} parent=97 // pred_fallthru
              _
          $region98: #{fno_rnn_2d_forward.18} parent=93 // pred_fallthru
            _
          %1817 = vnop
        $region94: #{fno_rnn_2d_forward.18} parent=81 // pred_fallthru
          _
        // Predicated region
        $region114: #{fno_rnn_2d_forward.18} parent=81 // pred_check
          %p1818 = pneg %p209
        $region115: #{fno_rnn_2d_forward.18} parent=81 // pred_check_branch
          %1820 = sbr.rel (%p1818) target = $region117
        $region116: #{fno_rnn_2d_forward.18} parent=81 // pred_region
          %s1821 = smul.addr %s19, 2
          %s1822 = smul.addr %s1821, 8
          %s1823 = scalar_lea.vmem %s7, %s1822
          // Predicated region
          $region118: #{fno_rnn_2d_forward.18} parent=116 // pred_check
            _
          $region119: #{fno_rnn_2d_forward.18} parent=116 // pred_check_branch
            %1825 = sbr.rel (0) target = $region121
          $region120: #{fno_rnn_2d_forward.18} parent=116 // pred_region
            // Predicated region
            $region122: #{fno_rnn_2d_forward.18} parent=120 // pred_check
              _
            $region123: #{fno_rnn_2d_forward.18} parent=120 // pred_check_branch
              %1827 = sbr.rel (0) target = $region125
            $region124: #{fno_rnn_2d_forward.18} parent=120 // pred_region
              loop: start=0, step=1, limit=1
              $region126: #{fno_rnn_2d_forward.18} parent=124 // loop_pre_header
                _
              $region127: #{fno_rnn_2d_forward.18} parent=124 // loop_header
                %s1829 = sphi 0, %s1833
                %p1830 = scmp.ge.s32.totalorder %s1829, 1
                %s1834 = sphi %s1788, %s1788
                %s1835 = sphi %s1823, %s1823
              $region128: #{fno_rnn_2d_forward.18} parent=124 // loop_header_branch
                %1832 = sbr.rel (%p1830) target = $region132
              $region129: #{fno_rnn_2d_forward.18} parent=124 // loop_body
                %v1836 = vld [vmem:[%s1834] sm:$0xff]
                %1837 = vst [vmem:[%s1835] sm:$0xff] %v1836
                %v1838 = vld [vmem:[%s1834 + $0x8] sm:$0xff]
                %1839 = vst [vmem:[%s1835 + $0x8] sm:$0xff] %v1838
                %v1840 = vld [vmem:[%s1834 + $0x10] sm:$0xff]
                %1841 = vst [vmem:[%s1835 + $0x20] sm:$0xff] %v1840
                %v1842 = vld [vmem:[%s1834 + $0x18] sm:$0xff]
                %1843 = vst [vmem:[%s1835 + $0x28] sm:$0xff] %v1842
              $region130: #{fno_rnn_2d_forward.18} parent=124 // loop_footer
                %s1833 = sadd.s32 1, %s1829
              $region131: #{fno_rnn_2d_forward.18} parent=124 // loop_footer_branch
                %1828 = sbr.rel target = $region127
              $region132: #{fno_rnn_2d_forward.18} parent=124 // loop_exit
                _
            $region125: #{fno_rnn_2d_forward.18} parent=120 // pred_fallthru
              _
            // Predicated region
            $region133: #{fno_rnn_2d_forward.18} parent=120 // pred_check
              _
            $region134: #{fno_rnn_2d_forward.18} parent=120 // pred_check_branch
              %1845 = sbr.rel target = $region136
            $region135: #{fno_rnn_2d_forward.18} parent=120 // pred_region
              _
            $region136: #{fno_rnn_2d_forward.18} parent=120 // pred_fallthru
              _
          $region121: #{fno_rnn_2d_forward.18} parent=116 // pred_fallthru
            _
          %1846 = vnop
        $region117: #{fno_rnn_2d_forward.18} parent=81 // pred_fallthru
          _
      $region82: #{fno_rnn_2d_forward.18} parent=5 // pred_fallthru
        _
      %p1847 = scmp.le.s32.totalorder 2, %s14
      // Predicated region
      $region137: #{fno_rnn_2d_forward.18} parent=5 // pred_check
        %p1848 = pneg %p1847
      $region138: #{fno_rnn_2d_forward.18} parent=5 // pred_check_branch
        %1850 = sbr.rel (%p1848) target = $region140
      $region139: #{fno_rnn_2d_forward.18} parent=5 // pred_region
        %s1851 = ssub.s32 %s14, 2
        // Predicated region
        $region141: #{fno_rnn_2d_forward.18} parent=139 // pred_check
          %p1852 = pneg %p189
        $region142: #{fno_rnn_2d_forward.18} parent=139 // pred_check_branch
          %1854 = sbr.rel (%p1852) target = $region144
        $region143: #{fno_rnn_2d_forward.18} parent=139 // pred_region
          %s1855 = sand.u32 %s174, 1
          %s1856 = sand.u32 %s174, 1
          %s1857 = smul.addr %s1856, 32
          %s1858 = scalar_lea.vmem [#allocation4], %s1857
        $region144: #{fno_rnn_2d_forward.18} parent=139 // pred_fallthru
          _
        // Predicated region
        $region145: #{fno_rnn_2d_forward.18} parent=139 // pred_check
          %p1859 = pneg %p215
        $region146: #{fno_rnn_2d_forward.18} parent=139 // pred_check_branch
          %1861 = sbr.rel (%p1859) target = $region148
        $region147: #{fno_rnn_2d_forward.18} parent=139 // pred_region
          %s1862 = sand.u32 %s200, 1
          %s1863 = sand.u32 %s200, 1
          %s1864 = smul.addr %s1863, 32
          %s1865 = scalar_lea.vmem [#allocation5], %s1864
        $region148: #{fno_rnn_2d_forward.18} parent=139 // pred_fallthru
          _
      $region140: #{fno_rnn_2d_forward.18} parent=5 // pred_fallthru
        _
    $region6: #{fno_rnn_2d_forward.18} parent=1 // loop_footer
      %s18 = sadd.s32 1, %s14
    $region7: #{fno_rnn_2d_forward.18} parent=1 // loop_footer_branch
      %13 = sbr.rel target = $region3
    $region8: #{fno_rnn_2d_forward.18} parent=1 // loop_exit
      _

// kernel: reverse.16
$region0: #{reverse.16}
  #allocation0 [shape = 's32[1]{0}', space=sflag, size = 0x4, scoped, tag = 'scoped memory for reverse.16']
  %s0 = inlined_call_operand.vmem [shape: f32[2,16,16,7], index: 0, kind: input, shape index: {}]
  %s1 = inlined_call_operand.vmem [shape: f32[2,16,16,7], index: 1, kind: output, shape index: {}]
  %s2 = scalar_lea.vmem %s0, 96
  %v3 = vld [vmem:[%s2] sm:$0xff]
  %4 = vst [vmem:[%s1] sm:$0xff] %v3
  %s5 = scalar_lea.vmem %s0, 208
  %v6 = vld [vmem:[%s5] sm:$0xff]
  %s7 = scalar_lea.vmem %s1, 112
  %8 = vst [vmem:[%s7] sm:$0xff] %v6
  %s9 = scalar_lea.vmem %s0, 80
  %v10 = vld [vmem:[%s9] sm:$0xff]
  %s11 = scalar_lea.vmem %s1, 16
  %12 = vst [vmem:[%s11] sm:$0xff] %v10
  %s13 = scalar_lea.vmem %s0, 192
  %v14 = vld [vmem:[%s13] sm:$0xff]
  %s15 = scalar_lea.vmem %s1, 128
  %16 = vst [vmem:[%s15] sm:$0xff] %v14
  %s17 = scalar_lea.vmem %s0, 64
  %v18 = vld [vmem:[%s17] sm:$0xff]
  %s19 = scalar_lea.vmem %s1, 32
  %20 = vst [vmem:[%s19] sm:$0xff] %v18
  %s21 = scalar_lea.vmem %s0, 176
  %v22 = vld [vmem:[%s21] sm:$0xff]
  %s23 = scalar_lea.vmem %s1, 144
  %24 = vst [vmem:[%s23] sm:$0xff] %v22
  %s25 = scalar_lea.vmem %s0, 48
  %v26 = vld [vmem:[%s25] sm:$0xff]
  %s27 = scalar_lea.vmem %s1, 48
  %28 = vst [vmem:[%s27] sm:$0xff] %v26
  %s29 = scalar_lea.vmem %s0, 160
  %v30 = vld [vmem:[%s29] sm:$0xff]
  %s31 = scalar_lea.vmem %s1, 160
  %32 = vst [vmem:[%s31] sm:$0xff] %v30
  %s33 = scalar_lea.vmem %s0, 32
  %v34 = vld [vmem:[%s33] sm:$0xff]
  %s35 = scalar_lea.vmem %s1, 64
  %36 = vst [vmem:[%s35] sm:$0xff] %v34
  %s37 = scalar_lea.vmem %s0, 144
  %v38 = vld [vmem:[%s37] sm:$0xff]
  %s39 = scalar_lea.vmem %s1, 176
  %40 = vst [vmem:[%s39] sm:$0xff] %v38
  %s41 = scalar_lea.vmem %s0, 16
  %v42 = vld [vmem:[%s41] sm:$0xff]
  %s43 = scalar_lea.vmem %s1, 80
  %44 = vst [vmem:[%s43] sm:$0xff] %v42
  %s45 = scalar_lea.vmem %s0, 128
  %v46 = vld [vmem:[%s45] sm:$0xff]
  %s47 = scalar_lea.vmem %s1, 192
  %48 = vst [vmem:[%s47] sm:$0xff] %v46
  %v49 = vld [vmem:[%s0] sm:$0xff]
  %s50 = scalar_lea.vmem %s1, 96
  %51 = vst [vmem:[%s50] sm:$0xff] %v49
  %s52 = scalar_lea.vmem %s0, 112
  %v53 = vld [vmem:[%s52] sm:$0xff]
  %s54 = scalar_lea.vmem %s1, 208
  %55 = vst [vmem:[%s54] sm:$0xff] %v53
  %s56 = scalar_lea.vmem %s0, 104
  %v57 = vld [vmem:[%s56] sm:$0xff]
  %s58 = scalar_lea.vmem %s1, 8
  %59 = vst [vmem:[%s58] sm:$0xff] %v57
  %s60 = scalar_lea.vmem %s0, 216
  %v61 = vld [vmem:[%s60] sm:$0xff]
  %s62 = scalar_lea.vmem %s1, 120
  %63 = vst [vmem:[%s62] sm:$0xff] %v61
  %s64 = scalar_lea.vmem %s0, 88
  %v65 = vld [vmem:[%s64] sm:$0xff]
  %s66 = scalar_lea.vmem %s1, 24
  %67 = vst [vmem:[%s66] sm:$0xff] %v65
  %s68 = scalar_lea.vmem %s0, 200
  %v69 = vld [vmem:[%s68] sm:$0xff]
  %s70 = scalar_lea.vmem %s1, 136
  %71 = vst [vmem:[%s70] sm:$0xff] %v69
  %s72 = scalar_lea.vmem %s0, 72
  %v73 = vld [vmem:[%s72] sm:$0xff]
  %s74 = scalar_lea.vmem %s1, 40
  %75 = vst [vmem:[%s74] sm:$0xff] %v73
  %s76 = scalar_lea.vmem %s0, 184
  %v77 = vld [vmem:[%s76] sm:$0xff]
  %s78 = scalar_lea.vmem %s1, 152
  %79 = vst [vmem:[%s78] sm:$0xff] %v77
  %s80 = scalar_lea.vmem %s0, 56
  %v81 = vld [vmem:[%s80] sm:$0xff]
  %s82 = scalar_lea.vmem %s1, 56
  %83 = vst [vmem:[%s82] sm:$0xff] %v81
  %s84 = scalar_lea.vmem %s0, 168
  %v85 = vld [vmem:[%s84] sm:$0xff]
  %s86 = scalar_lea.vmem %s1, 168
  %87 = vst [vmem:[%s86] sm:$0xff] %v85
  %s88 = scalar_lea.vmem %s0, 40
  %v89 = vld [vmem:[%s88] sm:$0xff]
  %s90 = scalar_lea.vmem %s1, 72
  %91 = vst [vmem:[%s90] sm:$0xff] %v89
  %s92 = scalar_lea.vmem %s0, 152
  %v93 = vld [vmem:[%s92] sm:$0xff]
  %s94 = scalar_lea.vmem %s1, 184
  %95 = vst [vmem:[%s94] sm:$0xff] %v93
  %s96 = scalar_lea.vmem %s0, 24
  %v97 = vld [vmem:[%s96] sm:$0xff]
  %s98 = scalar_lea.vmem %s1, 88
  %99 = vst [vmem:[%s98] sm:$0xff] %v97
  %s100 = scalar_lea.vmem %s0, 136
  %v101 = vld [vmem:[%s100] sm:$0xff]
  %s102 = scalar_lea.vmem %s1, 200
  %103 = vst [vmem:[%s102] sm:$0xff] %v101
  %s104 = scalar_lea.vmem %s0, 8
  %v105 = vld [vmem:[%s104] sm:$0xff]
  %s106 = scalar_lea.vmem %s1, 104
  %107 = vst [vmem:[%s106] sm:$0xff] %v105
  %s108 = scalar_lea.vmem %s0, 120
  %v109 = vld [vmem:[%s108] sm:$0xff]
  %s110 = scalar_lea.vmem %s1, 216
  %111 = vst [vmem:[%s110] sm:$0xff] %v109

// kernel: fno_rnn_2d_forward.19
$region0: #{fno_rnn_2d_forward.19}
  #allocation0 [shape = 'u32[]', space=smem, size = 0x4, offset = 0x4, fixed_abs, tag = 'smem constant byte address 0x4 - core index']
  #allocation1 [shape = 'u32[72,128]{1,0:T(1,128)}', space=vmem, size = 0x9000, scoped, tag = 'internal scratch']
  %s0 = inlined_call_operand.vmem [shape: f32[2,16,256], index: 0, kind: input, shape index: {}]
  %s1 = inlined_call_operand.vmem [shape: f32[2,16,256], index: 1, kind: input, shape index: {}]
  %s2 = inlined_call_operand.vmem [shape: f32[16,16], index: 2, kind: input, shape index: {}]
  %s3 = inlined_call_operand.vmem [shape: f32[16,1], index: 3, kind: input, shape index: {}]
  %s4 = inlined_call_operand.vmem [shape: f32[2,16,256], index: 4, kind: output, shape index: {}]
  %s5 = sld [smem:[#allocation0]]
  $region49: #{fno_rnn_2d_forward.19} parent=0
    _
  %s7 = ssub.s32 1, %s5
  %s8 = scalar_select 0, %s7, %s5
  loop: start=0, step=1, limit=4
  $region2: #{fno_rnn_2d_forward.19} parent=0 // loop_pre_header
    _
  $region3: #{fno_rnn_2d_forward.19} parent=0 // loop_header
    %s10 = sphi 0, %s14
    %p11 = scmp.ge.s32.totalorder %s10, 4
    %s20 = sphi 0, %s22
    %s23 = sphi 0, %s20
    %s24 = sphi 0, %s23
    %s40 = sphi 0, %s24
    %s46 = sphi 0, %s48
    %s49 = sphi 0, %s46
    %s50 = sphi 0, %s49
    %s66 = sphi 0, %s50
    %s70 = sphi 0, %s70
    %s72 = sphi 0, %s70
    %s73 = sphi 0, %s72
    %s87 = sphi 0, %s73
    %s91 = sphi 0, %s91
    %s93 = sphi 0, %s91
    %s94 = sphi 0, %s93
    %s108 = sphi 0, %s94
    %s114 = sphi 0, %s116
    %s117 = sphi 0, %s114
    %s118 = sphi 0, %s117
    %s134 = sphi 0, %s118
  $region4: #{fno_rnn_2d_forward.19} parent=0 // loop_header_branch
    %13 = sbr.rel (%p11) target = $region8
  $region5: #{fno_rnn_2d_forward.19} parent=0 // loop_body
    %s15 = ssub.s32 %s10, 1
    %s16 = ssub.s32 %s10, 2
    %s17 = sadd.s32 %s10, 1
    %s18 = ssub.s32 %s10, %s17
    %p19 = scmp.eq.s32.totalorder %s18, 0
    %s21 = sadd.s32 %s20, 1
    %s22 = scalar_select %p19, %s20, %s21
    %p25 = pneg %p19
    %p26 = scmp.eq.s32.totalorder %s10, 1
    %p27 = por %p25, %p26
    %p28 = scmp.ne.s32.totalorder %s20, %s23
    %p29 = scmp.eq.s32.totalorder %s10, 0
    %p30 = por %p28, %p29
    %p31 = scmp.ne.s32.totalorder %s20, %s23
    %p32 = scmp.eq.s32.totalorder %s15, 1
    %p33 = por %p31, %p32
    %p34 = scmp.ne.s32.totalorder %s23, %s24
    %p35 = scmp.eq.s32.totalorder %s15, 0
    %p36 = por %p34, %p35
    %p37 = scmp.ne.s32.totalorder %s23, %s24
    %p38 = scmp.eq.s32.totalorder %s16, 1
    %p39 = por %p37, %p38
    %p41 = scmp.ne.s32.totalorder %s24, %s40
    %p42 = scmp.eq.s32.totalorder %s16, 0
    %p43 = por %p41, %p42
    %s44 = ssub.s32 %s10, %s17
    %p45 = scmp.eq.s32.totalorder %s44, 0
    %s47 = sadd.s32 %s46, 1
    %s48 = scalar_select %p45, %s46, %s47
    %p51 = pneg %p45
    %p52 = scmp.eq.s32.totalorder %s10, 1
    %p53 = por %p51, %p52
    %p54 = scmp.ne.s32.totalorder %s46, %s49
    %p55 = scmp.eq.s32.totalorder %s10, 0
    %p56 = por %p54, %p55
    %p57 = scmp.ne.s32.totalorder %s46, %s49
    %p58 = scmp.eq.s32.totalorder %s15, 1
    %p59 = por %p57, %p58
    %p60 = scmp.ne.s32.totalorder %s49, %s50
    %p61 = scmp.eq.s32.totalorder %s15, 0
    %p62 = por %p60, %p61
    %p63 = scmp.ne.s32.totalorder %s49, %s50
    %p64 = scmp.eq.s32.totalorder %s16, 1
    %p65 = por %p63, %p64
    %p67 = scmp.ne.s32.totalorder %s50, %s66
    %p68 = scmp.eq.s32.totalorder %s16, 0
    %p69 = por %p67, %p68
    %s71 = sadd.s32 %s70, 1
    %p74 = scmp.eq.s32.totalorder %s10, 1
    %p75 = scmp.ne.s32.totalorder %s70, %s72
    %p76 = scmp.eq.s32.totalorder %s10, 0
    %p77 = por %p75, %p76
    %p78 = scmp.ne.s32.totalorder %s70, %s72
    %p79 = scmp.eq.s32.totalorder %s15, 1
    %p80 = por %p78, %p79
    %p81 = scmp.ne.s32.totalorder %s72, %s73
    %p82 = scmp.eq.s32.totalorder %s15, 0
    %p83 = por %p81, %p82
    %p84 = scmp.ne.s32.totalorder %s72, %s73
    %p85 = scmp.eq.s32.totalorder %s16, 1
    %p86 = por %p84, %p85
    %p88 = scmp.ne.s32.totalorder %s73, %s87
    %p89 = scmp.eq.s32.totalorder %s16, 0
    %p90 = por %p88, %p89
    %s92 = sadd.s32 %s91, 1
    %p95 = scmp.eq.s32.totalorder %s10, 1
    %p96 = scmp.ne.s32.totalorder %s91, %s93
    %p97 = scmp.eq.s32.totalorder %s10, 0
    %p98 = por %p96, %p97
    %p99 = scmp.ne.s32.totalorder %s91, %s93
    %p100 = scmp.eq.s32.totalorder %s15, 1
    %p101 = por %p99, %p100
    %p102 = scmp.ne.s32.totalorder %s93, %s94
    %p103 = scmp.eq.s32.totalorder %s15, 0
    %p104 = por %p102, %p103
    %p105 = scmp.ne.s32.totalorder %s93, %s94
    %p106 = scmp.eq.s32.totalorder %s16, 1
    %p107 = por %p105, %p106
    %p109 = scmp.ne.s32.totalorder %s94, %s108
    %p110 = scmp.eq.s32.totalorder %s16, 0
    %p111 = por %p109, %p110
    %s112 = ssub.s32 %s10, %s17
    %p113 = scmp.eq.s32.totalorder %s112, 0
    %s115 = sadd.s32 %s114, 1
    %s116 = scalar_select %p113, %s114, %s115
    %p119 = pneg %p113
    %p120 = scmp.eq.s32.totalorder %s10, 1
    %p121 = por %p119, %p120
    %p122 = scmp.ne.s32.totalorder %s114, %s117
    %p123 = scmp.eq.s32.totalorder %s10, 0
    %p124 = por %p122, %p123
    %p125 = scmp.ne.s32.totalorder %s114, %s117
    %p126 = scmp.eq.s32.totalorder %s15, 1
    %p127 = por %p125, %p126
    %p128 = scmp.ne.s32.totalorder %s117, %s118
    %p129 = scmp.eq.s32.totalorder %s15, 0
    %p130 = por %p128, %p129
    %p131 = scmp.ne.s32.totalorder %s117, %s118
    %p132 = scmp.eq.s32.totalorder %s16, 1
    %p133 = por %p131, %p132
    %p135 = scmp.ne.s32.totalorder %s118, %s134
    %p136 = scmp.eq.s32.totalorder %s16, 0
    %p137 = por %p135, %p136
    %p138 = scmp.le.s32.totalorder 1, %s10
    %p139 = scmp.lt.s32.totalorder %s10, 3
    %p140 = pnand %p138, %p139
    %p141 = pneg %p140
    // Predicated region
    $region9: #{fno_rnn_2d_forward.19} parent=5 // pred_check
      _
    $region10: #{fno_rnn_2d_forward.19} parent=5 // pred_check_branch
      %143 = sbr.rel (%p140) target = $region12
    $region11: #{fno_rnn_2d_forward.19} parent=5 // pred_region
      %s144 = ssub.s32 %s10, 1
      // Predicated region
      $region13: #{fno_rnn_2d_forward.19} parent=11 // pred_check
        %p145 = pneg %p83
      $region14: #{fno_rnn_2d_forward.19} parent=11 // pred_check_branch
        %147 = sbr.rel (%p145) target = $region16
      $region15: #{fno_rnn_2d_forward.19} parent=11 // pred_region
        _
      $region16: #{fno_rnn_2d_forward.19} parent=11 // pred_fallthru
        _
      // Predicated region
      $region17: #{fno_rnn_2d_forward.19} parent=11 // pred_check
        %p148 = pneg %p104
      $region18: #{fno_rnn_2d_forward.19} parent=11 // pred_check_branch
        %150 = sbr.rel (%p148) target = $region20
      $region19: #{fno_rnn_2d_forward.19} parent=11 // pred_region
        _
      $region20: #{fno_rnn_2d_forward.19} parent=11 // pred_fallthru
        _
    $region12: #{fno_rnn_2d_forward.19} parent=5 // pred_fallthru
      _
    %p151 = scmp.lt.s32.totalorder %s10, 2
    // Predicated region
    $region21: #{fno_rnn_2d_forward.19} parent=5 // pred_check
      %p152 = pneg %p151
    $region22: #{fno_rnn_2d_forward.19} parent=5 // pred_check_branch
      %154 = sbr.rel (%p152) target = $region24
    $region23: #{fno_rnn_2d_forward.19} parent=5 // pred_region
      // Predicated region
      $region25: #{fno_rnn_2d_forward.19} parent=23 // pred_check
        %p155 = pneg %p30
      $region26: #{fno_rnn_2d_forward.19} parent=23 // pred_check_branch
        %157 = sbr.rel (%p155) target = $region28
      $region27: #{fno_rnn_2d_forward.19} parent=23 // pred_region
        %p158 = scmp.lt.s32.totalorder %s10, 1
        %s159 = scalar_select %p158, %s10, 1
        %s160 = smul.addr %s159, 4
        %s161 = smul.addr %s160, 8
        %s162 = scalar_lea.vmem %s0, %s161
      $region28: #{fno_rnn_2d_forward.19} parent=23 // pred_fallthru
        _
      // Predicated region
      $region29: #{fno_rnn_2d_forward.19} parent=23 // pred_check
        %p163 = pneg %p56
      $region30: #{fno_rnn_2d_forward.19} parent=23 // pred_check_branch
        %165 = sbr.rel (%p163) target = $region32
      $region31: #{fno_rnn_2d_forward.19} parent=23 // pred_region
        %p166 = scmp.lt.s32.totalorder %s10, 1
        %s167 = scalar_select %p166, %s10, 1
        %s168 = smul.addr %s167, 4
        %s169 = smul.addr %s168, 8
        %s170 = scalar_lea.vmem %s1, %s169
      $region32: #{fno_rnn_2d_forward.19} parent=23 // pred_fallthru
        _
    $region24: #{fno_rnn_2d_forward.19} parent=5 // pred_fallthru
      _
    %p171 = scmp.le.s32.totalorder 1, %s10
    %p172 = scmp.lt.s32.totalorder %s10, 3
    %p173 = pnand %p171, %p172
    %p174 = pneg %p173
    // Predicated region
    $region33: #{fno_rnn_2d_forward.19} parent=5 // pred_check
      _
    $region34: #{fno_rnn_2d_forward.19} parent=5 // pred_check_branch
      %176 = sbr.rel (%p173) target = $region36
    $region35: #{fno_rnn_2d_forward.19} parent=5 // pred_region
      %s177 = ssub.s32 %s10, 1
      %p178 = scmp.lt.s32.totalorder %s15, 1
      %s179 = scalar_select %p178, %s15, 1
      %s180 = smul.addr %s179, 4
      %s181 = smul.addr %s180, 8
      %s182 = scalar_lea.vmem %s0, %s181
      %p183 = pneg %p36
      %p184 = pneg %p33
      %p185 = scmp.lt.s32.totalorder %s15, 1
      %s186 = scalar_select %p185, %s15, 1
      %s187 = smul.addr %s186, 4
      %s188 = smul.addr %s187, 8
      %s189 = scalar_lea.vmem %s1, %s188
      %p190 = pneg %p62
      %p191 = pneg %p59
      %p192 = pneg %p83
      %p193 = pneg %p80
      %p194 = pneg %p104
      %p195 = pneg %p101
      %p196 = pneg %p130
      %p197 = pneg %p127
      %p198 = scmp.lt.s32.totalorder %s15, 1
      %s199 = scalar_select %p198, %s15, 1
      %s200 = smul.addr %s199, 4
      %s201 = smul.addr %s200, 8
      %s202 = scalar_lea.vmem %s4, %s201
      %p203 = scmp.lt.s32.totalorder %s15, 1
      %s204 = scalar_select %p203, %s15, 1
      %s205 = smul.addr %s204, 4
      %s206 = smul.addr %s205, 8
      %s207 = scalar_lea.vmem %s0, %s206
      %p208 = scmp.lt.s32.totalorder %s15, 1
      %s209 = scalar_select %p208, %s15, 1
      %s210 = smul.addr %s209, 4
      %s211 = smul.addr %s210, 8
      %s212 = scalar_lea.vmem %s1, %s211
      %p213 = scmp.lt.s32.totalorder %s15, 1
      %s214 = scalar_select %p213, %s15, 1
      %s215 = smul.addr %s214, 4
      %s216 = smul.addr %s215, 8
      %s217 = scalar_lea.vmem %s4, %s216
      %v218 = vld [vmem:[%s2] sm:$0xff]
      %v219 = vld [vmem:[%s2 + $0x8] sm:$0xff]
      %v220 = vld [vmem:[%s212] sm:$0xff]
      %v221 = vld [vmem:[%s212 + $0x8] sm:$0xff]
      %v222 = vld [vmem:[%s212 + $0x10] sm:$0xff]
      %v223 = vld [vmem:[%s212 + $0x18] sm:$0xff]
      %v224 = vld [vmem:[%s3] sm:$0xff]
      %v225 = vld [vmem:[%s3 + $0x8] sm:$0xff]
      %227 = vset.pattern.permute.xlu0 0
      %228 = vperm.xlu0 %227, %v224
      %v229 = vpop.permute.xlu0 %228
      %232 = vset.pattern.permute.xlu0 0
      %233 = vperm.xlu0 %232, %v225
      %v234 = vpop.permute.xlu0 %233
      %vm236 = vcmask 130048
      %v238 = vsel %vm236, %v218, 0
      %v241 = vsel %vm236, %v219, 0
      %243 = vmatpush.msra.mxu0 0.0
      %244 = vmatpush.msra.mxu0 0.0
      %245 = vmatpush.msra.mxu0 0.0
      %246 = vmatpush.msra.mxu0 0.0
      %247 = vmatpush.msra.mxu0 0.0
      %248 = vmatpush.msra.mxu0 0.0
      %249 = vmatpush.msra.mxu0 0.0
      %250 = vmatpush.msra.mxu0 0.0
      %251 = vmatpush.msra.mxu0 0.0
      %252 = vmatpush.msra.mxu0 0.0
      %253 = vmatpush.msra.mxu0 0.0
      %254 = vmatpush.msra.mxu0 0.0
      %255 = vmatpush.msra.mxu0 0.0
      %256 = vmatpush.msra.mxu0 0.0
      %257 = vmatpush.msra.mxu0 %v222
      %258 = vmatpush.msra.mxu0 %v220
      %259 = vmatmul.f32.gmra.mxu0 %v238
      %v260 = vpop.f32.mrf.mxu0
      %v261 = vadd.f32 %v229, %v260
      %262 = vmatmul.f32.gmra.mxu0 %v241
      %v263 = vpop.f32.mrf.mxu0
      %v264 = vadd.f32 %v234, %v263
      %265 = vdwg.mxu0
      %266 = vmatpush.msra.mxu0 0.0
      %267 = vmatpush.msra.mxu0 0.0
      %268 = vmatpush.msra.mxu0 0.0
      %269 = vmatpush.msra.mxu0 0.0
      %270 = vmatpush.msra.mxu0 0.0
      %271 = vmatpush.msra.mxu0 0.0
      %272 = vmatpush.msra.mxu0 0.0
      %273 = vmatpush.msra.mxu0 0.0
      %274 = vmatpush.msra.mxu0 0.0
      %275 = vmatpush.msra.mxu0 0.0
      %276 = vmatpush.msra.mxu0 0.0
      %277 = vmatpush.msra.mxu0 0.0
      %278 = vmatpush.msra.mxu0 0.0
      %279 = vmatpush.msra.mxu0 0.0
      %280 = vmatpush.msra.mxu0 %v223
      %281 = vmatpush.msra.mxu0 %v221
      %282 = vmatmul.f32.gmra.mxu0 %v238
      %v283 = vpop.f32.mrf.mxu0
      %v284 = vadd.f32 %v229, %v283
      %285 = vmatmul.f32.gmra.mxu0 %v241
      %v286 = vpop.f32.mrf.mxu0
      %v287 = vadd.f32 %v234, %v286
      %288 = vdwg.mxu0
      %v289 = vld [vmem:[%s207] sm:$0xff]
      %v290 = vld [vmem:[%s207 + $0x8] sm:$0xff]
      %v291 = vld [vmem:[%s207 + $0x10] sm:$0xff]
      %v292 = vld [vmem:[%s207 + $0x18] sm:$0xff]
      %v293 = vmax.f32 %v289, 0.0
      %v294 = vmax.f32 %v290, 0.0
      %v295 = vmax.f32 %v291, 0.0
      %v296 = vmax.f32 %v292, 0.0
      %v297 = vadd.f32 %v293, %v261
      %v298 = vadd.f32 %v294, %v284
      %v299 = vadd.f32 %v295, %v264
      %v300 = vadd.f32 %v296, %v287
      %301 = vst [vmem:[%s217] sm:$0xff] %v297
      %302 = vst [vmem:[%s217 + $0x8] sm:$0xff] %v298
      %303 = vst [vmem:[%s217 + $0x10] sm:$0xff] %v299
      %304 = vst [vmem:[%s217 + $0x18] sm:$0xff] %v300
      %p305 = scmp.lt.s32.totalorder %s15, 1
      %s306 = scalar_select %p305, %s15, 1
      %s307 = smul.addr %s306, 4
      %s308 = smul.addr %s307, 8
      %s309 = scalar_lea.vmem %s4, %s308
      // Predicated region
      $region37: #{fno_rnn_2d_forward.19} parent=35 // pred_check
        %p310 = pneg %p127
      $region38: #{fno_rnn_2d_forward.19} parent=35 // pred_check_branch
        %312 = sbr.rel (%p310) target = $region40
      $region39: #{fno_rnn_2d_forward.19} parent=35 // pred_region
        _
      $region40: #{fno_rnn_2d_forward.19} parent=35 // pred_fallthru
        _
    $region36: #{fno_rnn_2d_forward.19} parent=5 // pred_fallthru
      _
    %p313 = scmp.le.s32.totalorder 2, %s10
    // Predicated region
    $region41: #{fno_rnn_2d_forward.19} parent=5 // pred_check
      %p314 = pneg %p313
    $region42: #{fno_rnn_2d_forward.19} parent=5 // pred_check_branch
      %316 = sbr.rel (%p314) target = $region44
    $region43: #{fno_rnn_2d_forward.19} parent=5 // pred_region
      %s317 = ssub.s32 %s10, 2
      // Predicated region
      $region45: #{fno_rnn_2d_forward.19} parent=43 // pred_check
        %p318 = pneg %p133
      $region46: #{fno_rnn_2d_forward.19} parent=43 // pred_check_branch
        %320 = sbr.rel (%p318) target = $region48
      $region47: #{fno_rnn_2d_forward.19} parent=43 // pred_region
        %p321 = scmp.lt.s32.totalorder %s16, 1
        %s322 = scalar_select %p321, %s16, 1
        %s323 = smul.addr %s322, 4
        %s324 = smul.addr %s323, 8
        %s325 = scalar_lea.vmem %s4, %s324
      $region48: #{fno_rnn_2d_forward.19} parent=43 // pred_fallthru
        _
    $region44: #{fno_rnn_2d_forward.19} parent=5 // pred_fallthru
      _
  $region6: #{fno_rnn_2d_forward.19} parent=0 // loop_footer
    %s14 = sadd.s32 1, %s10
  $region7: #{fno_rnn_2d_forward.19} parent=0 // loop_footer_branch
    %9 = sbr.rel target = $region3
  $region8: #{fno_rnn_2d_forward.19} parent=0 // loop_exit
    _

// kernel: fno_rnn_2d_forward.21
$region0: #{fno_rnn_2d_forward.21}
  #allocation0 [shape = 'u32[]', space=smem, size = 0x4, offset = 0x4, fixed_abs, tag = 'smem constant byte address 0x4 - core index']
  #allocation1 [shape = 'u32[72,128]{1,0:T(1,128)}', space=vmem, size = 0x9000, scoped, tag = 'internal scratch']
  %s0 = inlined_call_operand.vmem [shape: f32[2,16,256], index: 0, kind: input, shape index: {}]
  %s1 = inlined_call_operand.vmem [shape: f32[2,16,256], index: 1, kind: input, shape index: {}]
  %s2 = inlined_call_operand.vmem [shape: f32[16,16], index: 2, kind: input, shape index: {}]
  %s3 = inlined_call_operand.vmem [shape: f32[16,1], index: 3, kind: input, shape index: {}]
  %s4 = inlined_call_operand.vmem [shape: f32[3,16], index: 4, kind: input, shape index: {}]
  %s5 = inlined_call_operand.vmem [shape: f32[3,1], index: 5, kind: input, shape index: {}]
  %s6 = inlined_call_operand.vmem [shape: f32[2,16,256], index: 6, kind: output, shape index: {0}]
  %s7 = inlined_call_operand.vmem [shape: f32[2,3,256], index: 7, kind: output, shape index: {1}]
  %8 = xla_tuple %s6, %s7
  %s9 = sld [smem:[#allocation0]]
  $region65: #{fno_rnn_2d_forward.21} parent=0
    _
  %s11 = ssub.s32 1, %s9
  %s12 = scalar_select 0, %s11, %s9
  loop: start=0, step=1, limit=4
  $region2: #{fno_rnn_2d_forward.21} parent=0 // loop_pre_header
    _
  $region3: #{fno_rnn_2d_forward.21} parent=0 // loop_header
    %s14 = sphi 0, %s18
    %p15 = scmp.ge.s32.totalorder %s14, 4
    %s24 = sphi 0, %s26
    %s27 = sphi 0, %s24
    %s28 = sphi 0, %s27
    %s44 = sphi 0, %s28
    %s50 = sphi 0, %s52
    %s53 = sphi 0, %s50
    %s54 = sphi 0, %s53
    %s70 = sphi 0, %s54
    %s74 = sphi 0, %s74
    %s76 = sphi 0, %s74
    %s77 = sphi 0, %s76
    %s91 = sphi 0, %s77
    %s95 = sphi 0, %s95
    %s97 = sphi 0, %s95
    %s98 = sphi 0, %s97
    %s112 = sphi 0, %s98
    %s116 = sphi 0, %s116
    %s118 = sphi 0, %s116
    %s119 = sphi 0, %s118
    %s133 = sphi 0, %s119
    %s137 = sphi 0, %s137
    %s139 = sphi 0, %s137
    %s140 = sphi 0, %s139
    %s154 = sphi 0, %s140
    %s160 = sphi 0, %s162
    %s163 = sphi 0, %s160
    %s164 = sphi 0, %s163
    %s180 = sphi 0, %s164
    %s186 = sphi 0, %s188
    %s189 = sphi 0, %s186
    %s190 = sphi 0, %s189
    %s206 = sphi 0, %s190
  $region4: #{fno_rnn_2d_forward.21} parent=0 // loop_header_branch
    %17 = sbr.rel (%p15) target = $region8
  $region5: #{fno_rnn_2d_forward.21} parent=0 // loop_body
    %s19 = ssub.s32 %s14, 1
    %s20 = ssub.s32 %s14, 2
    %s21 = sadd.s32 %s14, 1
    %s22 = ssub.s32 %s14, %s21
    %p23 = scmp.eq.s32.totalorder %s22, 0
    %s25 = sadd.s32 %s24, 1
    %s26 = scalar_select %p23, %s24, %s25
    %p29 = pneg %p23
    %p30 = scmp.eq.s32.totalorder %s14, 1
    %p31 = por %p29, %p30
    %p32 = scmp.ne.s32.totalorder %s24, %s27
    %p33 = scmp.eq.s32.totalorder %s14, 0
    %p34 = por %p32, %p33
    %p35 = scmp.ne.s32.totalorder %s24, %s27
    %p36 = scmp.eq.s32.totalorder %s19, 1
    %p37 = por %p35, %p36
    %p38 = scmp.ne.s32.totalorder %s27, %s28
    %p39 = scmp.eq.s32.totalorder %s19, 0
    %p40 = por %p38, %p39
    %p41 = scmp.ne.s32.totalorder %s27, %s28
    %p42 = scmp.eq.s32.totalorder %s20, 1
    %p43 = por %p41, %p42
    %p45 = scmp.ne.s32.totalorder %s28, %s44
    %p46 = scmp.eq.s32.totalorder %s20, 0
    %p47 = por %p45, %p46
    %s48 = ssub.s32 %s14, %s21
    %p49 = scmp.eq.s32.totalorder %s48, 0
    %s51 = sadd.s32 %s50, 1
    %s52 = scalar_select %p49, %s50, %s51
    %p55 = pneg %p49
    %p56 = scmp.eq.s32.totalorder %s14, 1
    %p57 = por %p55, %p56
    %p58 = scmp.ne.s32.totalorder %s50, %s53
    %p59 = scmp.eq.s32.totalorder %s14, 0
    %p60 = por %p58, %p59
    %p61 = scmp.ne.s32.totalorder %s50, %s53
    %p62 = scmp.eq.s32.totalorder %s19, 1
    %p63 = por %p61, %p62
    %p64 = scmp.ne.s32.totalorder %s53, %s54
    %p65 = scmp.eq.s32.totalorder %s19, 0
    %p66 = por %p64, %p65
    %p67 = scmp.ne.s32.totalorder %s53, %s54
    %p68 = scmp.eq.s32.totalorder %s20, 1
    %p69 = por %p67, %p68
    %p71 = scmp.ne.s32.totalorder %s54, %s70
    %p72 = scmp.eq.s32.totalorder %s20, 0
    %p73 = por %p71, %p72
    %s75 = sadd.s32 %s74, 1
    %p78 = scmp.eq.s32.totalorder %s14, 1
    %p79 = scmp.ne.s32.totalorder %s74, %s76
    %p80 = scmp.eq.s32.totalorder %s14, 0
    %p81 = por %p79, %p80
    %p82 = scmp.ne.s32.totalorder %s74, %s76
    %p83 = scmp.eq.s32.totalorder %s19, 1
    %p84 = por %p82, %p83
    %p85 = scmp.ne.s32.totalorder %s76, %s77
    %p86 = scmp.eq.s32.totalorder %s19, 0
    %p87 = por %p85, %p86
    %p88 = scmp.ne.s32.totalorder %s76, %s77
    %p89 = scmp.eq.s32.totalorder %s20, 1
    %p90 = por %p88, %p89
    %p92 = scmp.ne.s32.totalorder %s77, %s91
    %p93 = scmp.eq.s32.totalorder %s20, 0
    %p94 = por %p92, %p93
    %s96 = sadd.s32 %s95, 1
    %p99 = scmp.eq.s32.totalorder %s14, 1
    %p100 = scmp.ne.s32.totalorder %s95, %s97
    %p101 = scmp.eq.s32.totalorder %s14, 0
    %p102 = por %p100, %p101
    %p103 = scmp.ne.s32.totalorder %s95, %s97
    %p104 = scmp.eq.s32.totalorder %s19, 1
    %p105 = por %p103, %p104
    %p106 = scmp.ne.s32.totalorder %s97, %s98
    %p107 = scmp.eq.s32.totalorder %s19, 0
    %p108 = por %p106, %p107
    %p109 = scmp.ne.s32.totalorder %s97, %s98
    %p110 = scmp.eq.s32.totalorder %s20, 1
    %p111 = por %p109, %p110
    %p113 = scmp.ne.s32.totalorder %s98, %s112
    %p114 = scmp.eq.s32.totalorder %s20, 0
    %p115 = por %p113, %p114
    %s117 = sadd.s32 %s116, 1
    %p120 = scmp.eq.s32.totalorder %s14, 1
    %p121 = scmp.ne.s32.totalorder %s116, %s118
    %p122 = scmp.eq.s32.totalorder %s14, 0
    %p123 = por %p121, %p122
    %p124 = scmp.ne.s32.totalorder %s116, %s118
    %p125 = scmp.eq.s32.totalorder %s19, 1
    %p126 = por %p124, %p125
    %p127 = scmp.ne.s32.totalorder %s118, %s119
    %p128 = scmp.eq.s32.totalorder %s19, 0
    %p129 = por %p127, %p128
    %p130 = scmp.ne.s32.totalorder %s118, %s119
    %p131 = scmp.eq.s32.totalorder %s20, 1
    %p132 = por %p130, %p131
    %p134 = scmp.ne.s32.totalorder %s119, %s133
    %p135 = scmp.eq.s32.totalorder %s20, 0
    %p136 = por %p134, %p135
    %s138 = sadd.s32 %s137, 1
    %p141 = scmp.eq.s32.totalorder %s14, 1
    %p142 = scmp.ne.s32.totalorder %s137, %s139
    %p143 = scmp.eq.s32.totalorder %s14, 0
    %p144 = por %p142, %p143
    %p145 = scmp.ne.s32.totalorder %s137, %s139
    %p146 = scmp.eq.s32.totalorder %s19, 1
    %p147 = por %p145, %p146
    %p148 = scmp.ne.s32.totalorder %s139, %s140
    %p149 = scmp.eq.s32.totalorder %s19, 0
    %p150 = por %p148, %p149
    %p151 = scmp.ne.s32.totalorder %s139, %s140
    %p152 = scmp.eq.s32.totalorder %s20, 1
    %p153 = por %p151, %p152
    %p155 = scmp.ne.s32.totalorder %s140, %s154
    %p156 = scmp.eq.s32.totalorder %s20, 0
    %p157 = por %p155, %p156
    %s158 = ssub.s32 %s14, %s21
    %p159 = scmp.eq.s32.totalorder %s158, 0
    %s161 = sadd.s32 %s160, 1
    %s162 = scalar_select %p159, %s160, %s161
    %p165 = pneg %p159
    %p166 = scmp.eq.s32.totalorder %s14, 1
    %p167 = por %p165, %p166
    %p168 = scmp.ne.s32.totalorder %s160, %s163
    %p169 = scmp.eq.s32.totalorder %s14, 0
    %p170 = por %p168, %p169
    %p171 = scmp.ne.s32.totalorder %s160, %s163
    %p172 = scmp.eq.s32.totalorder %s19, 1
    %p173 = por %p171, %p172
    %p174 = scmp.ne.s32.totalorder %s163, %s164
    %p175 = scmp.eq.s32.totalorder %s19, 0
    %p176 = por %p174, %p175
    %p177 = scmp.ne.s32.totalorder %s163, %s164
    %p178 = scmp.eq.s32.totalorder %s20, 1
    %p179 = por %p177, %p178
    %p181 = scmp.ne.s32.totalorder %s164, %s180
    %p182 = scmp.eq.s32.totalorder %s20, 0
    %p183 = por %p181, %p182
    %s184 = ssub.s32 %s14, %s21
    %p185 = scmp.eq.s32.totalorder %s184, 0
    %s187 = sadd.s32 %s186, 1
    %s188 = scalar_select %p185, %s186, %s187
    %p191 = pneg %p185
    %p192 = scmp.eq.s32.totalorder %s14, 1
    %p193 = por %p191, %p192
    %p194 = scmp.ne.s32.totalorder %s186, %s189
    %p195 = scmp.eq.s32.totalorder %s14, 0
    %p196 = por %p194, %p195
    %p197 = scmp.ne.s32.totalorder %s186, %s189
    %p198 = scmp.eq.s32.totalorder %s19, 1
    %p199 = por %p197, %p198
    %p200 = scmp.ne.s32.totalorder %s189, %s190
    %p201 = scmp.eq.s32.totalorder %s19, 0
    %p202 = por %p200, %p201
    %p203 = scmp.ne.s32.totalorder %s189, %s190
    %p204 = scmp.eq.s32.totalorder %s20, 1
    %p205 = por %p203, %p204
    %p207 = scmp.ne.s32.totalorder %s190, %s206
    %p208 = scmp.eq.s32.totalorder %s20, 0
    %p209 = por %p207, %p208
    %p210 = scmp.le.s32.totalorder 1, %s14
    %p211 = scmp.lt.s32.totalorder %s14, 3
    %p212 = pnand %p210, %p211
    %p213 = pneg %p212
    // Predicated region
    $region9: #{fno_rnn_2d_forward.21} parent=5 // pred_check
      _
    $region10: #{fno_rnn_2d_forward.21} parent=5 // pred_check_branch
      %215 = sbr.rel (%p212) target = $region12
    $region11: #{fno_rnn_2d_forward.21} parent=5 // pred_region
      %s216 = ssub.s32 %s14, 1
      // Predicated region
      $region13: #{fno_rnn_2d_forward.21} parent=11 // pred_check
        %p217 = pneg %p87
      $region14: #{fno_rnn_2d_forward.21} parent=11 // pred_check_branch
        %219 = sbr.rel (%p217) target = $region16
      $region15: #{fno_rnn_2d_forward.21} parent=11 // pred_region
        _
      $region16: #{fno_rnn_2d_forward.21} parent=11 // pred_fallthru
        _
      // Predicated region
      $region17: #{fno_rnn_2d_forward.21} parent=11 // pred_check
        %p220 = pneg %p108
      $region18: #{fno_rnn_2d_forward.21} parent=11 // pred_check_branch
        %222 = sbr.rel (%p220) target = $region20
      $region19: #{fno_rnn_2d_forward.21} parent=11 // pred_region
        _
      $region20: #{fno_rnn_2d_forward.21} parent=11 // pred_fallthru
        _
      // Predicated region
      $region21: #{fno_rnn_2d_forward.21} parent=11 // pred_check
        %p223 = pneg %p129
      $region22: #{fno_rnn_2d_forward.21} parent=11 // pred_check_branch
        %225 = sbr.rel (%p223) target = $region24
      $region23: #{fno_rnn_2d_forward.21} parent=11 // pred_region
        _
      $region24: #{fno_rnn_2d_forward.21} parent=11 // pred_fallthru
        _
      // Predicated region
      $region25: #{fno_rnn_2d_forward.21} parent=11 // pred_check
        %p226 = pneg %p150
      $region26: #{fno_rnn_2d_forward.21} parent=11 // pred_check_branch
        %228 = sbr.rel (%p226) target = $region28
      $region27: #{fno_rnn_2d_forward.21} parent=11 // pred_region
        _
      $region28: #{fno_rnn_2d_forward.21} parent=11 // pred_fallthru
        _
    $region12: #{fno_rnn_2d_forward.21} parent=5 // pred_fallthru
      _
    %p229 = scmp.lt.s32.totalorder %s14, 2
    // Predicated region
    $region29: #{fno_rnn_2d_forward.21} parent=5 // pred_check
      %p230 = pneg %p229
    $region30: #{fno_rnn_2d_forward.21} parent=5 // pred_check_branch
      %232 = sbr.rel (%p230) target = $region32
    $region31: #{fno_rnn_2d_forward.21} parent=5 // pred_region
      // Predicated region
      $region33: #{fno_rnn_2d_forward.21} parent=31 // pred_check
        %p233 = pneg %p34
      $region34: #{fno_rnn_2d_forward.21} parent=31 // pred_check_branch
        %235 = sbr.rel (%p233) target = $region36
      $region35: #{fno_rnn_2d_forward.21} parent=31 // pred_region
        %p236 = scmp.lt.s32.totalorder %s14, 1
        %s237 = scalar_select %p236, %s14, 1
        %s238 = smul.addr %s237, 4
        %s239 = smul.addr %s238, 8
        %s240 = scalar_lea.vmem %s0, %s239
      $region36: #{fno_rnn_2d_forward.21} parent=31 // pred_fallthru
        _
      // Predicated region
      $region37: #{fno_rnn_2d_forward.21} parent=31 // pred_check
        %p241 = pneg %p60
      $region38: #{fno_rnn_2d_forward.21} parent=31 // pred_check_branch
        %243 = sbr.rel (%p241) target = $region40
      $region39: #{fno_rnn_2d_forward.21} parent=31 // pred_region
        %p244 = scmp.lt.s32.totalorder %s14, 1
        %s245 = scalar_select %p244, %s14, 1
        %s246 = smul.addr %s245, 4
        %s247 = smul.addr %s246, 8
        %s248 = scalar_lea.vmem %s1, %s247
      $region40: #{fno_rnn_2d_forward.21} parent=31 // pred_fallthru
        _
    $region32: #{fno_rnn_2d_forward.21} parent=5 // pred_fallthru
      _
    %p249 = scmp.le.s32.totalorder 1, %s14
    %p250 = scmp.lt.s32.totalorder %s14, 3
    %p251 = pnand %p249, %p250
    %p252 = pneg %p251
    // Predicated region
    $region41: #{fno_rnn_2d_forward.21} parent=5 // pred_check
      _
    $region42: #{fno_rnn_2d_forward.21} parent=5 // pred_check_branch
      %254 = sbr.rel (%p251) target = $region44
    $region43: #{fno_rnn_2d_forward.21} parent=5 // pred_region
      %s255 = ssub.s32 %s14, 1
      %p256 = scmp.lt.s32.totalorder %s19, 1
      %s257 = scalar_select %p256, %s19, 1
      %s258 = smul.addr %s257, 4
      %s259 = smul.addr %s258, 8
      %s260 = scalar_lea.vmem %s0, %s259
      %p261 = pneg %p40
      %p262 = pneg %p37
      %p263 = scmp.lt.s32.totalorder %s19, 1
      %s264 = scalar_select %p263, %s19, 1
      %s265 = smul.addr %s264, 4
      %s266 = smul.addr %s265, 8
      %s267 = scalar_lea.vmem %s1, %s266
      %p268 = pneg %p66
      %p269 = pneg %p63
      %p270 = pneg %p87
      %p271 = pneg %p84
      %p272 = pneg %p108
      %p273 = pneg %p105
      %p274 = pneg %p129
      %p275 = pneg %p126
      %p276 = pneg %p150
      %p277 = pneg %p147
      %p278 = pneg %p176
      %p279 = pneg %p173
      %p280 = scmp.lt.s32.totalorder %s19, 1
      %s281 = scalar_select %p280, %s19, 1
      %s282 = smul.addr %s281, 4
      %s283 = smul.addr %s282, 8
      %s284 = scalar_lea.vmem %s6, %s283
      %p285 = pneg %p202
      %p286 = pneg %p199
      %p287 = scmp.lt.s32.totalorder %s19, 1
      %s288 = scalar_select %p287, %s19, 1
      %s289 = smul.addr %s288, 2
      %s290 = smul.addr %s289, 4
      %s291 = scalar_lea.vmem %s7, %s290
      %p292 = scmp.lt.s32.totalorder %s19, 1
      %s293 = scalar_select %p292, %s19, 1
      %s294 = smul.addr %s293, 4
      %s295 = smul.addr %s294, 8
      %s296 = scalar_lea.vmem %s0, %s295
      %p297 = scmp.lt.s32.totalorder %s19, 1
      %s298 = scalar_select %p297, %s19, 1
      %s299 = smul.addr %s298, 4
      %s300 = smul.addr %s299, 8
      %s301 = scalar_lea.vmem %s1, %s300
      %p302 = scmp.lt.s32.totalorder %s19, 1
      %s303 = scalar_select %p302, %s19, 1
      %s304 = smul.addr %s303, 4
      %s305 = smul.addr %s304, 8
      %s306 = scalar_lea.vmem %s6, %s305
      %p307 = scmp.lt.s32.totalorder %s19, 1
      %s308 = scalar_select %p307, %s19, 1
      %s309 = smul.addr %s308, 2
      %s310 = smul.addr %s309, 4
      %s311 = scalar_lea.vmem %s7, %s310
      %v312 = vld [vmem:[%s2] sm:$0xff]
      %v313 = vld [vmem:[%s2 + $0x8] sm:$0xff]
      %v314 = vld [vmem:[%s301] sm:$0xff]
      %v315 = vld [vmem:[%s301 + $0x8] sm:$0xff]
      %v316 = vld [vmem:[%s301 + $0x10] sm:$0xff]
      %v317 = vld [vmem:[%s301 + $0x18] sm:$0xff]
      %v318 = vld [vmem:[%s3] sm:$0xff]
      %v319 = vld [vmem:[%s3 + $0x8] sm:$0xff]
      %321 = vset.pattern.permute.xlu0 0
      %322 = vperm.xlu0 %321, %v318
      %v323 = vpop.permute.xlu0 %322
      %326 = vset.pattern.permute.xlu0 0
      %327 = vperm.xlu0 %326, %v319
      %v328 = vpop.permute.xlu0 %327
      %vm330 = vcmask 130048
      %v332 = vsel %vm330, %v312, 0
      %v335 = vsel %vm330, %v313, 0
      %337 = vmatpush.msra.mxu0 0.0
      %338 = vmatpush.msra.mxu0 0.0
      %339 = vmatpush.msra.mxu0 0.0
      %340 = vmatpush.msra.mxu0 0.0
      %341 = vmatpush.msra.mxu0 0.0
      %342 = vmatpush.msra.mxu0 0.0
      %343 = vmatpush.msra.mxu0 0.0
      %344 = vmatpush.msra.mxu0 0.0
      %345 = vmatpush.msra.mxu0 0.0
      %346 = vmatpush.msra.mxu0 0.0
      %347 = vmatpush.msra.mxu0 0.0
      %348 = vmatpush.msra.mxu0 0.0
      %349 = vmatpush.msra.mxu0 0.0
      %350 = vmatpush.msra.mxu0 0.0
      %351 = vmatpush.msra.mxu0 %v316
      %352 = vmatpush.msra.mxu0 %v314
      %353 = vmatmul.f32.gmra.mxu0 %v332
      %v354 = vpop.f32.mrf.mxu0
      %v355 = vadd.f32 %v323, %v354
      %356 = vmatmul.f32.gmra.mxu0 %v335
      %v357 = vpop.f32.mrf.mxu0
      %v358 = vadd.f32 %v328, %v357
      %359 = vdwg.mxu0
      %360 = vmatpush.msra.mxu0 0.0
      %361 = vmatpush.msra.mxu0 0.0
      %362 = vmatpush.msra.mxu0 0.0
      %363 = vmatpush.msra.mxu0 0.0
      %364 = vmatpush.msra.mxu0 0.0
      %365 = vmatpush.msra.mxu0 0.0
      %366 = vmatpush.msra.mxu0 0.0
      %367 = vmatpush.msra.mxu0 0.0
      %368 = vmatpush.msra.mxu0 0.0
      %369 = vmatpush.msra.mxu0 0.0
      %370 = vmatpush.msra.mxu0 0.0
      %371 = vmatpush.msra.mxu0 0.0
      %372 = vmatpush.msra.mxu0 0.0
      %373 = vmatpush.msra.mxu0 0.0
      %374 = vmatpush.msra.mxu0 %v317
      %375 = vmatpush.msra.mxu0 %v315
      %376 = vmatmul.f32.gmra.mxu0 %v332
      %v377 = vpop.f32.mrf.mxu0
      %v378 = vadd.f32 %v323, %v377
      %379 = vmatmul.f32.gmra.mxu0 %v335
      %v380 = vpop.f32.mrf.mxu0
      %v381 = vadd.f32 %v328, %v380
      %382 = vdwg.mxu0
      %v383 = vld [vmem:[%s296] sm:$0xff]
      %v384 = vld [vmem:[%s296 + $0x8] sm:$0xff]
      %v385 = vld [vmem:[%s296 + $0x10] sm:$0xff]
      %v386 = vld [vmem:[%s296 + $0x18] sm:$0xff]
      %v387 = vmax.f32 %v383, 0.0
      %v388 = vmax.f32 %v384, 0.0
      %v389 = vmax.f32 %v385, 0.0
      %v390 = vmax.f32 %v386, 0.0
      %v391 = vadd.f32 %v387, %v355
      %v392 = vadd.f32 %v388, %v378
      %v393 = vadd.f32 %v389, %v358
      %v394 = vadd.f32 %v390, %v381
      %395 = vst [vmem:[%s306] sm:$0xff] %v391
      %396 = vst [vmem:[%s306 + $0x8] sm:$0xff] %v392
      %397 = vst [vmem:[%s306 + $0x10] sm:$0xff] %v393
      %398 = vst [vmem:[%s306 + $0x18] sm:$0xff] %v394
      %v399 = vld [vmem:[%s4] sm:$0x7]
      %v400 = vld [vmem:[%s5] sm:$0x7]
      %402 = vset.pattern.permute.xlu0 0
      %403 = vperm.xlu0 %402, %v400
      %v404 = vpop.permute.xlu0 %403
      %v407 = vsel %vm330, %v399, 0
      %409 = vmatpush.msra.mxu0 0.0
      %410 = vmatpush.msra.mxu0 0.0
      %411 = vmatpush.msra.mxu0 0.0
      %412 = vmatpush.msra.mxu0 0.0
      %413 = vmatpush.msra.mxu0 0.0
      %414 = vmatpush.msra.mxu0 0.0
      %415 = vmatpush.msra.mxu0 0.0
      %416 = vmatpush.msra.mxu0 0.0
      %417 = vmatpush.msra.mxu0 0.0
      %418 = vmatpush.msra.mxu0 0.0
      %419 = vmatpush.msra.mxu0 0.0
      %420 = vmatpush.msra.mxu0 0.0
      %421 = vmatpush.msra.mxu0 0.0
      %422 = vmatpush.msra.mxu0 0.0
      %423 = vmatpush.msra.mxu0 %v393
      %424 = vmatpush.msra.mxu0 %v391
      %425 = vmatmul.f32.gmra.mxu0 %v407
      %v426 = vpop.f32.mrf.mxu0
      %v427 = vadd.f32 %v404, %v426
      %428 = vdwg.mxu0
      %429 = vmatpush.msra.mxu0 0.0
      %430 = vmatpush.msra.mxu0 0.0
      %431 = vmatpush.msra.mxu0 0.0
      %432 = vmatpush.msra.mxu0 0.0
      %433 = vmatpush.msra.mxu0 0.0
      %434 = vmatpush.msra.mxu0 0.0
      %435 = vmatpush.msra.mxu0 0.0
      %436 = vmatpush.msra.mxu0 0.0
      %437 = vmatpush.msra.mxu0 0.0
      %438 = vmatpush.msra.mxu0 0.0
      %439 = vmatpush.msra.mxu0 0.0
      %440 = vmatpush.msra.mxu0 0.0
      %441 = vmatpush.msra.mxu0 0.0
      %442 = vmatpush.msra.mxu0 0.0
      %443 = vmatpush.msra.mxu0 %v394
      %444 = vmatpush.msra.mxu0 %v392
      %445 = vmatmul.f32.gmra.mxu0 %v407
      %v446 = vpop.f32.mrf.mxu0
      %v447 = vadd.f32 %v404, %v446
      %448 = vdwg.mxu0
      %v451 = vrot.slane %v447, 4
      %vm452 = vcmask 1043456
      %v453 = vsel %vm452, %v427, %v451
      %455 = vst [vmem:[%s311] sm:$0x77] %v453
      %p456 = scmp.lt.s32.totalorder %s19, 1
      %s457 = scalar_select %p456, %s19, 1
      %s458 = smul.addr %s457, 4
      %s459 = smul.addr %s458, 8
      %s460 = scalar_lea.vmem %s6, %s459
      %p461 = scmp.lt.s32.totalorder %s19, 1
      %s462 = scalar_select %p461, %s19, 1
      %s463 = smul.addr %s462, 2
      %s464 = smul.addr %s463, 4
      %s465 = scalar_lea.vmem %s7, %s464
      // Predicated region
      $region45: #{fno_rnn_2d_forward.21} parent=43 // pred_check
        %p466 = pneg %p173
      $region46: #{fno_rnn_2d_forward.21} parent=43 // pred_check_branch
        %468 = sbr.rel (%p466) target = $region48
      $region47: #{fno_rnn_2d_forward.21} parent=43 // pred_region
        _
      $region48: #{fno_rnn_2d_forward.21} parent=43 // pred_fallthru
        _
      // Predicated region
      $region49: #{fno_rnn_2d_forward.21} parent=43 // pred_check
        %p469 = pneg %p199
      $region50: #{fno_rnn_2d_forward.21} parent=43 // pred_check_branch
        %471 = sbr.rel (%p469) target = $region52
      $region51: #{fno_rnn_2d_forward.21} parent=43 // pred_region
        _
      $region52: #{fno_rnn_2d_forward.21} parent=43 // pred_fallthru
        _
    $region44: #{fno_rnn_2d_forward.21} parent=5 // pred_fallthru
      _
    %p472 = scmp.le.s32.totalorder 2, %s14
    // Predicated region
    $region53: #{fno_rnn_2d_forward.21} parent=5 // pred_check
      %p473 = pneg %p472
    $region54: #{fno_rnn_2d_forward.21} parent=5 // pred_check_branch
      %475 = sbr.rel (%p473) target = $region56
    $region55: #{fno_rnn_2d_forward.21} parent=5 // pred_region
      %s476 = ssub.s32 %s14, 2
      // Predicated region
      $region57: #{fno_rnn_2d_forward.21} parent=55 // pred_check
        %p477 = pneg %p179
      $region58: #{fno_rnn_2d_forward.21} parent=55 // pred_check_branch
        %479 = sbr.rel (%p477) target = $region60
      $region59: #{fno_rnn_2d_forward.21} parent=55 // pred_region
        %p480 = scmp.lt.s32.totalorder %s20, 1
        %s481 = scalar_select %p480, %s20, 1
        %s482 = smul.addr %s481, 4
        %s483 = smul.addr %s482, 8
        %s484 = scalar_lea.vmem %s6, %s483
      $region60: #{fno_rnn_2d_forward.21} parent=55 // pred_fallthru
        _
      // Predicated region
      $region61: #{fno_rnn_2d_forward.21} parent=55 // pred_check
        %p485 = pneg %p205
      $region62: #{fno_rnn_2d_forward.21} parent=55 // pred_check_branch
        %487 = sbr.rel (%p485) target = $region64
      $region63: #{fno_rnn_2d_forward.21} parent=55 // pred_region
        %p488 = scmp.lt.s32.totalorder %s20, 1
        %s489 = scalar_select %p488, %s20, 1
        %s490 = smul.addr %s489, 2
        %s491 = smul.addr %s490, 4
        %s492 = scalar_lea.vmem %s7, %s491
      $region64: #{fno_rnn_2d_forward.21} parent=55 // pred_fallthru
        _
    $region56: #{fno_rnn_2d_forward.21} parent=5 // pred_fallthru
      _
  $region6: #{fno_rnn_2d_forward.21} parent=0 // loop_footer
    %s18 = sadd.s32 1, %s14
  $region7: #{fno_rnn_2d_forward.21} parent=0 // loop_footer_branch
    %13 = sbr.rel target = $region3
  $region8: #{fno_rnn_2d_forward.21} parent=0 // loop_exit
    _

// kernel: fno_rnn_2d_forward.33
$region0: #{fno_rnn_2d_forward.33}
  #allocation0 [shape = 'u32[]', space=smem, size = 0x4, offset = 0x4, fixed_abs, tag = 'smem constant byte address 0x4 - core index']
  #allocation1 [shape = 'u32[72,128]{1,0:T(1,128)}', space=vmem, size = 0x9000, scoped, tag = 'internal scratch']
  %s0 = inlined_call_operand.vmem [shape: f32[2,16,256], index: 0, kind: input, shape index: {}]
  %s1 = inlined_call_operand.vmem [shape: f32[2,16,256], index: 1, kind: input, shape index: {}]
  %s2 = inlined_call_operand.vmem [shape: f32[16,16], index: 2, kind: input, shape index: {}]
  %s3 = inlined_call_operand.vmem [shape: f32[16,1], index: 3, kind: input, shape index: {}]
  %s4 = inlined_call_operand.vmem [shape: f32[3,16], index: 4, kind: input, shape index: {}]
  %s5 = inlined_call_operand.vmem [shape: f32[3,1], index: 5, kind: input, shape index: {}]
  %s6 = inlined_call_operand.hbm [shape: f32[2,16,256], index: 6, kind: output, shape index: {0}]
  %s7 = inlined_call_operand.vmem [shape: f32[2,3,256], index: 7, kind: output, shape index: {1}]
  %8 = xla_tuple %s6, %s7
  %s9 = sld [smem:[#allocation0]]
  $region65: #{fno_rnn_2d_forward.33} parent=0
    _
  %s11 = ssub.s32 1, %s9
  %s12 = scalar_select 0, %s11, %s9
  $region1: #{fno_rnn_2d_forward.33} parent=0
    #allocation2 [shape = 'u8[32768]{0}', space=vmem, size = 0x8000, scoped, tag = 'output window, operand 0']
    #allocation3 [shape = 's32[2]{0}', space=sflag, size = 0x8, scoped, tag = 'scoped memory for fno_rnn_2d_forward.33']
    %13 = vsyncpa [#allocation3], 0
    %s14 = scalar_lea.sflag [#allocation3], 1
    %15 = vsyncpa %s14, 0
    loop: start=0, step=1, limit=4
    $region2: #{fno_rnn_2d_forward.33} parent=1 // loop_pre_header
      _
    $region3: #{fno_rnn_2d_forward.33} parent=1 // loop_header
      %s17 = sphi 0, %s21
      %p18 = scmp.ge.s32.totalorder %s17, 4
      %s27 = sphi 0, %s29
      %s30 = sphi 0, %s27
      %s31 = sphi 0, %s30
      %s47 = sphi 0, %s31
      %s53 = sphi 0, %s55
      %s56 = sphi 0, %s53
      %s57 = sphi 0, %s56
      %s73 = sphi 0, %s57
      %s77 = sphi 0, %s77
      %s79 = sphi 0, %s77
      %s80 = sphi 0, %s79
      %s94 = sphi 0, %s80
      %s98 = sphi 0, %s98
      %s100 = sphi 0, %s98
      %s101 = sphi 0, %s100
      %s115 = sphi 0, %s101
      %s119 = sphi 0, %s119
      %s121 = sphi 0, %s119
      %s122 = sphi 0, %s121
      %s136 = sphi 0, %s122
      %s140 = sphi 0, %s140
      %s142 = sphi 0, %s140
      %s143 = sphi 0, %s142
      %s157 = sphi 0, %s143
      %s163 = sphi 0, %s165
      %s166 = sphi 0, %s163
      %s167 = sphi 0, %s166
      %s183 = sphi 0, %s167
      %s189 = sphi 0, %s191
      %s192 = sphi 0, %s189
      %s193 = sphi 0, %s192
      %s209 = sphi 0, %s193
    $region4: #{fno_rnn_2d_forward.33} parent=1 // loop_header_branch
      %20 = sbr.rel (%p18) target = $region8
    $region5: #{fno_rnn_2d_forward.33} parent=1 // loop_body
      %s22 = ssub.s32 %s17, 1
      %s23 = ssub.s32 %s17, 2
      %s24 = sadd.s32 %s17, 1
      %s25 = ssub.s32 %s17, %s24
      %p26 = scmp.eq.s32.totalorder %s25, 0
      %s28 = sadd.s32 %s27, 1
      %s29 = scalar_select %p26, %s27, %s28
      %p32 = pneg %p26
      %p33 = scmp.eq.s32.totalorder %s17, 1
      %p34 = por %p32, %p33
      %p35 = scmp.ne.s32.totalorder %s27, %s30
      %p36 = scmp.eq.s32.totalorder %s17, 0
      %p37 = por %p35, %p36
      %p38 = scmp.ne.s32.totalorder %s27, %s30
      %p39 = scmp.eq.s32.totalorder %s22, 1
      %p40 = por %p38, %p39
      %p41 = scmp.ne.s32.totalorder %s30, %s31
      %p42 = scmp.eq.s32.totalorder %s22, 0
      %p43 = por %p41, %p42
      %p44 = scmp.ne.s32.totalorder %s30, %s31
      %p45 = scmp.eq.s32.totalorder %s23, 1
      %p46 = por %p44, %p45
      %p48 = scmp.ne.s32.totalorder %s31, %s47
      %p49 = scmp.eq.s32.totalorder %s23, 0
      %p50 = por %p48, %p49
      %s51 = ssub.s32 %s17, %s24
      %p52 = scmp.eq.s32.totalorder %s51, 0
      %s54 = sadd.s32 %s53, 1
      %s55 = scalar_select %p52, %s53, %s54
      %p58 = pneg %p52
      %p59 = scmp.eq.s32.totalorder %s17, 1
      %p60 = por %p58, %p59
      %p61 = scmp.ne.s32.totalorder %s53, %s56
      %p62 = scmp.eq.s32.totalorder %s17, 0
      %p63 = por %p61, %p62
      %p64 = scmp.ne.s32.totalorder %s53, %s56
      %p65 = scmp.eq.s32.totalorder %s22, 1
      %p66 = por %p64, %p65
      %p67 = scmp.ne.s32.totalorder %s56, %s57
      %p68 = scmp.eq.s32.totalorder %s22, 0
      %p69 = por %p67, %p68
      %p70 = scmp.ne.s32.totalorder %s56, %s57
      %p71 = scmp.eq.s32.totalorder %s23, 1
      %p72 = por %p70, %p71
      %p74 = scmp.ne.s32.totalorder %s57, %s73
      %p75 = scmp.eq.s32.totalorder %s23, 0
      %p76 = por %p74, %p75
      %s78 = sadd.s32 %s77, 1
      %p81 = scmp.eq.s32.totalorder %s17, 1
      %p82 = scmp.ne.s32.totalorder %s77, %s79
      %p83 = scmp.eq.s32.totalorder %s17, 0
      %p84 = por %p82, %p83
      %p85 = scmp.ne.s32.totalorder %s77, %s79
      %p86 = scmp.eq.s32.totalorder %s22, 1
      %p87 = por %p85, %p86
      %p88 = scmp.ne.s32.totalorder %s79, %s80
      %p89 = scmp.eq.s32.totalorder %s22, 0
      %p90 = por %p88, %p89
      %p91 = scmp.ne.s32.totalorder %s79, %s80
      %p92 = scmp.eq.s32.totalorder %s23, 1
      %p93 = por %p91, %p92
      %p95 = scmp.ne.s32.totalorder %s80, %s94
      %p96 = scmp.eq.s32.totalorder %s23, 0
      %p97 = por %p95, %p96
      %s99 = sadd.s32 %s98, 1
      %p102 = scmp.eq.s32.totalorder %s17, 1
      %p103 = scmp.ne.s32.totalorder %s98, %s100
      %p104 = scmp.eq.s32.totalorder %s17, 0
      %p105 = por %p103, %p104
      %p106 = scmp.ne.s32.totalorder %s98, %s100
      %p107 = scmp.eq.s32.totalorder %s22, 1
      %p108 = por %p106, %p107
      %p109 = scmp.ne.s32.totalorder %s100, %s101
      %p110 = scmp.eq.s32.totalorder %s22, 0
      %p111 = por %p109, %p110
      %p112 = scmp.ne.s32.totalorder %s100, %s101
      %p113 = scmp.eq.s32.totalorder %s23, 1
      %p114 = por %p112, %p113
      %p116 = scmp.ne.s32.totalorder %s101, %s115
      %p117 = scmp.eq.s32.totalorder %s23, 0
      %p118 = por %p116, %p117
      %s120 = sadd.s32 %s119, 1
      %p123 = scmp.eq.s32.totalorder %s17, 1
      %p124 = scmp.ne.s32.totalorder %s119, %s121
      %p125 = scmp.eq.s32.totalorder %s17, 0
      %p126 = por %p124, %p125
      %p127 = scmp.ne.s32.totalorder %s119, %s121
      %p128 = scmp.eq.s32.totalorder %s22, 1
      %p129 = por %p127, %p128
      %p130 = scmp.ne.s32.totalorder %s121, %s122
      %p131 = scmp.eq.s32.totalorder %s22, 0
      %p132 = por %p130, %p131
      %p133 = scmp.ne.s32.totalorder %s121, %s122
      %p134 = scmp.eq.s32.totalorder %s23, 1
      %p135 = por %p133, %p134
      %p137 = scmp.ne.s32.totalorder %s122, %s136
      %p138 = scmp.eq.s32.totalorder %s23, 0
      %p139 = por %p137, %p138
      %s141 = sadd.s32 %s140, 1
      %p144 = scmp.eq.s32.totalorder %s17, 1
      %p145 = scmp.ne.s32.totalorder %s140, %s142
      %p146 = scmp.eq.s32.totalorder %s17, 0
      %p147 = por %p145, %p146
      %p148 = scmp.ne.s32.totalorder %s140, %s142
      %p149 = scmp.eq.s32.totalorder %s22, 1
      %p150 = por %p148, %p149
      %p151 = scmp.ne.s32.totalorder %s142, %s143
      %p152 = scmp.eq.s32.totalorder %s22, 0
      %p153 = por %p151, %p152
      %p154 = scmp.ne.s32.totalorder %s142, %s143
      %p155 = scmp.eq.s32.totalorder %s23, 1
      %p156 = por %p154, %p155
      %p158 = scmp.ne.s32.totalorder %s143, %s157
      %p159 = scmp.eq.s32.totalorder %s23, 0
      %p160 = por %p158, %p159
      %s161 = ssub.s32 %s17, %s24
      %p162 = scmp.eq.s32.totalorder %s161, 0
      %s164 = sadd.s32 %s163, 1
      %s165 = scalar_select %p162, %s163, %s164
      %p168 = pneg %p162
      %p169 = scmp.eq.s32.totalorder %s17, 1
      %p170 = por %p168, %p169
      %p171 = scmp.ne.s32.totalorder %s163, %s166
      %p172 = scmp.eq.s32.totalorder %s17, 0
      %p173 = por %p171, %p172
      %p174 = scmp.ne.s32.totalorder %s163, %s166
      %p175 = scmp.eq.s32.totalorder %s22, 1
      %p176 = por %p174, %p175
      %p177 = scmp.ne.s32.totalorder %s166, %s167
      %p178 = scmp.eq.s32.totalorder %s22, 0
      %p179 = por %p177, %p178
      %p180 = scmp.ne.s32.totalorder %s166, %s167
      %p181 = scmp.eq.s32.totalorder %s23, 1
      %p182 = por %p180, %p181
      %p184 = scmp.ne.s32.totalorder %s167, %s183
      %p185 = scmp.eq.s32.totalorder %s23, 0
      %p186 = por %p184, %p185
      %s187 = ssub.s32 %s17, %s24
      %p188 = scmp.eq.s32.totalorder %s187, 0
      %s190 = sadd.s32 %s189, 1
      %s191 = scalar_select %p188, %s189, %s190
      %p194 = pneg %p188
      %p195 = scmp.eq.s32.totalorder %s17, 1
      %p196 = por %p194, %p195
      %p197 = scmp.ne.s32.totalorder %s189, %s192
      %p198 = scmp.eq.s32.totalorder %s17, 0
      %p199 = por %p197, %p198
      %p200 = scmp.ne.s32.totalorder %s189, %s192
      %p201 = scmp.eq.s32.totalorder %s22, 1
      %p202 = por %p200, %p201
      %p203 = scmp.ne.s32.totalorder %s192, %s193
      %p204 = scmp.eq.s32.totalorder %s22, 0
      %p205 = por %p203, %p204
      %p206 = scmp.ne.s32.totalorder %s192, %s193
      %p207 = scmp.eq.s32.totalorder %s23, 1
      %p208 = por %p206, %p207
      %p210 = scmp.ne.s32.totalorder %s193, %s209
      %p211 = scmp.eq.s32.totalorder %s23, 0
      %p212 = por %p210, %p211
      %p213 = scmp.le.s32.totalorder 1, %s17
      %p214 = scmp.lt.s32.totalorder %s17, 3
      %p215 = pnand %p213, %p214
      %p216 = pneg %p215
      // Predicated region
      $region9: #{fno_rnn_2d_forward.33} parent=5 // pred_check
        _
      $region10: #{fno_rnn_2d_forward.33} parent=5 // pred_check_branch
        %218 = sbr.rel (%p215) target = $region12
      $region11: #{fno_rnn_2d_forward.33} parent=5 // pred_region
        %s219 = ssub.s32 %s17, 1
        // Predicated region
        $region13: #{fno_rnn_2d_forward.33} parent=11 // pred_check
          %p220 = pneg %p90
        $region14: #{fno_rnn_2d_forward.33} parent=11 // pred_check_branch
          %222 = sbr.rel (%p220) target = $region16
        $region15: #{fno_rnn_2d_forward.33} parent=11 // pred_region
          _
        $region16: #{fno_rnn_2d_forward.33} parent=11 // pred_fallthru
          _
        // Predicated region
        $region17: #{fno_rnn_2d_forward.33} parent=11 // pred_check
          %p223 = pneg %p111
        $region18: #{fno_rnn_2d_forward.33} parent=11 // pred_check_branch
          %225 = sbr.rel (%p223) target = $region20
        $region19: #{fno_rnn_2d_forward.33} parent=11 // pred_region
          _
        $region20: #{fno_rnn_2d_forward.33} parent=11 // pred_fallthru
          _
        // Predicated region
        $region21: #{fno_rnn_2d_forward.33} parent=11 // pred_check
          %p226 = pneg %p132
        $region22: #{fno_rnn_2d_forward.33} parent=11 // pred_check_branch
          %228 = sbr.rel (%p226) target = $region24
        $region23: #{fno_rnn_2d_forward.33} parent=11 // pred_region
          _
        $region24: #{fno_rnn_2d_forward.33} parent=11 // pred_fallthru
          _
        // Predicated region
        $region25: #{fno_rnn_2d_forward.33} parent=11 // pred_check
          %p229 = pneg %p153
        $region26: #{fno_rnn_2d_forward.33} parent=11 // pred_check_branch
          %231 = sbr.rel (%p229) target = $region28
        $region27: #{fno_rnn_2d_forward.33} parent=11 // pred_region
          _
        $region28: #{fno_rnn_2d_forward.33} parent=11 // pred_fallthru
          _
      $region12: #{fno_rnn_2d_forward.33} parent=5 // pred_fallthru
        _
      %p232 = scmp.lt.s32.totalorder %s17, 2
      // Predicated region
      $region29: #{fno_rnn_2d_forward.33} parent=5 // pred_check
        %p233 = pneg %p232
      $region30: #{fno_rnn_2d_forward.33} parent=5 // pred_check_branch
        %235 = sbr.rel (%p233) target = $region32
      $region31: #{fno_rnn_2d_forward.33} parent=5 // pred_region
        // Predicated region
        $region33: #{fno_rnn_2d_forward.33} parent=31 // pred_check
          %p236 = pneg %p37
        $region34: #{fno_rnn_2d_forward.33} parent=31 // pred_check_branch
          %238 = sbr.rel (%p236) target = $region36
        $region35: #{fno_rnn_2d_forward.33} parent=31 // pred_region
          %p239 = scmp.lt.s32.totalorder %s17, 1
          %s240 = scalar_select %p239, %s17, 1
          %s241 = smul.addr %s240, 4
          %s242 = smul.addr %s241, 8
          %s243 = scalar_lea.vmem %s0, %s242
        $region36: #{fno_rnn_2d_forward.33} parent=31 // pred_fallthru
          _
        // Predicated region
        $region37: #{fno_rnn_2d_forward.33} parent=31 // pred_check
          %p244 = pneg %p63
        $region38: #{fno_rnn_2d_forward.33} parent=31 // pred_check_branch
          %246 = sbr.rel (%p244) target = $region40
        $region39: #{fno_rnn_2d_forward.33} parent=31 // pred_region
          %p247 = scmp.lt.s32.totalorder %s17, 1
          %s248 = scalar_select %p247, %s17, 1
          %s249 = smul.addr %s248, 4
          %s250 = smul.addr %s249, 8
          %s251 = scalar_lea.vmem %s1, %s250
        $region40: #{fno_rnn_2d_forward.33} parent=31 // pred_fallthru
          _
      $region32: #{fno_rnn_2d_forward.33} parent=5 // pred_fallthru
        _
      %p252 = scmp.le.s32.totalorder 1, %s17
      %p253 = scmp.lt.s32.totalorder %s17, 3
      %p254 = pnand %p252, %p253
      %p255 = pneg %p254
      // Predicated region
      $region41: #{fno_rnn_2d_forward.33} parent=5 // pred_check
        _
      $region42: #{fno_rnn_2d_forward.33} parent=5 // pred_check_branch
        %257 = sbr.rel (%p254) target = $region44
      $region43: #{fno_rnn_2d_forward.33} parent=5 // pred_region
        %s258 = ssub.s32 %s17, 1
        %p259 = scmp.lt.s32.totalorder %s22, 1
        %s260 = scalar_select %p259, %s22, 1
        %s261 = smul.addr %s260, 4
        %s262 = smul.addr %s261, 8
        %s263 = scalar_lea.vmem %s0, %s262
        %p264 = pneg %p43
        %p265 = pneg %p40
        %p266 = scmp.lt.s32.totalorder %s22, 1
        %s267 = scalar_select %p266, %s22, 1
        %s268 = smul.addr %s267, 4
        %s269 = smul.addr %s268, 8
        %s270 = scalar_lea.vmem %s1, %s269
        %p271 = pneg %p69
        %p272 = pneg %p66
        %p273 = pneg %p90
        %p274 = pneg %p87
        %p275 = pneg %p111
        %p276 = pneg %p108
        %p277 = pneg %p132
        %p278 = pneg %p129
        %p279 = pneg %p153
        %p280 = pneg %p150
        %p281 = pneg %p179
        %p282 = pneg %p176
        %s283 = sand.u32 %s166, 1
        %s284 = scalar_lea.sflag [#allocation3], %s283
        %s285 = sand.u32 %s166, 1
        %s286 = smul.addr %s285, 32
        %s287 = scalar_lea.vmem [#allocation2], %s286
        %p288 = pneg %p205
        %p289 = pneg %p202
        %p290 = scmp.lt.s32.totalorder %s22, 1
        %s291 = scalar_select %p290, %s22, 1
        %s292 = smul.addr %s291, 2
        %s293 = smul.addr %s292, 4
        %s294 = scalar_lea.vmem %s7, %s293
        %p295 = scmp.lt.s32.totalorder %s22, 1
        %s296 = scalar_select %p295, %s22, 1
        %s297 = smul.addr %s296, 4
        %s298 = smul.addr %s297, 8
        %s299 = scalar_lea.vmem %s0, %s298
        %p300 = scmp.lt.s32.totalorder %s22, 1
        %s301 = scalar_select %p300, %s22, 1
        %s302 = smul.addr %s301, 4
        %s303 = smul.addr %s302, 8
        %s304 = scalar_lea.vmem %s1, %s303
        %p305 = scmp.lt.s32.totalorder %s22, 1
        %s306 = scalar_select %p305, %s22, 1
        %s307 = smul.addr %s306, 2
        %s308 = smul.addr %s307, 4
        %s309 = scalar_lea.vmem %s7, %s308
        %v310 = vld [vmem:[%s2] sm:$0xff]
        %v311 = vld [vmem:[%s2 + $0x8] sm:$0xff]
        %v312 = vld [vmem:[%s304] sm:$0xff]
        %v313 = vld [vmem:[%s304 + $0x8] sm:$0xff]
        %v314 = vld [vmem:[%s304 + $0x10] sm:$0xff]
        %v315 = vld [vmem:[%s304 + $0x18] sm:$0xff]
        %v316 = vld [vmem:[%s3] sm:$0xff]
        %v317 = vld [vmem:[%s3 + $0x8] sm:$0xff]
        %319 = vset.pattern.permute.xlu0 0
        %320 = vperm.xlu0 %319, %v316
        %v321 = vpop.permute.xlu0 %320
        %324 = vset.pattern.permute.xlu0 0
        %325 = vperm.xlu0 %324, %v317
        %v326 = vpop.permute.xlu0 %325
        %vm328 = vcmask 130048
        %v330 = vsel %vm328, %v310, 0
        %v333 = vsel %vm328, %v311, 0
        %335 = vmatpush.msra.mxu0 0.0
        %336 = vmatpush.msra.mxu0 0.0
        %337 = vmatpush.msra.mxu0 0.0
        %338 = vmatpush.msra.mxu0 0.0
        %339 = vmatpush.msra.mxu0 0.0
        %340 = vmatpush.msra.mxu0 0.0
        %341 = vmatpush.msra.mxu0 0.0
        %342 = vmatpush.msra.mxu0 0.0
        %343 = vmatpush.msra.mxu0 0.0
        %344 = vmatpush.msra.mxu0 0.0
        %345 = vmatpush.msra.mxu0 0.0
        %346 = vmatpush.msra.mxu0 0.0
        %347 = vmatpush.msra.mxu0 0.0
        %348 = vmatpush.msra.mxu0 0.0
        %349 = vmatpush.msra.mxu0 %v314
        %350 = vmatpush.msra.mxu0 %v312
        %351 = vmatmul.f32.gmra.mxu0 %v330
        %v352 = vpop.f32.mrf.mxu0
        %v353 = vadd.f32 %v321, %v352
        %354 = vmatmul.f32.gmra.mxu0 %v333
        %v355 = vpop.f32.mrf.mxu0
        %v356 = vadd.f32 %v326, %v355
        %357 = vdwg.mxu0
        %358 = vmatpush.msra.mxu0 0.0
        %359 = vmatpush.msra.mxu0 0.0
        %360 = vmatpush.msra.mxu0 0.0
        %361 = vmatpush.msra.mxu0 0.0
        %362 = vmatpush.msra.mxu0 0.0
        %363 = vmatpush.msra.mxu0 0.0
        %364 = vmatpush.msra.mxu0 0.0
        %365 = vmatpush.msra.mxu0 0.0
        %366 = vmatpush.msra.mxu0 0.0
        %367 = vmatpush.msra.mxu0 0.0
        %368 = vmatpush.msra.mxu0 0.0
        %369 = vmatpush.msra.mxu0 0.0
        %370 = vmatpush.msra.mxu0 0.0
        %371 = vmatpush.msra.mxu0 0.0
        %372 = vmatpush.msra.mxu0 %v315
        %373 = vmatpush.msra.mxu0 %v313
        %374 = vmatmul.f32.gmra.mxu0 %v330
        %v375 = vpop.f32.mrf.mxu0
        %v376 = vadd.f32 %v321, %v375
        %377 = vmatmul.f32.gmra.mxu0 %v333
        %v378 = vpop.f32.mrf.mxu0
        %v379 = vadd.f32 %v326, %v378
        %380 = vdwg.mxu0
        %v381 = vld [vmem:[%s299] sm:$0xff]
        %v382 = vld [vmem:[%s299 + $0x8] sm:$0xff]
        %v383 = vld [vmem:[%s299 + $0x10] sm:$0xff]
        %v384 = vld [vmem:[%s299 + $0x18] sm:$0xff]
        %v385 = vmax.f32 %v381, 0.0
        %v386 = vmax.f32 %v382, 0.0
        %v387 = vmax.f32 %v383, 0.0
        %v388 = vmax.f32 %v384, 0.0
        %v389 = vadd.f32 %v385, %v353
        %v390 = vadd.f32 %v386, %v376
        %v391 = vadd.f32 %v387, %v356
        %v392 = vadd.f32 %v388, %v379
        %393 = vst [vmem:[%s287] sm:$0xff] %v389
        %394 = vst [vmem:[%s287 + $0x8] sm:$0xff] %v390
        %395 = vst [vmem:[%s287 + $0x10] sm:$0xff] %v391
        %396 = vst [vmem:[%s287 + $0x18] sm:$0xff] %v392
        %v397 = vld [vmem:[%s4] sm:$0x7]
        %v398 = vld [vmem:[%s5] sm:$0x7]
        %400 = vset.pattern.permute.xlu0 0
        %401 = vperm.xlu0 %400, %v398
        %v402 = vpop.permute.xlu0 %401
        %v405 = vsel %vm328, %v397, 0
        %407 = vmatpush.msra.mxu0 0.0
        %408 = vmatpush.msra.mxu0 0.0
        %409 = vmatpush.msra.mxu0 0.0
        %410 = vmatpush.msra.mxu0 0.0
        %411 = vmatpush.msra.mxu0 0.0
        %412 = vmatpush.msra.mxu0 0.0
        %413 = vmatpush.msra.mxu0 0.0
        %414 = vmatpush.msra.mxu0 0.0
        %415 = vmatpush.msra.mxu0 0.0
        %416 = vmatpush.msra.mxu0 0.0
        %417 = vmatpush.msra.mxu0 0.0
        %418 = vmatpush.msra.mxu0 0.0
        %419 = vmatpush.msra.mxu0 0.0
        %420 = vmatpush.msra.mxu0 0.0
        %421 = vmatpush.msra.mxu0 %v391
        %422 = vmatpush.msra.mxu0 %v389
        %423 = vmatmul.f32.gmra.mxu0 %v405
        %v424 = vpop.f32.mrf.mxu0
        %v425 = vadd.f32 %v402, %v424
        %426 = vdwg.mxu0
        %427 = vmatpush.msra.mxu0 0.0
        %428 = vmatpush.msra.mxu0 0.0
        %429 = vmatpush.msra.mxu0 0.0
        %430 = vmatpush.msra.mxu0 0.0
        %431 = vmatpush.msra.mxu0 0.0
        %432 = vmatpush.msra.mxu0 0.0
        %433 = vmatpush.msra.mxu0 0.0
        %434 = vmatpush.msra.mxu0 0.0
        %435 = vmatpush.msra.mxu0 0.0
        %436 = vmatpush.msra.mxu0 0.0
        %437 = vmatpush.msra.mxu0 0.0
        %438 = vmatpush.msra.mxu0 0.0
        %439 = vmatpush.msra.mxu0 0.0
        %440 = vmatpush.msra.mxu0 0.0
        %441 = vmatpush.msra.mxu0 %v392
        %442 = vmatpush.msra.mxu0 %v390
        %443 = vmatmul.f32.gmra.mxu0 %v405
        %v444 = vpop.f32.mrf.mxu0
        %v445 = vadd.f32 %v402, %v444
        %446 = vdwg.mxu0
        %v449 = vrot.slane %v445, 4
        %vm450 = vcmask 1043456
        %v451 = vsel %vm450, %v425, %v449
        %453 = vst [vmem:[%s309] sm:$0x77] %v451
        %s454 = sand.u32 %s166, 1
        %s455 = scalar_lea.sflag [#allocation3], %s454
        %s456 = sand.u32 %s166, 1
        %s457 = smul.addr %s456, 32
        %s458 = scalar_lea.vmem [#allocation2], %s457
        %p459 = scmp.lt.s32.totalorder %s22, 1
        %s460 = scalar_select %p459, %s22, 1
        %s461 = smul.addr %s460, 2
        %s462 = smul.addr %s461, 4
        %s463 = scalar_lea.vmem %s7, %s462
        // Predicated region
        $region45: #{fno_rnn_2d_forward.33} parent=43 // pred_check
          %p464 = pneg %p176
        $region46: #{fno_rnn_2d_forward.33} parent=43 // pred_check_branch
          %466 = sbr.rel (%p464) target = $region48
        $region47: #{fno_rnn_2d_forward.33} parent=43 // pred_region
          %468 = vsyncadd %s455, 0
          %s469 = smul.addr %s22, 4
          %s470 = smul.addr %s469, 8
          %s471 = scalar_lea.hbm %s6, %s470
          %s472 = sshll.u32 %s458, 4
          %s473 = int_to_ptr.vmem [resolvable:$true] %s472
          %s474 = sshll.u32 %s471, 4
          %s475 = int_to_ptr.hbm [resolvable:$true] %s474
          %480 = dma.vmem_to_hbm [thread:$0]  %s473, 512, %s475, %s455, 256, 256, 16
        $region48: #{fno_rnn_2d_forward.33} parent=43 // pred_fallthru
          _
        // Predicated region
        $region49: #{fno_rnn_2d_forward.33} parent=43 // pred_check
          %p481 = pneg %p202
        $region50: #{fno_rnn_2d_forward.33} parent=43 // pred_check_branch
          %483 = sbr.rel (%p481) target = $region52
        $region51: #{fno_rnn_2d_forward.33} parent=43 // pred_region
          _
        $region52: #{fno_rnn_2d_forward.33} parent=43 // pred_fallthru
          _
      $region44: #{fno_rnn_2d_forward.33} parent=5 // pred_fallthru
        _
      %p484 = scmp.le.s32.totalorder 2, %s17
      // Predicated region
      $region53: #{fno_rnn_2d_forward.33} parent=5 // pred_check
        %p485 = pneg %p484
      $region54: #{fno_rnn_2d_forward.33} parent=5 // pred_check_branch
        %487 = sbr.rel (%p485) target = $region56
      $region55: #{fno_rnn_2d_forward.33} parent=5 // pred_region
        %s488 = ssub.s32 %s17, 2
        // Predicated region
        $region57: #{fno_rnn_2d_forward.33} parent=55 // pred_check
          %p489 = pneg %p182
        $region58: #{fno_rnn_2d_forward.33} parent=55 // pred_check_branch
          %491 = sbr.rel (%p489) target = $region60
        $region59: #{fno_rnn_2d_forward.33} parent=55 // pred_region
          %s492 = sand.u32 %s167, 1
          %s493 = scalar_lea.sflag [#allocation3], %s492
          %s494 = sand.u32 %s167, 1
          %s495 = smul.addr %s494, 32
          %s496 = scalar_lea.vmem [#allocation2], %s495
          %498 = dma.done %s493, 512
        $region60: #{fno_rnn_2d_forward.33} parent=55 // pred_fallthru
          _
        // Predicated region
        $region61: #{fno_rnn_2d_forward.33} parent=55 // pred_check
          %p499 = pneg %p208
        $region62: #{fno_rnn_2d_forward.33} parent=55 // pred_check_branch
          %501 = sbr.rel (%p499) target = $region64
        $region63: #{fno_rnn_2d_forward.33} parent=55 // pred_region
          %p502 = scmp.lt.s32.totalorder %s23, 1
          %s503 = scalar_select %p502, %s23, 1
          %s504 = smul.addr %s503, 2
          %s505 = smul.addr %s504, 4
          %s506 = scalar_lea.vmem %s7, %s505
        $region64: #{fno_rnn_2d_forward.33} parent=55 // pred_fallthru
          _
      $region56: #{fno_rnn_2d_forward.33} parent=5 // pred_fallthru
        _
    $region6: #{fno_rnn_2d_forward.33} parent=1 // loop_footer
      %s21 = sadd.s32 1, %s17
    $region7: #{fno_rnn_2d_forward.33} parent=1 // loop_footer_branch
      %16 = sbr.rel target = $region3
    $region8: #{fno_rnn_2d_forward.33} parent=1 // loop_exit
      _
    %507 = vsyncpa [#allocation3], 1
    %s508 = scalar_lea.sflag [#allocation3], 1
    %509 = vsyncpa %s508, 1

</llo_original>
